<compile_context>
chip_gen: v7x
topology: tpu7x:2x2x1
jax: 0.10.0
libtpu: 0.0.40
codegen_flags: <defaults>
</compile_context>

<pallas_src>
import functools
import math

import jax
import jax.numpy as jnp
from jax.experimental import pallas as pl
from jax.experimental.pallas import tpu as pltpu

# ----------------------------- model config (small) -------------------------
IMAGE_SIZE = 16
PATCH_SIZE = 4
NUM_CHANNELS = 3
HIDDEN = 32
NUM_HEADS = 4
INTERMEDIATE = 64
NUM_LAYERS = 2
PROJ_DIM = 16

TEXT_VOCAB = 64
TEXT_MAX_POS = 8
TEXT_SEQ = 8

LN_EPS = 1e-5
NEG_INF = float(jnp.finfo(jnp.float32).min)  # HF uses torch.finfo(dtype).min


# ----------------------------- in-kernel helpers -----------------------------
def _ln_rows(x, g, b):
    """Row-wise layernorm; x (R, D), g/b (1, D)."""
    mean = jnp.mean(x, axis=-1, keepdims=True)
    var = jnp.mean(jnp.square(x - mean), axis=-1, keepdims=True)
    return (x - mean) * jax.lax.rsqrt(var + LN_EPS) * g + b


def _encoder_stack(x, bias, refs, *, num_heads, num_layers):
    """Run the full CLIP encoder stack on one batch element's activations.

    x:    (S, D) f32 value.
    bias: None (vision path) or (S, S) additive attention mask value (text).
    refs: tuple of the 12 stacked per-layer weight refs (leading dim = layer).
    QKV is ONE packed matmul per layer; heads are lane slices; the output projection is
    one (D, D) matmul on the lane-concatenated head outputs.  Everything stays in
    VMEM/vregs; the layer & head loops are static unrolls.
    """
    (ln1_g, ln1_b, qkv_w, qkv_b, o_w, o_b,
     ln2_g, ln2_b, fc1_w, fc1_b, fc2_w, fc2_b) = refs
    D = x.shape[-1]
    Dh = D // num_heads

    for l in range(num_layers):
        # --- self-attention (packed QKV; attention scale pre-folded into Q) ---------
        h = _ln_rows(x, ln1_g[l, :, :], ln1_b[l, :, :])
        qkv = jnp.dot(h, qkv_w[l, :, :],
                      preferred_element_type=jnp.float32) + qkv_b[l, :, :]   # (S, 3D)
        heads = []
        for hd in range(num_heads):                     # per-head, fully in-register
            q = qkv[:, hd * Dh:(hd + 1) * Dh]
            k = qkv[:, D + hd * Dh:D + (hd + 1) * Dh]
            v = qkv[:, 2 * D + hd * Dh:2 * D + (hd + 1) * Dh]
            s = jax.lax.dot_general(q, k, (((1,), (1,)), ((), ())),
                                    preferred_element_type=jnp.float32)
            if bias is not None:
                s = s + bias
            m = jnp.max(s, axis=-1, keepdims=True)
            p = jnp.exp(s - m)
            p = p * pl.reciprocal(jnp.sum(p, axis=-1, keepdims=True), approx=True)
            heads.append(jnp.dot(p, v, preferred_element_type=jnp.float32))
        attn = jnp.concatenate(heads, axis=-1)                               # (S, D)
        x = x + jnp.dot(attn, o_w[l, :, :],
                        preferred_element_type=jnp.float32) + o_b[l, :, :]

        # --- MLP block (quick_gelu) ---------------------------------------------------
        h = _ln_rows(x, ln2_g[l, :, :], ln2_b[l, :, :])
        h = jnp.dot(h, fc1_w[l, :, :], preferred_element_type=jnp.float32) + fc1_b[l, :, :]
        h = h * jax.nn.sigmoid(1.702 * h)  # quick_gelu
        x = x + jnp.dot(h, fc2_w[l, :, :],
                        preferred_element_type=jnp.float32) + fc2_b[l, :, :]
    return x


# ----------------------------- fused tower kernels ---------------------------
def _vision_tower_kernel(patches_ref, embed_w_ref, pos_ref, pre_g_ref, pre_b_ref,
                         ln1_g, ln1_b, qkv_w, qkv_b, o_w, o_b,
                         ln2_g, ln2_b, fc1_w, fc1_b, fc2_w, fc2_b,
                         post_g_ref, post_b_ref, proj_ref, out_ref,
                         *, num_heads, num_layers):
    refs = (ln1_g, ln1_b, qkv_w, qkv_b, o_w, o_b,
            ln2_g, ln2_b, fc1_w, fc1_b, fc2_w, fc2_b)
    # Patch-embedding conv (kernel==stride) and the CLS token folded into ONE matmul:
    # patches row 0 is an indicator row selecting the class embedding in embed_w.
    x = jnp.dot(patches_ref[0, :, :], embed_w_ref[...],
                preferred_element_type=jnp.float32) + pos_ref[...]
    x = _ln_rows(x, pre_g_ref[...], pre_b_ref[...])
    x = _encoder_stack(x, None, refs, num_heads=num_heads, num_layers=num_layers)
    pooled = _ln_rows(x[0:1, :], post_g_ref[...], post_b_ref[...])     # CLS pooling
    feat = jnp.dot(pooled, proj_ref[...], preferred_element_type=jnp.float32)
    out_ref[0, :, :] = feat * jax.lax.rsqrt(jnp.sum(feat * feat, axis=-1, keepdims=True))


def _text_tower_kernel(eos_ref,                    # scalar-prefetch: (B,) int32 in SMEM
                       x0_ref, mask_ref,
                       ln1_g, ln1_b, qkv_w, qkv_b, o_w, o_b,
                       ln2_g, ln2_b, fc1_w, fc1_b, fc2_w, fc2_b,
                       final_g_ref, final_b_ref, proj_ref,
                       img_ref, scale_ref,
                       logits_ref,
                       *, num_heads, num_layers):
    refs = (ln1_g, ln1_b, qkv_w, qkv_b, o_w, o_b,
            ln2_g, ln2_b, fc1_w, fc1_b, fc2_w, fc2_b)
    b = pl.program_id(0)
    S = x0_ref.shape[1]

    # causal + padding additive attention bias built in-kernel (no (B,S,S) HBM tensor)
    rows = jax.lax.broadcasted_iota(jnp.int32, (S, S), 0)
    cols = jax.lax.broadcasted_iota(jnp.int32, (S, S), 1)
    valid = (rows >= cols) & (mask_ref[0, :, :] > 0.5)        # (S,S) & (1,S) -> (S,S)
    bias = jnp.where(valid, 0.0, NEG_INF)

    x = _encoder_stack(x0_ref[0, :, :], bias, refs,
                       num_heads=num_heads, num_layers=num_layers)

    # EOS pooling in-kernel (one-hot row select); LN / projection / L2 on ONE row.
    eos = eos_ref[b]
    onehot = (jax.lax.broadcasted_iota(jnp.int32, (1, S), 1) == eos).astype(jnp.float32)
    pooled = jnp.dot(onehot, x, preferred_element_type=jnp.float32)             # (1, D)
    pooled = _ln_rows(pooled, final_g_ref[...], final_b_ref[...])
    feat = jnp.dot(pooled, proj_ref[...], preferred_element_type=jnp.float32)   # (1, P)
    feat = feat * jax.lax.rsqrt(jnp.sum(feat * feat, axis=-1, keepdims=True))

    # fused similarity: this text's logits_per_text row = scale * t @ I^T  -> (1, B_img)
    logits_ref[0, :, :] = scale_ref[0, 0] * jax.lax.dot_general(
        feat, img_ref[...], (((1,), (1,)), ((), ())),
        preferred_element_type=jnp.float32)


# ----------------------------- wrappers ---------------------------------------
def _wspec(shape):
    """Full-array BlockSpec (same block for every grid step -> fetched once)."""
    zeros = (0,) * len(shape)
    return pl.BlockSpec(tuple(shape), lambda *_args, _z=zeros: _z)


def vision_tower(params, pixel_values):
    vp = params["vision"]
    B, C, H, W = pixel_values.shape
    P = PATCH_SIZE
    nH, nW = H // P, W // P
    nP = nH * nW
    S = nP + 1
    CPP = C * P * P

    # glue: extract + flatten patches in torch Conv2d (c, ph, pw) order, then fold the
    # CLS token into the same matmul via an indicator column.
    patches = pixel_values.reshape(B, C, nH, P, nW, P) \
                          .transpose(0, 2, 4, 1, 3, 5).reshape(B, nP, CPP)
    patches = jnp.pad(patches.astype(jnp.float32), ((0, 0), (0, 0), (0, 1)))   # (B,nP,CPP+1)
    cls_tok = jnp.zeros((B, 1, CPP + 1), jnp.float32).at[:, :, CPP].set(1.0)
    patches = jnp.concatenate([cls_tok, patches], axis=1)                      # (B,S,CPP+1)
    embed_w = jnp.concatenate([vp["patch_w"], vp["class_embedding"]], axis=0)  # (CPP+1,D)

    st = vp["stack"]
    weights = [embed_w, vp["pos_embedding"], vp["pre_ln_g"], vp["pre_ln_b"],
               st["ln1_g"], st["ln1_b"], st["qkv_w"], st["qkv_b"], st["o_w"], st["o_b"],
               st["ln2_g"], st["ln2_b"], st["fc1_w"], st["fc1_b"],
               st["fc2_w"], st["fc2_b"],
               vp["post_ln_g"], vp["post_ln_b"], params["visual_projection"]]

    kernel = functools.partial(_vision_tower_kernel,
                               num_heads=NUM_HEADS, num_layers=NUM_LAYERS)
    out = pl.pallas_call(
        kernel,
        out_shape=jax.ShapeDtypeStruct((B, 1, PROJ_DIM), jnp.float32),
        grid=(B,),
        in_specs=[pl.BlockSpec((1, S, CPP + 1), lambda b: (b, 0, 0))]
                 + [_wspec(w.shape) for w in weights],
        out_specs=pl.BlockSpec((1, 1, PROJ_DIM), lambda b: (b, 0, 0)),
        compiler_params=pltpu.CompilerParams(dimension_semantics=("parallel",)),
    )(patches, *weights)
    return out.reshape(B, PROJ_DIM)          # already L2-normalized


def text_tower_logits(params, input_ids, attention_mask, image_features, logit_scale):
    """Fused text tower + logit_scale similarity.  Returns logits_per_text (B_txt, B_img)."""
    tp = params["text"]
    B, S = input_ids.shape
    B_img = image_features.shape[0]

    # glue: embedding gather + positional add (mask/bias + EOS pooling are in-kernel now)
    tok = jnp.take(tp["token_embedding"], input_ids, axis=0)                 # (B,S,D)
    x0 = (tok + tp["pos_embedding"][None, :S, :]).astype(jnp.float32)
    mask = attention_mask.astype(jnp.float32).reshape(B, 1, S)               # (B,1,S)
    # HF CLIP pooling rule: EOS position == argmax token id (scalar-prefetched to SMEM)
    eos_idx = jnp.argmax(input_ids, axis=-1).astype(jnp.int32)               # (B,)
    scale = jnp.asarray(logit_scale, jnp.float32).reshape(1, 1)

    st = tp["stack"]
    weights = [st["ln1_g"], st["ln1_b"], st["qkv_w"], st["qkv_b"], st["o_w"], st["o_b"],
               st["ln2_g"], st["ln2_b"], st["fc1_w"], st["fc1_b"],
               st["fc2_w"], st["fc2_b"],
               tp["final_ln_g"], tp["final_ln_b"], params["text_projection"]]

    kernel = functools.partial(_text_tower_kernel,
                               num_heads=NUM_HEADS, num_layers=NUM_LAYERS)
    logits_t = pl.pallas_call(
        kernel,
        out_shape=jax.ShapeDtypeStruct((B, 1, B_img), jnp.float32),
        grid_spec=pltpu.PrefetchScalarGridSpec(
            num_scalar_prefetch=1, grid=(B,),
            in_specs=[pl.BlockSpec((1, S, HIDDEN), lambda b, eos: (b, 0, 0)),
                      pl.BlockSpec((1, 1, S), lambda b, eos: (b, 0, 0))]
                     + [_wspec(w.shape) for w in weights]
                     + [_wspec(image_features.shape), _wspec(scale.shape)],
            out_specs=pl.BlockSpec((1, 1, B_img), lambda b, eos: (b, 0, 0))),
        compiler_params=pltpu.CompilerParams(dimension_semantics=("parallel",)),
    )(eos_idx, x0, mask, *weights, image_features, scale)

    return logits_t.reshape(B, B_img)


@jax.jit
def clip_ft_forward(params, pixel_values, texts=None):
    image_features = vision_tower(params, pixel_values)     # fused kernel, L2-normalized
    if texts is None:
        return image_features
    # NOTE: the reference module multiplies by the *raw* logit_scale parameter (no .exp()).
    logits_per_text = text_tower_logits(params, texts["input_ids"],
                                        texts["attention_mask"], image_features,
                                        params["logit_scale"])
    logits_per_image = logits_per_text.T     # scale*i@t^T == (scale*t@i^T)^T: one launch
    return logits_per_image, logits_per_text


# ----------------------------- deterministic params -------------------------
def init_params(key):
    keys = iter(jax.random.split(key, 64))

    def nrm(shape, std=0.02):
        return jax.random.normal(next(keys), shape, jnp.float32) * std

    L, D, I, H = NUM_LAYERS, HIDDEN, INTERMEDIATE, NUM_HEADS
    Dh = D // H
    attn_scale = Dh ** -0.5

    def make_stack():
        # QKV packed lane-dense (L, D, 3D) with the attention scale folded into the Q
        # third; output projection lane-dense (L, D, D).  One-time layout choice.
        qkv_w = nrm((L, D, 3 * D)).at[:, :, :D].multiply(attn_scale)
        qkv_b = jnp.zeros((L, 1, 3 * D), jnp.float32)   # scale fold is a no-op on zeros
        return {
            "ln1_g": jnp.ones((L, 1, D), jnp.float32),
            "ln1_b": jnp.zeros((L, 1, D), jnp.float32),
            "ln2_g": jnp.ones((L, 1, D), jnp.float32),
            "ln2_b": jnp.zeros((L, 1, D), jnp.float32),
            "qkv_w": qkv_w, "qkv_b": qkv_b,
            "o_w": nrm((L, D, D)), "o_b": jnp.zeros((L, 1, D), jnp.float32),
            "fc1_w": nrm((L, D, I)), "fc1_b": jnp.zeros((L, 1, I), jnp.float32),
            "fc2_w": nrm((L, I, D)), "fc2_b": jnp.zeros((L, 1, D), jnp.float32),
        }

    num_patches = (IMAGE_SIZE // PATCH_SIZE) ** 2
    return {
        "vision": {
            "patch_w": nrm((NUM_CHANNELS * PATCH_SIZE * PATCH_SIZE, D)),
            "class_embedding": nrm((1, D)),
            "pos_embedding": nrm((num_patches + 1, D)),
            "pre_ln_g": jnp.ones((1, D), jnp.float32),
            "pre_ln_b": jnp.zeros((1, D), jnp.float32),
            "post_ln_g": jnp.ones((1, D), jnp.float32),
            "post_ln_b": jnp.zeros((1, D), jnp.float32),
            "stack": make_stack(),
        },
        "text": {
            "token_embedding": nrm((TEXT_VOCAB, D)),
            "pos_embedding": nrm((TEXT_MAX_POS, D)),
            "final_ln_g": jnp.ones((1, D), jnp.float32),
            "final_ln_b": jnp.zeros((1, D), jnp.float32),
            "stack": make_stack(),
        },
        "visual_projection": nrm((D, PROJ_DIM)),
        "text_projection": nrm((D, PROJ_DIM)),
        "logit_scale": jnp.asarray(math.log(1.0 / 0.07), jnp.float32),
    }


# ----------------------------- main ------------------------------------------
if __name__ == "__main__":
    key = jax.random.PRNGKey(0)
    kp, kx, kt = jax.random.split(key, 3)
    params = init_params(kp)

    # image inputs: NCHW, like the PyTorch module
    pixel_values = jax.random.normal(kx, (2, NUM_CHANNELS, IMAGE_SIZE, IMAGE_SIZE),
                                     jnp.float32)

    # synthetic tokenized text: EOS (= highest id) placed at the last valid position
    ids = jax.random.randint(kt, (2, TEXT_SEQ), 1, TEXT_VOCAB - 1).astype(jnp.int32)
    lengths = jnp.array([6, 8], jnp.int32)
    pos = jnp.arange(TEXT_SEQ)[None, :]
    attention_mask = (pos < lengths[:, None]).astype(jnp.int32)
    ids = jnp.where(pos == (lengths[:, None] - 1), TEXT_VOCAB - 1, ids)
    texts = {"input_ids": ids, "attention_mask": attention_mask}

    # texts=None path -> normalized image features (B, PROJ_DIM)
    image_features = clip_ft_forward(params, pixel_values)
    image_features = jax.block_until_ready(image_features)
    assert image_features.shape == (2, PROJ_DIM)
    assert bool(jnp.all(jnp.isfinite(image_features)))

    # full path -> (logits_per_image, logits_per_text)
    logits_per_image, logits_per_text = clip_ft_forward(params, pixel_values, texts)
    logits_per_image = jax.block_until_ready(logits_per_image)
    logits_per_text = jax.block_until_ready(logits_per_text)
    assert logits_per_image.shape == (2, 2) and logits_per_text.shape == (2, 2)
    assert bool(jnp.all(jnp.isfinite(logits_per_image)))
    assert bool(jnp.allclose(logits_per_image, logits_per_text.T))

    print("KERNEL_OK")
</pallas_src>

<mosaic_0001>
module attributes {stable_mosaic.version = 11 : i64} {
  func.func @_vision_tower_kernel(%arg0: i32, %arg1: memref<1x17x49xf32, #tpu.memory_space<vmem>>, %arg2: memref<49x32xf32, #tpu.memory_space<vmem>>, %arg3: memref<17x32xf32, #tpu.memory_space<vmem>>, %arg4: memref<1x32xf32, #tpu.memory_space<vmem>>, %arg5: memref<1x32xf32, #tpu.memory_space<vmem>>, %arg6: memref<2x1x32xf32, #tpu.memory_space<vmem>>, %arg7: memref<2x1x32xf32, #tpu.memory_space<vmem>>, %arg8: memref<2x32x96xf32, #tpu.memory_space<vmem>>, %arg9: memref<2x1x96xf32, #tpu.memory_space<vmem>>, %arg10: memref<2x32x32xf32, #tpu.memory_space<vmem>>, %arg11: memref<2x1x32xf32, #tpu.memory_space<vmem>>, %arg12: memref<2x1x32xf32, #tpu.memory_space<vmem>>, %arg13: memref<2x1x32xf32, #tpu.memory_space<vmem>>, %arg14: memref<2x32x64xf32, #tpu.memory_space<vmem>>, %arg15: memref<2x1x64xf32, #tpu.memory_space<vmem>>, %arg16: memref<2x64x32xf32, #tpu.memory_space<vmem>>, %arg17: memref<2x1x32xf32, #tpu.memory_space<vmem>>, %arg18: memref<1x32xf32, #tpu.memory_space<vmem>>, %arg19: memref<1x32xf32, #tpu.memory_space<vmem>>, %arg20: memref<32x16xf32, #tpu.memory_space<vmem>>, %arg21: memref<1x1x16xf32, #tpu.memory_space<vmem>>) attributes {dimension_semantics = [#tpu.dimension_semantics<parallel>], iteration_bounds = array<i64: 2>, scalar_prefetch = 0 : i64, scratch_operands = 0 : i64, tpu.core_type = #tpu.core_type<tc>, window_params = [{transform_indices = @transform_0, window_bounds = array<i64: 1, 17, 49>}, {pipeline_mode = #tpu.pipeline_mode<synchronous>, transform_indices = @transform_1, window_bounds = array<i64: 49, 32>}, {pipeline_mode = #tpu.pipeline_mode<synchronous>, transform_indices = @transform_2, window_bounds = array<i64: 17, 32>}, {pipeline_mode = #tpu.pipeline_mode<synchronous>, transform_indices = @transform_3, window_bounds = array<i64: 1, 32>}, {pipeline_mode = #tpu.pipeline_mode<synchronous>, transform_indices = @transform_4, window_bounds = array<i64: 1, 32>}, {pipeline_mode = #tpu.pipeline_mode<synchronous>, transform_indices = @transform_5, window_bounds = array<i64: 2, 1, 32>}, {pipeline_mode = #tpu.pipeline_mode<synchronous>, transform_indices = @transform_6, window_bounds = array<i64: 2, 1, 32>}, {pipeline_mode = #tpu.pipeline_mode<synchronous>, transform_indices = @transform_7, window_bounds = array<i64: 2, 32, 96>}, {pipeline_mode = #tpu.pipeline_mode<synchronous>, transform_indices = @transform_8, window_bounds = array<i64: 2, 1, 96>}, {pipeline_mode = #tpu.pipeline_mode<synchronous>, transform_indices = @transform_9, window_bounds = array<i64: 2, 32, 32>}, {pipeline_mode = #tpu.pipeline_mode<synchronous>, transform_indices = @transform_10, window_bounds = array<i64: 2, 1, 32>}, {pipeline_mode = #tpu.pipeline_mode<synchronous>, transform_indices = @transform_11, window_bounds = array<i64: 2, 1, 32>}, {pipeline_mode = #tpu.pipeline_mode<synchronous>, transform_indices = @transform_12, window_bounds = array<i64: 2, 1, 32>}, {pipeline_mode = #tpu.pipeline_mode<synchronous>, transform_indices = @transform_13, window_bounds = array<i64: 2, 32, 64>}, {pipeline_mode = #tpu.pipeline_mode<synchronous>, transform_indices = @transform_14, window_bounds = array<i64: 2, 1, 64>}, {pipeline_mode = #tpu.pipeline_mode<synchronous>, transform_indices = @transform_15, window_bounds = array<i64: 2, 64, 32>}, {pipeline_mode = #tpu.pipeline_mode<synchronous>, transform_indices = @transform_16, window_bounds = array<i64: 2, 1, 32>}, {pipeline_mode = #tpu.pipeline_mode<synchronous>, transform_indices = @transform_17, window_bounds = array<i64: 1, 32>}, {pipeline_mode = #tpu.pipeline_mode<synchronous>, transform_indices = @transform_18, window_bounds = array<i64: 1, 32>}, {pipeline_mode = #tpu.pipeline_mode<synchronous>, transform_indices = @transform_19, window_bounds = array<i64: 32, 16>}, {transform_indices = @transform_20, window_bounds = array<i64: 1, 1, 16>}]} {
    %c0 = arith.constant 0 : index
    %c0_0 = arith.constant 0 : index
    %c0_1 = arith.constant 0 : index
    %0 = vector.load %arg1[%c0, %c0_0, %c0_1] : memref<1x17x49xf32, #tpu.memory_space<vmem>>, vector<1x17x49xf32>
    %1 = vector.shape_cast %0 : vector<1x17x49xf32> to vector<17x49xf32>
    %c0_2 = arith.constant 0 : index
    %c0_3 = arith.constant 0 : index
    %2 = vector.load %arg2[%c0_2, %c0_3] : memref<49x32xf32, #tpu.memory_space<vmem>>, vector<49x32xf32>
    %cst = arith.constant dense<0.000000e+00> : vector<17x32xf32>
    %3 = tpu.matmul %1, %2, %cst {dimension_numbers = #tpu.dot_dimension_numbers<[1], [0], [0], [1], [0, 0, 1, 1], [], []>} : vector<17x49xf32>, vector<49x32xf32>, vector<17x32xf32> -> vector<17x32xf32>
    %c0_4 = arith.constant 0 : index
    %c0_5 = arith.constant 0 : index
    %4 = vector.load %arg3[%c0_4, %c0_5] : memref<17x32xf32, #tpu.memory_space<vmem>>, vector<17x32xf32>
    %5 = arith.addf %3, %4 : vector<17x32xf32>
    %c0_6 = arith.constant 0 : index
    %c0_7 = arith.constant 0 : index
    %6 = vector.load %arg4[%c0_6, %c0_7] : memref<1x32xf32, #tpu.memory_space<vmem>>, vector<1x32xf32>
    %c0_8 = arith.constant 0 : index
    %c0_9 = arith.constant 0 : index
    %7 = vector.load %arg5[%c0_8, %c0_9] : memref<1x32xf32, #tpu.memory_space<vmem>>, vector<1x32xf32>
    %cst_10 = arith.constant dense<0.000000e+00> : vector<17xf32>
    %8 = vector.multi_reduction <add>, %5, %cst_10 [1] : vector<17x32xf32> to vector<17xf32>
    %9 = vector.shape_cast %8 : vector<17xf32> to vector<17x1xf32>
    %cst_11 = arith.constant 3.200000e+01 : f32
    %10 = vector.broadcast %cst_11 : f32 to vector<17x1xf32>
    %11 = arith.divf %9, %10 : vector<17x1xf32>
    %12 = vector.broadcast %11 : vector<17x1xf32> to vector<17x32xf32>
    %13 = arith.subf %5, %12 : vector<17x32xf32>
    %14 = arith.mulf %13, %13 : vector<17x32xf32>
    %cst_12 = arith.constant dense<0.000000e+00> : vector<17xf32>
    %15 = vector.multi_reduction <add>, %14, %cst_12 [1] : vector<17x32xf32> to vector<17xf32>
    %16 = vector.shape_cast %15 : vector<17xf32> to vector<17x1xf32>
    %cst_13 = arith.constant 3.200000e+01 : f32
    %17 = vector.broadcast %cst_13 : f32 to vector<17x1xf32>
    %18 = arith.divf %16, %17 : vector<17x1xf32>
    %19 = vector.broadcast %11 : vector<17x1xf32> to vector<17x32xf32>
    %20 = arith.subf %5, %19 : vector<17x32xf32>
    %cst_14 = arith.constant 9.99999974E-6 : f32
    %21 = vector.broadcast %cst_14 : f32 to vector<17x1xf32>
    %22 = arith.addf %18, %21 : vector<17x1xf32>
    %23 = math.rsqrt %22 : vector<17x1xf32>
    %24 = vector.broadcast %23 : vector<17x1xf32> to vector<17x32xf32>
    %25 = arith.mulf %20, %24 : vector<17x32xf32>
    %26 = vector.broadcast %6 : vector<1x32xf32> to vector<17x32xf32>
    %27 = arith.mulf %25, %26 : vector<17x32xf32>
    %28 = vector.broadcast %7 : vector<1x32xf32> to vector<17x32xf32>
    %29 = arith.addf %27, %28 : vector<17x32xf32>
    %c0_15 = arith.constant 0 : index
    %c0_16 = arith.constant 0 : index
    %c0_17 = arith.constant 0 : index
    %30 = vector.load %arg6[%c0_15, %c0_16, %c0_17] : memref<2x1x32xf32, #tpu.memory_space<vmem>>, vector<1x1x32xf32>
    %31 = vector.shape_cast %30 : vector<1x1x32xf32> to vector<1x32xf32>
    %c0_18 = arith.constant 0 : index
    %c0_19 = arith.constant 0 : index
    %c0_20 = arith.constant 0 : index
    %32 = vector.load %arg7[%c0_18, %c0_19, %c0_20] : memref<2x1x32xf32, #tpu.memory_space<vmem>>, vector<1x1x32xf32>
    %33 = vector.shape_cast %32 : vector<1x1x32xf32> to vector<1x32xf32>
    %cst_21 = arith.constant dense<0.000000e+00> : vector<17xf32>
    %34 = vector.multi_reduction <add>, %29, %cst_21 [1] : vector<17x32xf32> to vector<17xf32>
    %35 = vector.shape_cast %34 : vector<17xf32> to vector<17x1xf32>
    %cst_22 = arith.constant 3.200000e+01 : f32
    %36 = vector.broadcast %cst_22 : f32 to vector<17x1xf32>
    %37 = arith.divf %35, %36 : vector<17x1xf32>
    %38 = vector.broadcast %37 : vector<17x1xf32> to vector<17x32xf32>
    %39 = arith.subf %29, %38 : vector<17x32xf32>
    %40 = arith.mulf %39, %39 : vector<17x32xf32>
    %cst_23 = arith.constant dense<0.000000e+00> : vector<17xf32>
    %41 = vector.multi_reduction <add>, %40, %cst_23 [1] : vector<17x32xf32> to vector<17xf32>
    %42 = vector.shape_cast %41 : vector<17xf32> to vector<17x1xf32>
    %cst_24 = arith.constant 3.200000e+01 : f32
    %43 = vector.broadcast %cst_24 : f32 to vector<17x1xf32>
    %44 = arith.divf %42, %43 : vector<17x1xf32>
    %45 = vector.broadcast %37 : vector<17x1xf32> to vector<17x32xf32>
    %46 = arith.subf %29, %45 : vector<17x32xf32>
    %cst_25 = arith.constant 9.99999974E-6 : f32
    %47 = vector.broadcast %cst_25 : f32 to vector<17x1xf32>
    %48 = arith.addf %44, %47 : vector<17x1xf32>
    %49 = math.rsqrt %48 : vector<17x1xf32>
    %50 = vector.broadcast %49 : vector<17x1xf32> to vector<17x32xf32>
    %51 = arith.mulf %46, %50 : vector<17x32xf32>
    %52 = vector.broadcast %31 : vector<1x32xf32> to vector<17x32xf32>
    %53 = arith.mulf %51, %52 : vector<17x32xf32>
    %54 = vector.broadcast %33 : vector<1x32xf32> to vector<17x32xf32>
    %55 = arith.addf %53, %54 : vector<17x32xf32>
    %c0_26 = arith.constant 0 : index
    %c0_27 = arith.constant 0 : index
    %c0_28 = arith.constant 0 : index
    %56 = vector.load %arg8[%c0_26, %c0_27, %c0_28] : memref<2x32x96xf32, #tpu.memory_space<vmem>>, vector<1x32x96xf32>
    %57 = vector.shape_cast %56 : vector<1x32x96xf32> to vector<32x96xf32>
    %cst_29 = arith.constant dense<0.000000e+00> : vector<17x96xf32>
    %58 = tpu.matmul %55, %57, %cst_29 {dimension_numbers = #tpu.dot_dimension_numbers<[1], [0], [0], [1], [0, 0, 1, 1], [], []>} : vector<17x32xf32>, vector<32x96xf32>, vector<17x96xf32> -> vector<17x96xf32>
    %c0_30 = arith.constant 0 : index
    %c0_31 = arith.constant 0 : index
    %c0_32 = arith.constant 0 : index
    %59 = vector.load %arg9[%c0_30, %c0_31, %c0_32] : memref<2x1x96xf32, #tpu.memory_space<vmem>>, vector<1x1x96xf32>
    %60 = vector.shape_cast %59 : vector<1x1x96xf32> to vector<1x96xf32>
    %61 = vector.broadcast %60 : vector<1x96xf32> to vector<17x96xf32>
    %62 = arith.addf %58, %61 : vector<17x96xf32>
    %63 = vector.extract_strided_slice %62 {offsets = [0, 0], sizes = [17, 8], strides = [1, 1]} : vector<17x96xf32> to vector<17x8xf32>
    %64 = vector.extract_strided_slice %62 {offsets = [0, 32], sizes = [17, 8], strides = [1, 1]} : vector<17x96xf32> to vector<17x8xf32>
    %65 = vector.extract_strided_slice %62 {offsets = [0, 64], sizes = [17, 8], strides = [1, 1]} : vector<17x96xf32> to vector<17x8xf32>
    %cst_33 = arith.constant dense<0.000000e+00> : vector<17x17xf32>
    %66 = tpu.matmul %63, %64, %cst_33 {dimension_numbers = #tpu.dot_dimension_numbers<[1], [1], [0], [0], [0, 0, 1, 0], [], []>} : vector<17x8xf32>, vector<17x8xf32>, vector<17x17xf32> -> vector<17x17xf32>
    %cst_34 = arith.constant dense<0xFF800000> : vector<17xf32>
    %67 = vector.multi_reduction <maximumf>, %66, %cst_34 [1] : vector<17x17xf32> to vector<17xf32>
    %68 = vector.shape_cast %67 : vector<17xf32> to vector<17x1xf32>
    %69 = vector.broadcast %68 : vector<17x1xf32> to vector<17x17xf32>
    %70 = arith.subf %66, %69 : vector<17x17xf32>
    %71 = math.exp %70 : vector<17x17xf32>
    %cst_35 = arith.constant dense<0.000000e+00> : vector<17xf32>
    %72 = vector.multi_reduction <add>, %71, %cst_35 [1] : vector<17x17xf32> to vector<17xf32>
    %73 = vector.shape_cast %72 : vector<17xf32> to vector<17x1xf32>
    %74 = tpu.reciprocal %73 {approx = true} : vector<17x1xf32> -> vector<17x1xf32>
    %75 = vector.broadcast %74 : vector<17x1xf32> to vector<17x17xf32>
    %76 = arith.mulf %71, %75 : vector<17x17xf32>
    %cst_36 = arith.constant dense<0.000000e+00> : vector<17x8xf32>
    %77 = tpu.matmul %76, %65, %cst_36 {dimension_numbers = #tpu.dot_dimension_numbers<[1], [0], [0], [1], [0, 0, 1, 1], [], []>} : vector<17x17xf32>, vector<17x8xf32>, vector<17x8xf32> -> vector<17x8xf32>
    %78 = vector.extract_strided_slice %62 {offsets = [0, 8], sizes = [17, 8], strides = [1, 1]} : vector<17x96xf32> to vector<17x8xf32>
    %79 = vector.extract_strided_slice %62 {offsets = [0, 40], sizes = [17, 8], strides = [1, 1]} : vector<17x96xf32> to vector<17x8xf32>
    %80 = vector.extract_strided_slice %62 {offsets = [0, 72], sizes = [17, 8], strides = [1, 1]} : vector<17x96xf32> to vector<17x8xf32>
    %cst_37 = arith.constant dense<0.000000e+00> : vector<17x17xf32>
    %81 = tpu.matmul %78, %79, %cst_37 {dimension_numbers = #tpu.dot_dimension_numbers<[1], [1], [0], [0], [0, 0, 1, 0], [], []>} : vector<17x8xf32>, vector<17x8xf32>, vector<17x17xf32> -> vector<17x17xf32>
    %cst_38 = arith.constant dense<0xFF800000> : vector<17xf32>
    %82 = vector.multi_reduction <maximumf>, %81, %cst_38 [1] : vector<17x17xf32> to vector<17xf32>
    %83 = vector.shape_cast %82 : vector<17xf32> to vector<17x1xf32>
    %84 = vector.broadcast %83 : vector<17x1xf32> to vector<17x17xf32>
    %85 = arith.subf %81, %84 : vector<17x17xf32>
    %86 = math.exp %85 : vector<17x17xf32>
    %cst_39 = arith.constant dense<0.000000e+00> : vector<17xf32>
    %87 = vector.multi_reduction <add>, %86, %cst_39 [1] : vector<17x17xf32> to vector<17xf32>
    %88 = vector.shape_cast %87 : vector<17xf32> to vector<17x1xf32>
    %89 = tpu.reciprocal %88 {approx = true} : vector<17x1xf32> -> vector<17x1xf32>
    %90 = vector.broadcast %89 : vector<17x1xf32> to vector<17x17xf32>
    %91 = arith.mulf %86, %90 : vector<17x17xf32>
    %cst_40 = arith.constant dense<0.000000e+00> : vector<17x8xf32>
    %92 = tpu.matmul %91, %80, %cst_40 {dimension_numbers = #tpu.dot_dimension_numbers<[1], [0], [0], [1], [0, 0, 1, 1], [], []>} : vector<17x17xf32>, vector<17x8xf32>, vector<17x8xf32> -> vector<17x8xf32>
    %93 = vector.extract_strided_slice %62 {offsets = [0, 16], sizes = [17, 8], strides = [1, 1]} : vector<17x96xf32> to vector<17x8xf32>
    %94 = vector.extract_strided_slice %62 {offsets = [0, 48], sizes = [17, 8], strides = [1, 1]} : vector<17x96xf32> to vector<17x8xf32>
    %95 = vector.extract_strided_slice %62 {offsets = [0, 80], sizes = [17, 8], strides = [1, 1]} : vector<17x96xf32> to vector<17x8xf32>
    %cst_41 = arith.constant dense<0.000000e+00> : vector<17x17xf32>
    %96 = tpu.matmul %93, %94, %cst_41 {dimension_numbers = #tpu.dot_dimension_numbers<[1], [1], [0], [0], [0, 0, 1, 0], [], []>} : vector<17x8xf32>, vector<17x8xf32>, vector<17x17xf32> -> vector<17x17xf32>
    %cst_42 = arith.constant dense<0xFF800000> : vector<17xf32>
    %97 = vector.multi_reduction <maximumf>, %96, %cst_42 [1] : vector<17x17xf32> to vector<17xf32>
    %98 = vector.shape_cast %97 : vector<17xf32> to vector<17x1xf32>
    %99 = vector.broadcast %98 : vector<17x1xf32> to vector<17x17xf32>
    %100 = arith.subf %96, %99 : vector<17x17xf32>
    %101 = math.exp %100 : vector<17x17xf32>
    %cst_43 = arith.constant dense<0.000000e+00> : vector<17xf32>
    %102 = vector.multi_reduction <add>, %101, %cst_43 [1] : vector<17x17xf32> to vector<17xf32>
    %103 = vector.shape_cast %102 : vector<17xf32> to vector<17x1xf32>
    %104 = tpu.reciprocal %103 {approx = true} : vector<17x1xf32> -> vector<17x1xf32>
    %105 = vector.broadcast %104 : vector<17x1xf32> to vector<17x17xf32>
    %106 = arith.mulf %101, %105 : vector<17x17xf32>
    %cst_44 = arith.constant dense<0.000000e+00> : vector<17x8xf32>
    %107 = tpu.matmul %106, %95, %cst_44 {dimension_numbers = #tpu.dot_dimension_numbers<[1], [0], [0], [1], [0, 0, 1, 1], [], []>} : vector<17x17xf32>, vector<17x8xf32>, vector<17x8xf32> -> vector<17x8xf32>
    %108 = vector.extract_strided_slice %62 {offsets = [0, 24], sizes = [17, 8], strides = [1, 1]} : vector<17x96xf32> to vector<17x8xf32>
    %109 = vector.extract_strided_slice %62 {offsets = [0, 56], sizes = [17, 8], strides = [1, 1]} : vector<17x96xf32> to vector<17x8xf32>
    %110 = vector.extract_strided_slice %62 {offsets = [0, 88], sizes = [17, 8], strides = [1, 1]} : vector<17x96xf32> to vector<17x8xf32>
    %cst_45 = arith.constant dense<0.000000e+00> : vector<17x17xf32>
    %111 = tpu.matmul %108, %109, %cst_45 {dimension_numbers = #tpu.dot_dimension_numbers<[1], [1], [0], [0], [0, 0, 1, 0], [], []>} : vector<17x8xf32>, vector<17x8xf32>, vector<17x17xf32> -> vector<17x17xf32>
    %cst_46 = arith.constant dense<0xFF800000> : vector<17xf32>
    %112 = vector.multi_reduction <maximumf>, %111, %cst_46 [1] : vector<17x17xf32> to vector<17xf32>
    %113 = vector.shape_cast %112 : vector<17xf32> to vector<17x1xf32>
    %114 = vector.broadcast %113 : vector<17x1xf32> to vector<17x17xf32>
    %115 = arith.subf %111, %114 : vector<17x17xf32>
    %116 = math.exp %115 : vector<17x17xf32>
    %cst_47 = arith.constant dense<0.000000e+00> : vector<17xf32>
    %117 = vector.multi_reduction <add>, %116, %cst_47 [1] : vector<17x17xf32> to vector<17xf32>
    %118 = vector.shape_cast %117 : vector<17xf32> to vector<17x1xf32>
    %119 = tpu.reciprocal %118 {approx = true} : vector<17x1xf32> -> vector<17x1xf32>
    %120 = vector.broadcast %119 : vector<17x1xf32> to vector<17x17xf32>
    %121 = arith.mulf %116, %120 : vector<17x17xf32>
    %cst_48 = arith.constant dense<0.000000e+00> : vector<17x8xf32>
    %122 = tpu.matmul %121, %110, %cst_48 {dimension_numbers = #tpu.dot_dimension_numbers<[1], [0], [0], [1], [0, 0, 1, 1], [], []>} : vector<17x17xf32>, vector<17x8xf32>, vector<17x8xf32> -> vector<17x8xf32>
    %123 = tpu.concatenate %77, %92, %107, %122 in 1 : vector<17x8xf32>, vector<17x8xf32>, vector<17x8xf32>, vector<17x8xf32> -> vector<17x32xf32>
    %c0_49 = arith.constant 0 : index
    %c0_50 = arith.constant 0 : index
    %c0_51 = arith.constant 0 : index
    %124 = vector.load %arg10[%c0_49, %c0_50, %c0_51] : memref<2x32x32xf32, #tpu.memory_space<vmem>>, vector<1x32x32xf32>
    %125 = vector.shape_cast %124 : vector<1x32x32xf32> to vector<32x32xf32>
    %cst_52 = arith.constant dense<0.000000e+00> : vector<17x32xf32>
    %126 = tpu.matmul %123, %125, %cst_52 {dimension_numbers = #tpu.dot_dimension_numbers<[1], [0], [0], [1], [0, 0, 1, 1], [], []>} : vector<17x32xf32>, vector<32x32xf32>, vector<17x32xf32> -> vector<17x32xf32>
    %127 = arith.addf %29, %126 : vector<17x32xf32>
    %c0_53 = arith.constant 0 : index
    %c0_54 = arith.constant 0 : index
    %c0_55 = arith.constant 0 : index
    %128 = vector.load %arg11[%c0_53, %c0_54, %c0_55] : memref<2x1x32xf32, #tpu.memory_space<vmem>>, vector<1x1x32xf32>
    %129 = vector.shape_cast %128 : vector<1x1x32xf32> to vector<1x32xf32>
    %130 = vector.broadcast %129 : vector<1x32xf32> to vector<17x32xf32>
    %131 = arith.addf %127, %130 : vector<17x32xf32>
    %c0_56 = arith.constant 0 : index
    %c0_57 = arith.constant 0 : index
    %c0_58 = arith.constant 0 : index
    %132 = vector.load %arg12[%c0_56, %c0_57, %c0_58] : memref<2x1x32xf32, #tpu.memory_space<vmem>>, vector<1x1x32xf32>
    %133 = vector.shape_cast %132 : vector<1x1x32xf32> to vector<1x32xf32>
    %c0_59 = arith.constant 0 : index
    %c0_60 = arith.constant 0 : index
    %c0_61 = arith.constant 0 : index
    %134 = vector.load %arg13[%c0_59, %c0_60, %c0_61] : memref<2x1x32xf32, #tpu.memory_space<vmem>>, vector<1x1x32xf32>
    %135 = vector.shape_cast %134 : vector<1x1x32xf32> to vector<1x32xf32>
    %cst_62 = arith.constant dense<0.000000e+00> : vector<17xf32>
    %136 = vector.multi_reduction <add>, %131, %cst_62 [1] : vector<17x32xf32> to vector<17xf32>
    %137 = vector.shape_cast %136 : vector<17xf32> to vector<17x1xf32>
    %cst_63 = arith.constant 3.200000e+01 : f32
    %138 = vector.broadcast %cst_63 : f32 to vector<17x1xf32>
    %139 = arith.divf %137, %138 : vector<17x1xf32>
    %140 = vector.broadcast %139 : vector<17x1xf32> to vector<17x32xf32>
    %141 = arith.subf %131, %140 : vector<17x32xf32>
    %142 = arith.mulf %141, %141 : vector<17x32xf32>
    %cst_64 = arith.constant dense<0.000000e+00> : vector<17xf32>
    %143 = vector.multi_reduction <add>, %142, %cst_64 [1] : vector<17x32xf32> to vector<17xf32>
    %144 = vector.shape_cast %143 : vector<17xf32> to vector<17x1xf32>
    %cst_65 = arith.constant 3.200000e+01 : f32
    %145 = vector.broadcast %cst_65 : f32 to vector<17x1xf32>
    %146 = arith.divf %144, %145 : vector<17x1xf32>
    %147 = vector.broadcast %139 : vector<17x1xf32> to vector<17x32xf32>
    %148 = arith.subf %131, %147 : vector<17x32xf32>
    %cst_66 = arith.constant 9.99999974E-6 : f32
    %149 = vector.broadcast %cst_66 : f32 to vector<17x1xf32>
    %150 = arith.addf %146, %149 : vector<17x1xf32>
    %151 = math.rsqrt %150 : vector<17x1xf32>
    %152 = vector.broadcast %151 : vector<17x1xf32> to vector<17x32xf32>
    %153 = arith.mulf %148, %152 : vector<17x32xf32>
    %154 = vector.broadcast %133 : vector<1x32xf32> to vector<17x32xf32>
    %155 = arith.mulf %153, %154 : vector<17x32xf32>
    %156 = vector.broadcast %135 : vector<1x32xf32> to vector<17x32xf32>
    %157 = arith.addf %155, %156 : vector<17x32xf32>
    %c0_67 = arith.constant 0 : index
    %c0_68 = arith.constant 0 : index
    %c0_69 = arith.constant 0 : index
    %158 = vector.load %arg14[%c0_67, %c0_68, %c0_69] : memref<2x32x64xf32, #tpu.memory_space<vmem>>, vector<1x32x64xf32>
    %159 = vector.shape_cast %158 : vector<1x32x64xf32> to vector<32x64xf32>
    %cst_70 = arith.constant dense<0.000000e+00> : vector<17x64xf32>
    %160 = tpu.matmul %157, %159, %cst_70 {dimension_numbers = #tpu.dot_dimension_numbers<[1], [0], [0], [1], [0, 0, 1, 1], [], []>} : vector<17x32xf32>, vector<32x64xf32>, vector<17x64xf32> -> vector<17x64xf32>
    %c0_71 = arith.constant 0 : index
    %c0_72 = arith.constant 0 : index
    %c0_73 = arith.constant 0 : index
    %161 = vector.load %arg15[%c0_71, %c0_72, %c0_73] : memref<2x1x64xf32, #tpu.memory_space<vmem>>, vector<1x1x64xf32>
    %162 = vector.shape_cast %161 : vector<1x1x64xf32> to vector<1x64xf32>
    %163 = vector.broadcast %162 : vector<1x64xf32> to vector<17x64xf32>
    %164 = arith.addf %160, %163 : vector<17x64xf32>
    %cst_74 = arith.constant 1.702000e+00 : f32
    %165 = vector.broadcast %cst_74 : f32 to vector<17x64xf32>
    %166 = arith.mulf %165, %164 : vector<17x64xf32>
    %167 = arith.negf %166 : vector<17x64xf32>
    %168 = math.exp %167 : vector<17x64xf32>
    %cst_75 = arith.constant 1.000000e+00 : f32
    %169 = vector.broadcast %cst_75 : f32 to vector<17x64xf32>
    %170 = arith.addf %169, %168 : vector<17x64xf32>
    %171 = arith.divf %169, %170 : vector<17x64xf32>
    %172 = arith.mulf %164, %171 : vector<17x64xf32>
    %c0_76 = arith.constant 0 : index
    %c0_77 = arith.constant 0 : index
    %c0_78 = arith.constant 0 : index
    %173 = vector.load %arg16[%c0_76, %c0_77, %c0_78] : memref<2x64x32xf32, #tpu.memory_space<vmem>>, vector<1x64x32xf32>
    %174 = vector.shape_cast %173 : vector<1x64x32xf32> to vector<64x32xf32>
    %cst_79 = arith.constant dense<0.000000e+00> : vector<17x32xf32>
    %175 = tpu.matmul %172, %174, %cst_79 {dimension_numbers = #tpu.dot_dimension_numbers<[1], [0], [0], [1], [0, 0, 1, 1], [], []>} : vector<17x64xf32>, vector<64x32xf32>, vector<17x32xf32> -> vector<17x32xf32>
    %176 = arith.addf %131, %175 : vector<17x32xf32>
    %c0_80 = arith.constant 0 : index
    %c0_81 = arith.constant 0 : index
    %c0_82 = arith.constant 0 : index
    %177 = vector.load %arg17[%c0_80, %c0_81, %c0_82] : memref<2x1x32xf32, #tpu.memory_space<vmem>>, vector<1x1x32xf32>
    %178 = vector.shape_cast %177 : vector<1x1x32xf32> to vector<1x32xf32>
    %179 = vector.broadcast %178 : vector<1x32xf32> to vector<17x32xf32>
    %180 = arith.addf %176, %179 : vector<17x32xf32>
    %c1 = arith.constant 1 : index
    %c0_83 = arith.constant 0 : index
    %c0_84 = arith.constant 0 : index
    %181 = vector.load %arg6[%c1, %c0_83, %c0_84] : memref<2x1x32xf32, #tpu.memory_space<vmem>>, vector<1x1x32xf32>
    %182 = vector.shape_cast %181 : vector<1x1x32xf32> to vector<1x32xf32>
    %c1_85 = arith.constant 1 : index
    %c0_86 = arith.constant 0 : index
    %c0_87 = arith.constant 0 : index
    %183 = vector.load %arg7[%c1_85, %c0_86, %c0_87] : memref<2x1x32xf32, #tpu.memory_space<vmem>>, vector<1x1x32xf32>
    %184 = vector.shape_cast %183 : vector<1x1x32xf32> to vector<1x32xf32>
    %cst_88 = arith.constant dense<0.000000e+00> : vector<17xf32>
    %185 = vector.multi_reduction <add>, %180, %cst_88 [1] : vector<17x32xf32> to vector<17xf32>
    %186 = vector.shape_cast %185 : vector<17xf32> to vector<17x1xf32>
    %cst_89 = arith.constant 3.200000e+01 : f32
    %187 = vector.broadcast %cst_89 : f32 to vector<17x1xf32>
    %188 = arith.divf %186, %187 : vector<17x1xf32>
    %189 = vector.broadcast %188 : vector<17x1xf32> to vector<17x32xf32>
    %190 = arith.subf %180, %189 : vector<17x32xf32>
    %191 = arith.mulf %190, %190 : vector<17x32xf32>
    %cst_90 = arith.constant dense<0.000000e+00> : vector<17xf32>
    %192 = vector.multi_reduction <add>, %191, %cst_90 [1] : vector<17x32xf32> to vector<17xf32>
    %193 = vector.shape_cast %192 : vector<17xf32> to vector<17x1xf32>
    %cst_91 = arith.constant 3.200000e+01 : f32
    %194 = vector.broadcast %cst_91 : f32 to vector<17x1xf32>
    %195 = arith.divf %193, %194 : vector<17x1xf32>
    %196 = vector.broadcast %188 : vector<17x1xf32> to vector<17x32xf32>
    %197 = arith.subf %180, %196 : vector<17x32xf32>
    %cst_92 = arith.constant 9.99999974E-6 : f32
    %198 = vector.broadcast %cst_92 : f32 to vector<17x1xf32>
    %199 = arith.addf %195, %198 : vector<17x1xf32>
    %200 = math.rsqrt %199 : vector<17x1xf32>
    %201 = vector.broadcast %200 : vector<17x1xf32> to vector<17x32xf32>
    %202 = arith.mulf %197, %201 : vector<17x32xf32>
    %203 = vector.broadcast %182 : vector<1x32xf32> to vector<17x32xf32>
    %204 = arith.mulf %202, %203 : vector<17x32xf32>
    %205 = vector.broadcast %184 : vector<1x32xf32> to vector<17x32xf32>
    %206 = arith.addf %204, %205 : vector<17x32xf32>
    %c1_93 = arith.constant 1 : index
    %c0_94 = arith.constant 0 : index
    %c0_95 = arith.constant 0 : index
    %207 = vector.load %arg8[%c1_93, %c0_94, %c0_95] : memref<2x32x96xf32, #tpu.memory_space<vmem>>, vector<1x32x96xf32>
    %208 = vector.shape_cast %207 : vector<1x32x96xf32> to vector<32x96xf32>
    %cst_96 = arith.constant dense<0.000000e+00> : vector<17x96xf32>
    %209 = tpu.matmul %206, %208, %cst_96 {dimension_numbers = #tpu.dot_dimension_numbers<[1], [0], [0], [1], [0, 0, 1, 1], [], []>} : vector<17x32xf32>, vector<32x96xf32>, vector<17x96xf32> -> vector<17x96xf32>
    %c1_97 = arith.constant 1 : index
    %c0_98 = arith.constant 0 : index
    %c0_99 = arith.constant 0 : index
    %210 = vector.load %arg9[%c1_97, %c0_98, %c0_99] : memref<2x1x96xf32, #tpu.memory_space<vmem>>, vector<1x1x96xf32>
    %211 = vector.shape_cast %210 : vector<1x1x96xf32> to vector<1x96xf32>
    %212 = vector.broadcast %211 : vector<1x96xf32> to vector<17x96xf32>
    %213 = arith.addf %209, %212 : vector<17x96xf32>
    %214 = vector.extract_strided_slice %213 {offsets = [0, 0], sizes = [17, 8], strides = [1, 1]} : vector<17x96xf32> to vector<17x8xf32>
    %215 = vector.extract_strided_slice %213 {offsets = [0, 32], sizes = [17, 8], strides = [1, 1]} : vector<17x96xf32> to vector<17x8xf32>
    %216 = vector.extract_strided_slice %213 {offsets = [0, 64], sizes = [17, 8], strides = [1, 1]} : vector<17x96xf32> to vector<17x8xf32>
    %cst_100 = arith.constant dense<0.000000e+00> : vector<17x17xf32>
    %217 = tpu.matmul %214, %215, %cst_100 {dimension_numbers = #tpu.dot_dimension_numbers<[1], [1], [0], [0], [0, 0, 1, 0], [], []>} : vector<17x8xf32>, vector<17x8xf32>, vector<17x17xf32> -> vector<17x17xf32>
    %cst_101 = arith.constant dense<0xFF800000> : vector<17xf32>
    %218 = vector.multi_reduction <maximumf>, %217, %cst_101 [1] : vector<17x17xf32> to vector<17xf32>
    %219 = vector.shape_cast %218 : vector<17xf32> to vector<17x1xf32>
    %220 = vector.broadcast %219 : vector<17x1xf32> to vector<17x17xf32>
    %221 = arith.subf %217, %220 : vector<17x17xf32>
    %222 = math.exp %221 : vector<17x17xf32>
    %cst_102 = arith.constant dense<0.000000e+00> : vector<17xf32>
    %223 = vector.multi_reduction <add>, %222, %cst_102 [1] : vector<17x17xf32> to vector<17xf32>
    %224 = vector.shape_cast %223 : vector<17xf32> to vector<17x1xf32>
    %225 = tpu.reciprocal %224 {approx = true} : vector<17x1xf32> -> vector<17x1xf32>
    %226 = vector.broadcast %225 : vector<17x1xf32> to vector<17x17xf32>
    %227 = arith.mulf %222, %226 : vector<17x17xf32>
    %cst_103 = arith.constant dense<0.000000e+00> : vector<17x8xf32>
    %228 = tpu.matmul %227, %216, %cst_103 {dimension_numbers = #tpu.dot_dimension_numbers<[1], [0], [0], [1], [0, 0, 1, 1], [], []>} : vector<17x17xf32>, vector<17x8xf32>, vector<17x8xf32> -> vector<17x8xf32>
    %229 = vector.extract_strided_slice %213 {offsets = [0, 8], sizes = [17, 8], strides = [1, 1]} : vector<17x96xf32> to vector<17x8xf32>
    %230 = vector.extract_strided_slice %213 {offsets = [0, 40], sizes = [17, 8], strides = [1, 1]} : vector<17x96xf32> to vector<17x8xf32>
    %231 = vector.extract_strided_slice %213 {offsets = [0, 72], sizes = [17, 8], strides = [1, 1]} : vector<17x96xf32> to vector<17x8xf32>
    %cst_104 = arith.constant dense<0.000000e+00> : vector<17x17xf32>
    %232 = tpu.matmul %229, %230, %cst_104 {dimension_numbers = #tpu.dot_dimension_numbers<[1], [1], [0], [0], [0, 0, 1, 0], [], []>} : vector<17x8xf32>, vector<17x8xf32>, vector<17x17xf32> -> vector<17x17xf32>
    %cst_105 = arith.constant dense<0xFF800000> : vector<17xf32>
    %233 = vector.multi_reduction <maximumf>, %232, %cst_105 [1] : vector<17x17xf32> to vector<17xf32>
    %234 = vector.shape_cast %233 : vector<17xf32> to vector<17x1xf32>
    %235 = vector.broadcast %234 : vector<17x1xf32> to vector<17x17xf32>
    %236 = arith.subf %232, %235 : vector<17x17xf32>
    %237 = math.exp %236 : vector<17x17xf32>
    %cst_106 = arith.constant dense<0.000000e+00> : vector<17xf32>
    %238 = vector.multi_reduction <add>, %237, %cst_106 [1] : vector<17x17xf32> to vector<17xf32>
    %239 = vector.shape_cast %238 : vector<17xf32> to vector<17x1xf32>
    %240 = tpu.reciprocal %239 {approx = true} : vector<17x1xf32> -> vector<17x1xf32>
    %241 = vector.broadcast %240 : vector<17x1xf32> to vector<17x17xf32>
    %242 = arith.mulf %237, %241 : vector<17x17xf32>
    %cst_107 = arith.constant dense<0.000000e+00> : vector<17x8xf32>
    %243 = tpu.matmul %242, %231, %cst_107 {dimension_numbers = #tpu.dot_dimension_numbers<[1], [0], [0], [1], [0, 0, 1, 1], [], []>} : vector<17x17xf32>, vector<17x8xf32>, vector<17x8xf32> -> vector<17x8xf32>
    %244 = vector.extract_strided_slice %213 {offsets = [0, 16], sizes = [17, 8], strides = [1, 1]} : vector<17x96xf32> to vector<17x8xf32>
    %245 = vector.extract_strided_slice %213 {offsets = [0, 48], sizes = [17, 8], strides = [1, 1]} : vector<17x96xf32> to vector<17x8xf32>
    %246 = vector.extract_strided_slice %213 {offsets = [0, 80], sizes = [17, 8], strides = [1, 1]} : vector<17x96xf32> to vector<17x8xf32>
    %cst_108 = arith.constant dense<0.000000e+00> : vector<17x17xf32>
    %247 = tpu.matmul %244, %245, %cst_108 {dimension_numbers = #tpu.dot_dimension_numbers<[1], [1], [0], [0], [0, 0, 1, 0], [], []>} : vector<17x8xf32>, vector<17x8xf32>, vector<17x17xf32> -> vector<17x17xf32>
    %cst_109 = arith.constant dense<0xFF800000> : vector<17xf32>
    %248 = vector.multi_reduction <maximumf>, %247, %cst_109 [1] : vector<17x17xf32> to vector<17xf32>
    %249 = vector.shape_cast %248 : vector<17xf32> to vector<17x1xf32>
    %250 = vector.broadcast %249 : vector<17x1xf32> to vector<17x17xf32>
    %251 = arith.subf %247, %250 : vector<17x17xf32>
    %252 = math.exp %251 : vector<17x17xf32>
    %cst_110 = arith.constant dense<0.000000e+00> : vector<17xf32>
    %253 = vector.multi_reduction <add>, %252, %cst_110 [1] : vector<17x17xf32> to vector<17xf32>
    %254 = vector.shape_cast %253 : vector<17xf32> to vector<17x1xf32>
    %255 = tpu.reciprocal %254 {approx = true} : vector<17x1xf32> -> vector<17x1xf32>
    %256 = vector.broadcast %255 : vector<17x1xf32> to vector<17x17xf32>
    %257 = arith.mulf %252, %256 : vector<17x17xf32>
    %cst_111 = arith.constant dense<0.000000e+00> : vector<17x8xf32>
    %258 = tpu.matmul %257, %246, %cst_111 {dimension_numbers = #tpu.dot_dimension_numbers<[1], [0], [0], [1], [0, 0, 1, 1], [], []>} : vector<17x17xf32>, vector<17x8xf32>, vector<17x8xf32> -> vector<17x8xf32>
    %259 = vector.extract_strided_slice %213 {offsets = [0, 24], sizes = [17, 8], strides = [1, 1]} : vector<17x96xf32> to vector<17x8xf32>
    %260 = vector.extract_strided_slice %213 {offsets = [0, 56], sizes = [17, 8], strides = [1, 1]} : vector<17x96xf32> to vector<17x8xf32>
    %261 = vector.extract_strided_slice %213 {offsets = [0, 88], sizes = [17, 8], strides = [1, 1]} : vector<17x96xf32> to vector<17x8xf32>
    %cst_112 = arith.constant dense<0.000000e+00> : vector<17x17xf32>
    %262 = tpu.matmul %259, %260, %cst_112 {dimension_numbers = #tpu.dot_dimension_numbers<[1], [1], [0], [0], [0, 0, 1, 0], [], []>} : vector<17x8xf32>, vector<17x8xf32>, vector<17x17xf32> -> vector<17x17xf32>
    %cst_113 = arith.constant dense<0xFF800000> : vector<17xf32>
    %263 = vector.multi_reduction <maximumf>, %262, %cst_113 [1] : vector<17x17xf32> to vector<17xf32>
    %264 = vector.shape_cast %263 : vector<17xf32> to vector<17x1xf32>
    %265 = vector.broadcast %264 : vector<17x1xf32> to vector<17x17xf32>
    %266 = arith.subf %262, %265 : vector<17x17xf32>
    %267 = math.exp %266 : vector<17x17xf32>
    %cst_114 = arith.constant dense<0.000000e+00> : vector<17xf32>
    %268 = vector.multi_reduction <add>, %267, %cst_114 [1] : vector<17x17xf32> to vector<17xf32>
    %269 = vector.shape_cast %268 : vector<17xf32> to vector<17x1xf32>
    %270 = tpu.reciprocal %269 {approx = true} : vector<17x1xf32> -> vector<17x1xf32>
    %271 = vector.broadcast %270 : vector<17x1xf32> to vector<17x17xf32>
    %272 = arith.mulf %267, %271 : vector<17x17xf32>
    %cst_115 = arith.constant dense<0.000000e+00> : vector<17x8xf32>
    %273 = tpu.matmul %272, %261, %cst_115 {dimension_numbers = #tpu.dot_dimension_numbers<[1], [0], [0], [1], [0, 0, 1, 1], [], []>} : vector<17x17xf32>, vector<17x8xf32>, vector<17x8xf32> -> vector<17x8xf32>
    %274 = tpu.concatenate %228, %243, %258, %273 in 1 : vector<17x8xf32>, vector<17x8xf32>, vector<17x8xf32>, vector<17x8xf32> -> vector<17x32xf32>
    %c1_116 = arith.constant 1 : index
    %c0_117 = arith.constant 0 : index
    %c0_118 = arith.constant 0 : index
    %275 = vector.load %arg10[%c1_116, %c0_117, %c0_118] : memref<2x32x32xf32, #tpu.memory_space<vmem>>, vector<1x32x32xf32>
    %276 = vector.shape_cast %275 : vector<1x32x32xf32> to vector<32x32xf32>
    %cst_119 = arith.constant dense<0.000000e+00> : vector<17x32xf32>
    %277 = tpu.matmul %274, %276, %cst_119 {dimension_numbers = #tpu.dot_dimension_numbers<[1], [0], [0], [1], [0, 0, 1, 1], [], []>} : vector<17x32xf32>, vector<32x32xf32>, vector<17x32xf32> -> vector<17x32xf32>
    %278 = arith.addf %180, %277 : vector<17x32xf32>
    %c1_120 = arith.constant 1 : index
    %c0_121 = arith.constant 0 : index
    %c0_122 = arith.constant 0 : index
    %279 = vector.load %arg11[%c1_120, %c0_121, %c0_122] : memref<2x1x32xf32, #tpu.memory_space<vmem>>, vector<1x1x32xf32>
    %280 = vector.shape_cast %279 : vector<1x1x32xf32> to vector<1x32xf32>
    %281 = vector.broadcast %280 : vector<1x32xf32> to vector<17x32xf32>
    %282 = arith.addf %278, %281 : vector<17x32xf32>
    %c1_123 = arith.constant 1 : index
    %c0_124 = arith.constant 0 : index
    %c0_125 = arith.constant 0 : index
    %283 = vector.load %arg12[%c1_123, %c0_124, %c0_125] : memref<2x1x32xf32, #tpu.memory_space<vmem>>, vector<1x1x32xf32>
    %284 = vector.shape_cast %283 : vector<1x1x32xf32> to vector<1x32xf32>
    %c1_126 = arith.constant 1 : index
    %c0_127 = arith.constant 0 : index
    %c0_128 = arith.constant 0 : index
    %285 = vector.load %arg13[%c1_126, %c0_127, %c0_128] : memref<2x1x32xf32, #tpu.memory_space<vmem>>, vector<1x1x32xf32>
    %286 = vector.shape_cast %285 : vector<1x1x32xf32> to vector<1x32xf32>
    %cst_129 = arith.constant dense<0.000000e+00> : vector<17xf32>
    %287 = vector.multi_reduction <add>, %282, %cst_129 [1] : vector<17x32xf32> to vector<17xf32>
    %288 = vector.shape_cast %287 : vector<17xf32> to vector<17x1xf32>
    %cst_130 = arith.constant 3.200000e+01 : f32
    %289 = vector.broadcast %cst_130 : f32 to vector<17x1xf32>
    %290 = arith.divf %288, %289 : vector<17x1xf32>
    %291 = vector.broadcast %290 : vector<17x1xf32> to vector<17x32xf32>
    %292 = arith.subf %282, %291 : vector<17x32xf32>
    %293 = arith.mulf %292, %292 : vector<17x32xf32>
    %cst_131 = arith.constant dense<0.000000e+00> : vector<17xf32>
    %294 = vector.multi_reduction <add>, %293, %cst_131 [1] : vector<17x32xf32> to vector<17xf32>
    %295 = vector.shape_cast %294 : vector<17xf32> to vector<17x1xf32>
    %cst_132 = arith.constant 3.200000e+01 : f32
    %296 = vector.broadcast %cst_132 : f32 to vector<17x1xf32>
    %297 = arith.divf %295, %296 : vector<17x1xf32>
    %298 = vector.broadcast %290 : vector<17x1xf32> to vector<17x32xf32>
    %299 = arith.subf %282, %298 : vector<17x32xf32>
    %cst_133 = arith.constant 9.99999974E-6 : f32
    %300 = vector.broadcast %cst_133 : f32 to vector<17x1xf32>
    %301 = arith.addf %297, %300 : vector<17x1xf32>
    %302 = math.rsqrt %301 : vector<17x1xf32>
    %303 = vector.broadcast %302 : vector<17x1xf32> to vector<17x32xf32>
    %304 = arith.mulf %299, %303 : vector<17x32xf32>
    %305 = vector.broadcast %284 : vector<1x32xf32> to vector<17x32xf32>
    %306 = arith.mulf %304, %305 : vector<17x32xf32>
    %307 = vector.broadcast %286 : vector<1x32xf32> to vector<17x32xf32>
    %308 = arith.addf %306, %307 : vector<17x32xf32>
    %c1_134 = arith.constant 1 : index
    %c0_135 = arith.constant 0 : index
    %c0_136 = arith.constant 0 : index
    %309 = vector.load %arg14[%c1_134, %c0_135, %c0_136] : memref<2x32x64xf32, #tpu.memory_space<vmem>>, vector<1x32x64xf32>
    %310 = vector.shape_cast %309 : vector<1x32x64xf32> to vector<32x64xf32>
    %cst_137 = arith.constant dense<0.000000e+00> : vector<17x64xf32>
    %311 = tpu.matmul %308, %310, %cst_137 {dimension_numbers = #tpu.dot_dimension_numbers<[1], [0], [0], [1], [0, 0, 1, 1], [], []>} : vector<17x32xf32>, vector<32x64xf32>, vector<17x64xf32> -> vector<17x64xf32>
    %c1_138 = arith.constant 1 : index
    %c0_139 = arith.constant 0 : index
    %c0_140 = arith.constant 0 : index
    %312 = vector.load %arg15[%c1_138, %c0_139, %c0_140] : memref<2x1x64xf32, #tpu.memory_space<vmem>>, vector<1x1x64xf32>
    %313 = vector.shape_cast %312 : vector<1x1x64xf32> to vector<1x64xf32>
    %314 = vector.broadcast %313 : vector<1x64xf32> to vector<17x64xf32>
    %315 = arith.addf %311, %314 : vector<17x64xf32>
    %cst_141 = arith.constant 1.702000e+00 : f32
    %316 = vector.broadcast %cst_141 : f32 to vector<17x64xf32>
    %317 = arith.mulf %316, %315 : vector<17x64xf32>
    %318 = arith.negf %317 : vector<17x64xf32>
    %319 = math.exp %318 : vector<17x64xf32>
    %cst_142 = arith.constant 1.000000e+00 : f32
    %320 = vector.broadcast %cst_142 : f32 to vector<17x64xf32>
    %321 = arith.addf %320, %319 : vector<17x64xf32>
    %322 = arith.divf %320, %321 : vector<17x64xf32>
    %323 = arith.mulf %315, %322 : vector<17x64xf32>
    %c1_143 = arith.constant 1 : index
    %c0_144 = arith.constant 0 : index
    %c0_145 = arith.constant 0 : index
    %324 = vector.load %arg16[%c1_143, %c0_144, %c0_145] : memref<2x64x32xf32, #tpu.memory_space<vmem>>, vector<1x64x32xf32>
    %325 = vector.shape_cast %324 : vector<1x64x32xf32> to vector<64x32xf32>
    %cst_146 = arith.constant dense<0.000000e+00> : vector<17x32xf32>
    %326 = tpu.matmul %323, %325, %cst_146 {dimension_numbers = #tpu.dot_dimension_numbers<[1], [0], [0], [1], [0, 0, 1, 1], [], []>} : vector<17x64xf32>, vector<64x32xf32>, vector<17x32xf32> -> vector<17x32xf32>
    %327 = arith.addf %282, %326 : vector<17x32xf32>
    %c1_147 = arith.constant 1 : index
    %c0_148 = arith.constant 0 : index
    %c0_149 = arith.constant 0 : index
    %328 = vector.load %arg17[%c1_147, %c0_148, %c0_149] : memref<2x1x32xf32, #tpu.memory_space<vmem>>, vector<1x1x32xf32>
    %329 = vector.shape_cast %328 : vector<1x1x32xf32> to vector<1x32xf32>
    %330 = vector.broadcast %329 : vector<1x32xf32> to vector<17x32xf32>
    %331 = arith.addf %327, %330 : vector<17x32xf32>
    %332 = vector.extract_strided_slice %331 {offsets = [0, 0], sizes = [1, 32], strides = [1, 1]} : vector<17x32xf32> to vector<1x32xf32>
    %c0_150 = arith.constant 0 : index
    %c0_151 = arith.constant 0 : index
    %333 = vector.load %arg18[%c0_150, %c0_151] : memref<1x32xf32, #tpu.memory_space<vmem>>, vector<1x32xf32>
    %c0_152 = arith.constant 0 : index
    %c0_153 = arith.constant 0 : index
    %334 = vector.load %arg19[%c0_152, %c0_153] : memref<1x32xf32, #tpu.memory_space<vmem>>, vector<1x32xf32>
    %cst_154 = arith.constant dense<0.000000e+00> : vector<1xf32>
    %335 = vector.multi_reduction <add>, %332, %cst_154 [1] : vector<1x32xf32> to vector<1xf32>
    %336 = vector.shape_cast %335 : vector<1xf32> to vector<1x1xf32>
    %cst_155 = arith.constant 3.200000e+01 : f32
    %337 = vector.broadcast %cst_155 : f32 to vector<1x1xf32>
    %338 = arith.divf %336, %337 : vector<1x1xf32>
    %339 = vector.broadcast %338 : vector<1x1xf32> to vector<1x32xf32>
    %340 = arith.subf %332, %339 : vector<1x32xf32>
    %341 = arith.mulf %340, %340 : vector<1x32xf32>
    %cst_156 = arith.constant dense<0.000000e+00> : vector<1xf32>
    %342 = vector.multi_reduction <add>, %341, %cst_156 [1] : vector<1x32xf32> to vector<1xf32>
    %343 = vector.shape_cast %342 : vector<1xf32> to vector<1x1xf32>
    %cst_157 = arith.constant 3.200000e+01 : f32
    %344 = vector.broadcast %cst_157 : f32 to vector<1x1xf32>
    %345 = arith.divf %343, %344 : vector<1x1xf32>
    %346 = vector.broadcast %338 : vector<1x1xf32> to vector<1x32xf32>
    %347 = arith.subf %332, %346 : vector<1x32xf32>
    %cst_158 = arith.constant 9.99999974E-6 : f32
    %348 = vector.broadcast %cst_158 : f32 to vector<1x1xf32>
    %349 = arith.addf %345, %348 : vector<1x1xf32>
    %350 = math.rsqrt %349 : vector<1x1xf32>
    %351 = vector.broadcast %350 : vector<1x1xf32> to vector<1x32xf32>
    %352 = arith.mulf %347, %351 : vector<1x32xf32>
    %353 = arith.mulf %352, %333 : vector<1x32xf32>
    %354 = arith.addf %353, %334 : vector<1x32xf32>
    %c0_159 = arith.constant 0 : index
    %c0_160 = arith.constant 0 : index
    %355 = vector.load %arg20[%c0_159, %c0_160] : memref<32x16xf32, #tpu.memory_space<vmem>>, vector<32x16xf32>
    %cst_161 = arith.constant dense<0.000000e+00> : vector<1x16xf32>
    %356 = tpu.matmul %354, %355, %cst_161 {dimension_numbers = #tpu.dot_dimension_numbers<[1], [0], [0], [1], [0, 0, 1, 1], [], []>} : vector<1x32xf32>, vector<32x16xf32>, vector<1x16xf32> -> vector<1x16xf32>
    %357 = arith.mulf %356, %356 : vector<1x16xf32>
    %cst_162 = arith.constant dense<0.000000e+00> : vector<1xf32>
    %358 = vector.multi_reduction <add>, %357, %cst_162 [1] : vector<1x16xf32> to vector<1xf32>
    %359 = vector.shape_cast %358 : vector<1xf32> to vector<1x1xf32>
    %360 = math.rsqrt %359 : vector<1x1xf32>
    %361 = vector.broadcast %360 : vector<1x1xf32> to vector<1x16xf32>
    %362 = arith.mulf %356, %361 : vector<1x16xf32>
    %c0_163 = arith.constant 0 : index
    %c0_164 = arith.constant 0 : index
    %c0_165 = arith.constant 0 : index
    %363 = vector.load %arg21[%c0_163, %c0_164, %c0_165] : memref<1x1x16xf32, #tpu.memory_space<vmem>>, vector<1x1x16xf32>
    %364 = vector.shape_cast %363 : vector<1x1x16xf32> to vector<1x16xf32>
    %365 = vector.shape_cast %362 : vector<1x16xf32> to vector<1x1x16xf32>
    tpu.vector_store %arg21[%c0_163, %c0_164, %c0_165], %365 {strides = array<i32>} : memref<1x1x16xf32, #tpu.memory_space<vmem>>, vector<1x1x16xf32>,
    return
  }
  func.func @transform_0(%arg0: i32) -> (i32, i32, i32) {
    %c0_i32 = arith.constant 0 : i32
    %c0_i32_0 = arith.constant 0 : i32
    %c0_i32_1 = arith.constant 0 : i32
    return %arg0, %c0_i32, %c0_i32_0 : i32, i32, i32
  }
  func.func @transform_1(%arg0: i32) -> (i32, i32) {
    %c0_i32 = arith.constant 0 : i32
    %c0_i32_0 = arith.constant 0 : i32
    %c0_i32_1 = arith.constant 0 : i32
    return %c0_i32, %c0_i32_0 : i32, i32
  }
  func.func @transform_2(%arg0: i32) -> (i32, i32) {
    %c0_i32 = arith.constant 0 : i32
    %c0_i32_0 = arith.constant 0 : i32
    %c0_i32_1 = arith.constant 0 : i32
    return %c0_i32, %c0_i32_0 : i32, i32
  }
  func.func @transform_3(%arg0: i32) -> (i32, i32) {
    %c0_i32 = arith.constant 0 : i32
    %c0_i32_0 = arith.constant 0 : i32
    %c0_i32_1 = arith.constant 0 : i32
    return %c0_i32, %c0_i32_0 : i32, i32
  }
  func.func @transform_4(%arg0: i32) -> (i32, i32) {
    %c0_i32 = arith.constant 0 : i32
    %c0_i32_0 = arith.constant 0 : i32
    %c0_i32_1 = arith.constant 0 : i32
    return %c0_i32, %c0_i32_0 : i32, i32
  }
  func.func @transform_5(%arg0: i32) -> (i32, i32, i32) {
    %c0_i32 = arith.constant 0 : i32
    %c0_i32_0 = arith.constant 0 : i32
    %c0_i32_1 = arith.constant 0 : i32
    %c0_i32_2 = arith.constant 0 : i32
    return %c0_i32, %c0_i32_0, %c0_i32_1 : i32, i32, i32
  }
  func.func @transform_6(%arg0: i32) -> (i32, i32, i32) {
    %c0_i32 = arith.constant 0 : i32
    %c0_i32_0 = arith.constant 0 : i32
    %c0_i32_1 = arith.constant 0 : i32
    %c0_i32_2 = arith.constant 0 : i32
    return %c0_i32, %c0_i32_0, %c0_i32_1 : i32, i32, i32
  }
  func.func @transform_7(%arg0: i32) -> (i32, i32, i32) {
    %c0_i32 = arith.constant 0 : i32
    %c0_i32_0 = arith.constant 0 : i32
    %c0_i32_1 = arith.constant 0 : i32
    %c0_i32_2 = arith.constant 0 : i32
    return %c0_i32, %c0_i32_0, %c0_i32_1 : i32, i32, i32
  }
  func.func @transform_8(%arg0: i32) -> (i32, i32, i32) {
    %c0_i32 = arith.constant 0 : i32
    %c0_i32_0 = arith.constant 0 : i32
    %c0_i32_1 = arith.constant 0 : i32
    %c0_i32_2 = arith.constant 0 : i32
    return %c0_i32, %c0_i32_0, %c0_i32_1 : i32, i32, i32
  }
  func.func @transform_9(%arg0: i32) -> (i32, i32, i32) {
    %c0_i32 = arith.constant 0 : i32
    %c0_i32_0 = arith.constant 0 : i32
    %c0_i32_1 = arith.constant 0 : i32
    %c0_i32_2 = arith.constant 0 : i32
    return %c0_i32, %c0_i32_0, %c0_i32_1 : i32, i32, i32
  }
  func.func @transform_10(%arg0: i32) -> (i32, i32, i32) {
    %c0_i32 = arith.constant 0 : i32
    %c0_i32_0 = arith.constant 0 : i32
    %c0_i32_1 = arith.constant 0 : i32
    %c0_i32_2 = arith.constant 0 : i32
    return %c0_i32, %c0_i32_0, %c0_i32_1 : i32, i32, i32
  }
  func.func @transform_11(%arg0: i32) -> (i32, i32, i32) {
    %c0_i32 = arith.constant 0 : i32
    %c0_i32_0 = arith.constant 0 : i32
    %c0_i32_1 = arith.constant 0 : i32
    %c0_i32_2 = arith.constant 0 : i32
    return %c0_i32, %c0_i32_0, %c0_i32_1 : i32, i32, i32
  }
  func.func @transform_12(%arg0: i32) -> (i32, i32, i32) {
    %c0_i32 = arith.constant 0 : i32
    %c0_i32_0 = arith.constant 0 : i32
    %c0_i32_1 = arith.constant 0 : i32
    %c0_i32_2 = arith.constant 0 : i32
    return %c0_i32, %c0_i32_0, %c0_i32_1 : i32, i32, i32
  }
  func.func @transform_13(%arg0: i32) -> (i32, i32, i32) {
    %c0_i32 = arith.constant 0 : i32
    %c0_i32_0 = arith.constant 0 : i32
    %c0_i32_1 = arith.constant 0 : i32
    %c0_i32_2 = arith.constant 0 : i32
    return %c0_i32, %c0_i32_0, %c0_i32_1 : i32, i32, i32
  }
  func.func @transform_14(%arg0: i32) -> (i32, i32, i32) {
    %c0_i32 = arith.constant 0 : i32
    %c0_i32_0 = arith.constant 0 : i32
    %c0_i32_1 = arith.constant 0 : i32
    %c0_i32_2 = arith.constant 0 : i32
    return %c0_i32, %c0_i32_0, %c0_i32_1 : i32, i32, i32
  }
  func.func @transform_15(%arg0: i32) -> (i32, i32, i32) {
    %c0_i32 = arith.constant 0 : i32
    %c0_i32_0 = arith.constant 0 : i32
    %c0_i32_1 = arith.constant 0 : i32
    %c0_i32_2 = arith.constant 0 : i32
    return %c0_i32, %c0_i32_0, %c0_i32_1 : i32, i32, i32
  }
  func.func @transform_16(%arg0: i32) -> (i32, i32, i32) {
    %c0_i32 = arith.constant 0 : i32
    %c0_i32_0 = arith.constant 0 : i32
    %c0_i32_1 = arith.constant 0 : i32
    %c0_i32_2 = arith.constant 0 : i32
    return %c0_i32, %c0_i32_0, %c0_i32_1 : i32, i32, i32
  }
  func.func @transform_17(%arg0: i32) -> (i32, i32) {
    %c0_i32 = arith.constant 0 : i32
    %c0_i32_0 = arith.constant 0 : i32
    %c0_i32_1 = arith.constant 0 : i32
    return %c0_i32, %c0_i32_0 : i32, i32
  }
  func.func @transform_18(%arg0: i32) -> (i32, i32) {
    %c0_i32 = arith.constant 0 : i32
    %c0_i32_0 = arith.constant 0 : i32
    %c0_i32_1 = arith.constant 0 : i32
    return %c0_i32, %c0_i32_0 : i32, i32
  }
  func.func @transform_19(%arg0: i32) -> (i32, i32) {
    %c0_i32 = arith.constant 0 : i32
    %c0_i32_0 = arith.constant 0 : i32
    %c0_i32_1 = arith.constant 0 : i32
    return %c0_i32, %c0_i32_0 : i32, i32
  }
  func.func @transform_20(%arg0: i32) -> (i32, i32, i32) {
    %c0_i32 = arith.constant 0 : i32
    %c0_i32_0 = arith.constant 0 : i32
    %c0_i32_1 = arith.constant 0 : i32
    return %arg0, %c0_i32, %c0_i32_0 : i32, i32, i32
  }
}

</mosaic_0001>

<llo_original>
// kernel: clip_ft_forward.1
$region0: #{clip_ft_forward.1}
  #allocation0 [shape = 'u32[]', space=smem, size = 0x4, offset = 0x4, fixed_abs, tag = 'smem constant byte address 0x4 - core index']
  #allocation1 [shape = 'u32[144,128]{1,0:T(1,128)}', space=vmem, size = 0x12000, scoped, tag = 'internal scratch']
  %s0 = inlined_call_operand.vmem [shape: f32[2,17,49], index: 0, kind: input, shape index: {}]
  %s1 = inlined_call_operand.vmem [shape: f32[49,32], index: 1, kind: input, shape index: {}]
  %s2 = inlined_call_operand.vmem [shape: f32[17,32], index: 2, kind: input, shape index: {}]
  %s3 = inlined_call_operand.vmem [shape: f32[1,32], index: 3, kind: input, shape index: {}]
  %s4 = inlined_call_operand.vmem [shape: f32[1,32], index: 4, kind: input, shape index: {}]
  %s5 = inlined_call_operand.vmem [shape: f32[2,1,32], index: 5, kind: input, shape index: {}]
  %s6 = inlined_call_operand.vmem [shape: f32[2,1,32], index: 6, kind: input, shape index: {}]
  %s7 = inlined_call_operand.vmem [shape: f32[2,32,96], index: 7, kind: input, shape index: {}]
  %s8 = inlined_call_operand.vmem [shape: f32[2,1,96], index: 8, kind: input, shape index: {}]
  %s9 = inlined_call_operand.vmem [shape: f32[2,32,32], index: 9, kind: input, shape index: {}]
  %s10 = inlined_call_operand.vmem [shape: f32[2,1,32], index: 10, kind: input, shape index: {}]
  %s11 = inlined_call_operand.vmem [shape: f32[2,1,32], index: 11, kind: input, shape index: {}]
  %s12 = inlined_call_operand.vmem [shape: f32[2,1,32], index: 12, kind: input, shape index: {}]
  %s13 = inlined_call_operand.vmem [shape: f32[2,32,64], index: 13, kind: input, shape index: {}]
  %s14 = inlined_call_operand.vmem [shape: f32[2,1,64], index: 14, kind: input, shape index: {}]
  %s15 = inlined_call_operand.vmem [shape: f32[2,64,32], index: 15, kind: input, shape index: {}]
  %s16 = inlined_call_operand.vmem [shape: f32[2,1,32], index: 16, kind: input, shape index: {}]
  %s17 = inlined_call_operand.vmem [shape: f32[1,32], index: 17, kind: input, shape index: {}]
  %s18 = inlined_call_operand.vmem [shape: f32[1,32], index: 18, kind: input, shape index: {}]
  %s19 = inlined_call_operand.vmem [shape: f32[32,16], index: 19, kind: input, shape index: {}]
  %s20 = inlined_call_operand.hbm [shape: f32[2,1,16], index: 20, kind: output, shape index: {}]
  %s21 = sld [smem:[#allocation0]]
  $region113: #{clip_ft_forward.1} parent=0
    _
  %s23 = ssub.s32 1, %s21
  %s24 = scalar_select 0, %s23, %s21
  $region1: #{clip_ft_forward.1} parent=0
    #allocation2 [shape = 'u8[1024]{0}', space=vmem, size = 0x400, scoped, tag = 'output window, operand 0']
    #allocation3 [shape = 's32[2]{0}', space=sflag, size = 0x8, scoped, tag = 'scoped memory for clip_ft_forward.1']
    %25 = vsyncpa [#allocation3], 0
    %s26 = scalar_lea.sflag [#allocation3], 1
    %27 = vsyncpa %s26, 0
    loop: start=0, step=1, limit=4
    $region2: #{clip_ft_forward.1} parent=1 // loop_pre_header
      _
    $region3: #{clip_ft_forward.1} parent=1 // loop_header
      %s29 = sphi 0, %s33
      %p30 = scmp.ge.s32.totalorder %s29, 4
      %s39 = sphi 0, %s41
      %s42 = sphi 0, %s39
      %s43 = sphi 0, %s42
      %s59 = sphi 0, %s43
      %s63 = sphi 0, %s63
      %s65 = sphi 0, %s63
      %s66 = sphi 0, %s65
      %s80 = sphi 0, %s66
      %s84 = sphi 0, %s84
      %s86 = sphi 0, %s84
      %s87 = sphi 0, %s86
      %s101 = sphi 0, %s87
      %s105 = sphi 0, %s105
      %s107 = sphi 0, %s105
      %s108 = sphi 0, %s107
      %s122 = sphi 0, %s108
      %s126 = sphi 0, %s126
      %s128 = sphi 0, %s126
      %s129 = sphi 0, %s128
      %s143 = sphi 0, %s129
      %s147 = sphi 0, %s147
      %s149 = sphi 0, %s147
      %s150 = sphi 0, %s149
      %s164 = sphi 0, %s150
      %s168 = sphi 0, %s168
      %s170 = sphi 0, %s168
      %s171 = sphi 0, %s170
      %s185 = sphi 0, %s171
      %s189 = sphi 0, %s189
      %s191 = sphi 0, %s189
      %s192 = sphi 0, %s191
      %s206 = sphi 0, %s192
      %s210 = sphi 0, %s210
      %s212 = sphi 0, %s210
      %s213 = sphi 0, %s212
      %s227 = sphi 0, %s213
      %s231 = sphi 0, %s231
      %s233 = sphi 0, %s231
      %s234 = sphi 0, %s233
      %s248 = sphi 0, %s234
      %s252 = sphi 0, %s252
      %s254 = sphi 0, %s252
      %s255 = sphi 0, %s254
      %s269 = sphi 0, %s255
      %s273 = sphi 0, %s273
      %s275 = sphi 0, %s273
      %s276 = sphi 0, %s275
      %s290 = sphi 0, %s276
      %s294 = sphi 0, %s294
      %s296 = sphi 0, %s294
      %s297 = sphi 0, %s296
      %s311 = sphi 0, %s297
      %s315 = sphi 0, %s315
      %s317 = sphi 0, %s315
      %s318 = sphi 0, %s317
      %s332 = sphi 0, %s318
      %s336 = sphi 0, %s336
      %s338 = sphi 0, %s336
      %s339 = sphi 0, %s338
      %s353 = sphi 0, %s339
      %s357 = sphi 0, %s357
      %s359 = sphi 0, %s357
      %s360 = sphi 0, %s359
      %s374 = sphi 0, %s360
      %s378 = sphi 0, %s378
      %s380 = sphi 0, %s378
      %s381 = sphi 0, %s380
      %s395 = sphi 0, %s381
      %s399 = sphi 0, %s399
      %s401 = sphi 0, %s399
      %s402 = sphi 0, %s401
      %s416 = sphi 0, %s402
      %s420 = sphi 0, %s420
      %s422 = sphi 0, %s420
      %s423 = sphi 0, %s422
      %s437 = sphi 0, %s423
      %s441 = sphi 0, %s441
      %s443 = sphi 0, %s441
      %s444 = sphi 0, %s443
      %s458 = sphi 0, %s444
      %s464 = sphi 0, %s466
      %s467 = sphi 0, %s464
      %s468 = sphi 0, %s467
      %s484 = sphi 0, %s468
    $region4: #{clip_ft_forward.1} parent=1 // loop_header_branch
      %32 = sbr.rel (%p30) target = $region8
    $region5: #{clip_ft_forward.1} parent=1 // loop_body
      %s34 = ssub.s32 %s29, 1
      %s35 = ssub.s32 %s29, 2
      %s36 = sadd.s32 %s29, 1
      %s37 = ssub.s32 %s29, %s36
      %p38 = scmp.eq.s32.totalorder %s37, 0
      %s40 = sadd.s32 %s39, 1
      %s41 = scalar_select %p38, %s39, %s40
      %p44 = pneg %p38
      %p45 = scmp.eq.s32.totalorder %s29, 1
      %p46 = por %p44, %p45
      %p47 = scmp.ne.s32.totalorder %s39, %s42
      %p48 = scmp.eq.s32.totalorder %s29, 0
      %p49 = por %p47, %p48
      %p50 = scmp.ne.s32.totalorder %s39, %s42
      %p51 = scmp.eq.s32.totalorder %s34, 1
      %p52 = por %p50, %p51
      %p53 = scmp.ne.s32.totalorder %s42, %s43
      %p54 = scmp.eq.s32.totalorder %s34, 0
      %p55 = por %p53, %p54
      %p56 = scmp.ne.s32.totalorder %s42, %s43
      %p57 = scmp.eq.s32.totalorder %s35, 1
      %p58 = por %p56, %p57
      %p60 = scmp.ne.s32.totalorder %s43, %s59
      %p61 = scmp.eq.s32.totalorder %s35, 0
      %p62 = por %p60, %p61
      %s64 = sadd.s32 %s63, 1
      %p67 = scmp.eq.s32.totalorder %s29, 1
      %p68 = scmp.ne.s32.totalorder %s63, %s65
      %p69 = scmp.eq.s32.totalorder %s29, 0
      %p70 = por %p68, %p69
      %p71 = scmp.ne.s32.totalorder %s63, %s65
      %p72 = scmp.eq.s32.totalorder %s34, 1
      %p73 = por %p71, %p72
      %p74 = scmp.ne.s32.totalorder %s65, %s66
      %p75 = scmp.eq.s32.totalorder %s34, 0
      %p76 = por %p74, %p75
      %p77 = scmp.ne.s32.totalorder %s65, %s66
      %p78 = scmp.eq.s32.totalorder %s35, 1
      %p79 = por %p77, %p78
      %p81 = scmp.ne.s32.totalorder %s66, %s80
      %p82 = scmp.eq.s32.totalorder %s35, 0
      %p83 = por %p81, %p82
      %s85 = sadd.s32 %s84, 1
      %p88 = scmp.eq.s32.totalorder %s29, 1
      %p89 = scmp.ne.s32.totalorder %s84, %s86
      %p90 = scmp.eq.s32.totalorder %s29, 0
      %p91 = por %p89, %p90
      %p92 = scmp.ne.s32.totalorder %s84, %s86
      %p93 = scmp.eq.s32.totalorder %s34, 1
      %p94 = por %p92, %p93
      %p95 = scmp.ne.s32.totalorder %s86, %s87
      %p96 = scmp.eq.s32.totalorder %s34, 0
      %p97 = por %p95, %p96
      %p98 = scmp.ne.s32.totalorder %s86, %s87
      %p99 = scmp.eq.s32.totalorder %s35, 1
      %p100 = por %p98, %p99
      %p102 = scmp.ne.s32.totalorder %s87, %s101
      %p103 = scmp.eq.s32.totalorder %s35, 0
      %p104 = por %p102, %p103
      %s106 = sadd.s32 %s105, 1
      %p109 = scmp.eq.s32.totalorder %s29, 1
      %p110 = scmp.ne.s32.totalorder %s105, %s107
      %p111 = scmp.eq.s32.totalorder %s29, 0
      %p112 = por %p110, %p111
      %p113 = scmp.ne.s32.totalorder %s105, %s107
      %p114 = scmp.eq.s32.totalorder %s34, 1
      %p115 = por %p113, %p114
      %p116 = scmp.ne.s32.totalorder %s107, %s108
      %p117 = scmp.eq.s32.totalorder %s34, 0
      %p118 = por %p116, %p117
      %p119 = scmp.ne.s32.totalorder %s107, %s108
      %p120 = scmp.eq.s32.totalorder %s35, 1
      %p121 = por %p119, %p120
      %p123 = scmp.ne.s32.totalorder %s108, %s122
      %p124 = scmp.eq.s32.totalorder %s35, 0
      %p125 = por %p123, %p124
      %s127 = sadd.s32 %s126, 1
      %p130 = scmp.eq.s32.totalorder %s29, 1
      %p131 = scmp.ne.s32.totalorder %s126, %s128
      %p132 = scmp.eq.s32.totalorder %s29, 0
      %p133 = por %p131, %p132
      %p134 = scmp.ne.s32.totalorder %s126, %s128
      %p135 = scmp.eq.s32.totalorder %s34, 1
      %p136 = por %p134, %p135
      %p137 = scmp.ne.s32.totalorder %s128, %s129
      %p138 = scmp.eq.s32.totalorder %s34, 0
      %p139 = por %p137, %p138
      %p140 = scmp.ne.s32.totalorder %s128, %s129
      %p141 = scmp.eq.s32.totalorder %s35, 1
      %p142 = por %p140, %p141
      %p144 = scmp.ne.s32.totalorder %s129, %s143
      %p145 = scmp.eq.s32.totalorder %s35, 0
      %p146 = por %p144, %p145
      %s148 = sadd.s32 %s147, 1
      %p151 = scmp.eq.s32.totalorder %s29, 1
      %p152 = scmp.ne.s32.totalorder %s147, %s149
      %p153 = scmp.eq.s32.totalorder %s29, 0
      %p154 = por %p152, %p153
      %p155 = scmp.ne.s32.totalorder %s147, %s149
      %p156 = scmp.eq.s32.totalorder %s34, 1
      %p157 = por %p155, %p156
      %p158 = scmp.ne.s32.totalorder %s149, %s150
      %p159 = scmp.eq.s32.totalorder %s34, 0
      %p160 = por %p158, %p159
      %p161 = scmp.ne.s32.totalorder %s149, %s150
      %p162 = scmp.eq.s32.totalorder %s35, 1
      %p163 = por %p161, %p162
      %p165 = scmp.ne.s32.totalorder %s150, %s164
      %p166 = scmp.eq.s32.totalorder %s35, 0
      %p167 = por %p165, %p166
      %s169 = sadd.s32 %s168, 1
      %p172 = scmp.eq.s32.totalorder %s29, 1
      %p173 = scmp.ne.s32.totalorder %s168, %s170
      %p174 = scmp.eq.s32.totalorder %s29, 0
      %p175 = por %p173, %p174
      %p176 = scmp.ne.s32.totalorder %s168, %s170
      %p177 = scmp.eq.s32.totalorder %s34, 1
      %p178 = por %p176, %p177
      %p179 = scmp.ne.s32.totalorder %s170, %s171
      %p180 = scmp.eq.s32.totalorder %s34, 0
      %p181 = por %p179, %p180
      %p182 = scmp.ne.s32.totalorder %s170, %s171
      %p183 = scmp.eq.s32.totalorder %s35, 1
      %p184 = por %p182, %p183
      %p186 = scmp.ne.s32.totalorder %s171, %s185
      %p187 = scmp.eq.s32.totalorder %s35, 0
      %p188 = por %p186, %p187
      %s190 = sadd.s32 %s189, 1
      %p193 = scmp.eq.s32.totalorder %s29, 1
      %p194 = scmp.ne.s32.totalorder %s189, %s191
      %p195 = scmp.eq.s32.totalorder %s29, 0
      %p196 = por %p194, %p195
      %p197 = scmp.ne.s32.totalorder %s189, %s191
      %p198 = scmp.eq.s32.totalorder %s34, 1
      %p199 = por %p197, %p198
      %p200 = scmp.ne.s32.totalorder %s191, %s192
      %p201 = scmp.eq.s32.totalorder %s34, 0
      %p202 = por %p200, %p201
      %p203 = scmp.ne.s32.totalorder %s191, %s192
      %p204 = scmp.eq.s32.totalorder %s35, 1
      %p205 = por %p203, %p204
      %p207 = scmp.ne.s32.totalorder %s192, %s206
      %p208 = scmp.eq.s32.totalorder %s35, 0
      %p209 = por %p207, %p208
      %s211 = sadd.s32 %s210, 1
      %p214 = scmp.eq.s32.totalorder %s29, 1
      %p215 = scmp.ne.s32.totalorder %s210, %s212
      %p216 = scmp.eq.s32.totalorder %s29, 0
      %p217 = por %p215, %p216
      %p218 = scmp.ne.s32.totalorder %s210, %s212
      %p219 = scmp.eq.s32.totalorder %s34, 1
      %p220 = por %p218, %p219
      %p221 = scmp.ne.s32.totalorder %s212, %s213
      %p222 = scmp.eq.s32.totalorder %s34, 0
      %p223 = por %p221, %p222
      %p224 = scmp.ne.s32.totalorder %s212, %s213
      %p225 = scmp.eq.s32.totalorder %s35, 1
      %p226 = por %p224, %p225
      %p228 = scmp.ne.s32.totalorder %s213, %s227
      %p229 = scmp.eq.s32.totalorder %s35, 0
      %p230 = por %p228, %p229
      %s232 = sadd.s32 %s231, 1
      %p235 = scmp.eq.s32.totalorder %s29, 1
      %p236 = scmp.ne.s32.totalorder %s231, %s233
      %p237 = scmp.eq.s32.totalorder %s29, 0
      %p238 = por %p236, %p237
      %p239 = scmp.ne.s32.totalorder %s231, %s233
      %p240 = scmp.eq.s32.totalorder %s34, 1
      %p241 = por %p239, %p240
      %p242 = scmp.ne.s32.totalorder %s233, %s234
      %p243 = scmp.eq.s32.totalorder %s34, 0
      %p244 = por %p242, %p243
      %p245 = scmp.ne.s32.totalorder %s233, %s234
      %p246 = scmp.eq.s32.totalorder %s35, 1
      %p247 = por %p245, %p246
      %p249 = scmp.ne.s32.totalorder %s234, %s248
      %p250 = scmp.eq.s32.totalorder %s35, 0
      %p251 = por %p249, %p250
      %s253 = sadd.s32 %s252, 1
      %p256 = scmp.eq.s32.totalorder %s29, 1
      %p257 = scmp.ne.s32.totalorder %s252, %s254
      %p258 = scmp.eq.s32.totalorder %s29, 0
      %p259 = por %p257, %p258
      %p260 = scmp.ne.s32.totalorder %s252, %s254
      %p261 = scmp.eq.s32.totalorder %s34, 1
      %p262 = por %p260, %p261
      %p263 = scmp.ne.s32.totalorder %s254, %s255
      %p264 = scmp.eq.s32.totalorder %s34, 0
      %p265 = por %p263, %p264
      %p266 = scmp.ne.s32.totalorder %s254, %s255
      %p267 = scmp.eq.s32.totalorder %s35, 1
      %p268 = por %p266, %p267
      %p270 = scmp.ne.s32.totalorder %s255, %s269
      %p271 = scmp.eq.s32.totalorder %s35, 0
      %p272 = por %p270, %p271
      %s274 = sadd.s32 %s273, 1
      %p277 = scmp.eq.s32.totalorder %s29, 1
      %p278 = scmp.ne.s32.totalorder %s273, %s275
      %p279 = scmp.eq.s32.totalorder %s29, 0
      %p280 = por %p278, %p279
      %p281 = scmp.ne.s32.totalorder %s273, %s275
      %p282 = scmp.eq.s32.totalorder %s34, 1
      %p283 = por %p281, %p282
      %p284 = scmp.ne.s32.totalorder %s275, %s276
      %p285 = scmp.eq.s32.totalorder %s34, 0
      %p286 = por %p284, %p285
      %p287 = scmp.ne.s32.totalorder %s275, %s276
      %p288 = scmp.eq.s32.totalorder %s35, 1
      %p289 = por %p287, %p288
      %p291 = scmp.ne.s32.totalorder %s276, %s290
      %p292 = scmp.eq.s32.totalorder %s35, 0
      %p293 = por %p291, %p292
      %s295 = sadd.s32 %s294, 1
      %p298 = scmp.eq.s32.totalorder %s29, 1
      %p299 = scmp.ne.s32.totalorder %s294, %s296
      %p300 = scmp.eq.s32.totalorder %s29, 0
      %p301 = por %p299, %p300
      %p302 = scmp.ne.s32.totalorder %s294, %s296
      %p303 = scmp.eq.s32.totalorder %s34, 1
      %p304 = por %p302, %p303
      %p305 = scmp.ne.s32.totalorder %s296, %s297
      %p306 = scmp.eq.s32.totalorder %s34, 0
      %p307 = por %p305, %p306
      %p308 = scmp.ne.s32.totalorder %s296, %s297
      %p309 = scmp.eq.s32.totalorder %s35, 1
      %p310 = por %p308, %p309
      %p312 = scmp.ne.s32.totalorder %s297, %s311
      %p313 = scmp.eq.s32.totalorder %s35, 0
      %p314 = por %p312, %p313
      %s316 = sadd.s32 %s315, 1
      %p319 = scmp.eq.s32.totalorder %s29, 1
      %p320 = scmp.ne.s32.totalorder %s315, %s317
      %p321 = scmp.eq.s32.totalorder %s29, 0
      %p322 = por %p320, %p321
      %p323 = scmp.ne.s32.totalorder %s315, %s317
      %p324 = scmp.eq.s32.totalorder %s34, 1
      %p325 = por %p323, %p324
      %p326 = scmp.ne.s32.totalorder %s317, %s318
      %p327 = scmp.eq.s32.totalorder %s34, 0
      %p328 = por %p326, %p327
      %p329 = scmp.ne.s32.totalorder %s317, %s318
      %p330 = scmp.eq.s32.totalorder %s35, 1
      %p331 = por %p329, %p330
      %p333 = scmp.ne.s32.totalorder %s318, %s332
      %p334 = scmp.eq.s32.totalorder %s35, 0
      %p335 = por %p333, %p334
      %s337 = sadd.s32 %s336, 1
      %p340 = scmp.eq.s32.totalorder %s29, 1
      %p341 = scmp.ne.s32.totalorder %s336, %s338
      %p342 = scmp.eq.s32.totalorder %s29, 0
      %p343 = por %p341, %p342
      %p344 = scmp.ne.s32.totalorder %s336, %s338
      %p345 = scmp.eq.s32.totalorder %s34, 1
      %p346 = por %p344, %p345
      %p347 = scmp.ne.s32.totalorder %s338, %s339
      %p348 = scmp.eq.s32.totalorder %s34, 0
      %p349 = por %p347, %p348
      %p350 = scmp.ne.s32.totalorder %s338, %s339
      %p351 = scmp.eq.s32.totalorder %s35, 1
      %p352 = por %p350, %p351
      %p354 = scmp.ne.s32.totalorder %s339, %s353
      %p355 = scmp.eq.s32.totalorder %s35, 0
      %p356 = por %p354, %p355
      %s358 = sadd.s32 %s357, 1
      %p361 = scmp.eq.s32.totalorder %s29, 1
      %p362 = scmp.ne.s32.totalorder %s357, %s359
      %p363 = scmp.eq.s32.totalorder %s29, 0
      %p364 = por %p362, %p363
      %p365 = scmp.ne.s32.totalorder %s357, %s359
      %p366 = scmp.eq.s32.totalorder %s34, 1
      %p367 = por %p365, %p366
      %p368 = scmp.ne.s32.totalorder %s359, %s360
      %p369 = scmp.eq.s32.totalorder %s34, 0
      %p370 = por %p368, %p369
      %p371 = scmp.ne.s32.totalorder %s359, %s360
      %p372 = scmp.eq.s32.totalorder %s35, 1
      %p373 = por %p371, %p372
      %p375 = scmp.ne.s32.totalorder %s360, %s374
      %p376 = scmp.eq.s32.totalorder %s35, 0
      %p377 = por %p375, %p376
      %s379 = sadd.s32 %s378, 1
      %p382 = scmp.eq.s32.totalorder %s29, 1
      %p383 = scmp.ne.s32.totalorder %s378, %s380
      %p384 = scmp.eq.s32.totalorder %s29, 0
      %p385 = por %p383, %p384
      %p386 = scmp.ne.s32.totalorder %s378, %s380
      %p387 = scmp.eq.s32.totalorder %s34, 1
      %p388 = por %p386, %p387
      %p389 = scmp.ne.s32.totalorder %s380, %s381
      %p390 = scmp.eq.s32.totalorder %s34, 0
      %p391 = por %p389, %p390
      %p392 = scmp.ne.s32.totalorder %s380, %s381
      %p393 = scmp.eq.s32.totalorder %s35, 1
      %p394 = por %p392, %p393
      %p396 = scmp.ne.s32.totalorder %s381, %s395
      %p397 = scmp.eq.s32.totalorder %s35, 0
      %p398 = por %p396, %p397
      %s400 = sadd.s32 %s399, 1
      %p403 = scmp.eq.s32.totalorder %s29, 1
      %p404 = scmp.ne.s32.totalorder %s399, %s401
      %p405 = scmp.eq.s32.totalorder %s29, 0
      %p406 = por %p404, %p405
      %p407 = scmp.ne.s32.totalorder %s399, %s401
      %p408 = scmp.eq.s32.totalorder %s34, 1
      %p409 = por %p407, %p408
      %p410 = scmp.ne.s32.totalorder %s401, %s402
      %p411 = scmp.eq.s32.totalorder %s34, 0
      %p412 = por %p410, %p411
      %p413 = scmp.ne.s32.totalorder %s401, %s402
      %p414 = scmp.eq.s32.totalorder %s35, 1
      %p415 = por %p413, %p414
      %p417 = scmp.ne.s32.totalorder %s402, %s416
      %p418 = scmp.eq.s32.totalorder %s35, 0
      %p419 = por %p417, %p418
      %s421 = sadd.s32 %s420, 1
      %p424 = scmp.eq.s32.totalorder %s29, 1
      %p425 = scmp.ne.s32.totalorder %s420, %s422
      %p426 = scmp.eq.s32.totalorder %s29, 0
      %p427 = por %p425, %p426
      %p428 = scmp.ne.s32.totalorder %s420, %s422
      %p429 = scmp.eq.s32.totalorder %s34, 1
      %p430 = por %p428, %p429
      %p431 = scmp.ne.s32.totalorder %s422, %s423
      %p432 = scmp.eq.s32.totalorder %s34, 0
      %p433 = por %p431, %p432
      %p434 = scmp.ne.s32.totalorder %s422, %s423
      %p435 = scmp.eq.s32.totalorder %s35, 1
      %p436 = por %p434, %p435
      %p438 = scmp.ne.s32.totalorder %s423, %s437
      %p439 = scmp.eq.s32.totalorder %s35, 0
      %p440 = por %p438, %p439
      %s442 = sadd.s32 %s441, 1
      %p445 = scmp.eq.s32.totalorder %s29, 1
      %p446 = scmp.ne.s32.totalorder %s441, %s443
      %p447 = scmp.eq.s32.totalorder %s29, 0
      %p448 = por %p446, %p447
      %p449 = scmp.ne.s32.totalorder %s441, %s443
      %p450 = scmp.eq.s32.totalorder %s34, 1
      %p451 = por %p449, %p450
      %p452 = scmp.ne.s32.totalorder %s443, %s444
      %p453 = scmp.eq.s32.totalorder %s34, 0
      %p454 = por %p452, %p453
      %p455 = scmp.ne.s32.totalorder %s443, %s444
      %p456 = scmp.eq.s32.totalorder %s35, 1
      %p457 = por %p455, %p456
      %p459 = scmp.ne.s32.totalorder %s444, %s458
      %p460 = scmp.eq.s32.totalorder %s35, 0
      %p461 = por %p459, %p460
      %s462 = ssub.s32 %s29, %s36
      %p463 = scmp.eq.s32.totalorder %s462, 0
      %s465 = sadd.s32 %s464, 1
      %s466 = scalar_select %p463, %s464, %s465
      %p469 = pneg %p463
      %p470 = scmp.eq.s32.totalorder %s29, 1
      %p471 = por %p469, %p470
      %p472 = scmp.ne.s32.totalorder %s464, %s467
      %p473 = scmp.eq.s32.totalorder %s29, 0
      %p474 = por %p472, %p473
      %p475 = scmp.ne.s32.totalorder %s464, %s467
      %p476 = scmp.eq.s32.totalorder %s34, 1
      %p477 = por %p475, %p476
      %p478 = scmp.ne.s32.totalorder %s467, %s468
      %p479 = scmp.eq.s32.totalorder %s34, 0
      %p480 = por %p478, %p479
      %p481 = scmp.ne.s32.totalorder %s467, %s468
      %p482 = scmp.eq.s32.totalorder %s35, 1
      %p483 = por %p481, %p482
      %p485 = scmp.ne.s32.totalorder %s468, %s484
      %p486 = scmp.eq.s32.totalorder %s35, 0
      %p487 = por %p485, %p486
      %p488 = scmp.le.s32.totalorder 1, %s29
      %p489 = scmp.lt.s32.totalorder %s29, 3
      %p490 = pnand %p488, %p489
      %p491 = pneg %p490
      // Predicated region
      $region9: #{clip_ft_forward.1} parent=5 // pred_check
        _
      $region10: #{clip_ft_forward.1} parent=5 // pred_check_branch
        %493 = sbr.rel (%p490) target = $region12
      $region11: #{clip_ft_forward.1} parent=5 // pred_region
        %s494 = ssub.s32 %s29, 1
        // Predicated region
        $region13: #{clip_ft_forward.1} parent=11 // pred_check
          %p495 = pneg %p76
        $region14: #{clip_ft_forward.1} parent=11 // pred_check_branch
          %497 = sbr.rel (%p495) target = $region16
        $region15: #{clip_ft_forward.1} parent=11 // pred_region
          _
        $region16: #{clip_ft_forward.1} parent=11 // pred_fallthru
          _
        // Predicated region
        $region17: #{clip_ft_forward.1} parent=11 // pred_check
          %p498 = pneg %p97
        $region18: #{clip_ft_forward.1} parent=11 // pred_check_branch
          %500 = sbr.rel (%p498) target = $region20
        $region19: #{clip_ft_forward.1} parent=11 // pred_region
          _
        $region20: #{clip_ft_forward.1} parent=11 // pred_fallthru
          _
        // Predicated region
        $region21: #{clip_ft_forward.1} parent=11 // pred_check
          %p501 = pneg %p118
        $region22: #{clip_ft_forward.1} parent=11 // pred_check_branch
          %503 = sbr.rel (%p501) target = $region24
        $region23: #{clip_ft_forward.1} parent=11 // pred_region
          _
        $region24: #{clip_ft_forward.1} parent=11 // pred_fallthru
          _
        // Predicated region
        $region25: #{clip_ft_forward.1} parent=11 // pred_check
          %p504 = pneg %p139
        $region26: #{clip_ft_forward.1} parent=11 // pred_check_branch
          %506 = sbr.rel (%p504) target = $region28
        $region27: #{clip_ft_forward.1} parent=11 // pred_region
          _
        $region28: #{clip_ft_forward.1} parent=11 // pred_fallthru
          _
        // Predicated region
        $region29: #{clip_ft_forward.1} parent=11 // pred_check
          %p507 = pneg %p160
        $region30: #{clip_ft_forward.1} parent=11 // pred_check_branch
          %509 = sbr.rel (%p507) target = $region32
        $region31: #{clip_ft_forward.1} parent=11 // pred_region
          _
        $region32: #{clip_ft_forward.1} parent=11 // pred_fallthru
          _
        // Predicated region
        $region33: #{clip_ft_forward.1} parent=11 // pred_check
          %p510 = pneg %p181
        $region34: #{clip_ft_forward.1} parent=11 // pred_check_branch
          %512 = sbr.rel (%p510) target = $region36
        $region35: #{clip_ft_forward.1} parent=11 // pred_region
          _
        $region36: #{clip_ft_forward.1} parent=11 // pred_fallthru
          _
        // Predicated region
        $region37: #{clip_ft_forward.1} parent=11 // pred_check
          %p513 = pneg %p202
        $region38: #{clip_ft_forward.1} parent=11 // pred_check_branch
          %515 = sbr.rel (%p513) target = $region40
        $region39: #{clip_ft_forward.1} parent=11 // pred_region
          _
        $region40: #{clip_ft_forward.1} parent=11 // pred_fallthru
          _
        // Predicated region
        $region41: #{clip_ft_forward.1} parent=11 // pred_check
          %p516 = pneg %p223
        $region42: #{clip_ft_forward.1} parent=11 // pred_check_branch
          %518 = sbr.rel (%p516) target = $region44
        $region43: #{clip_ft_forward.1} parent=11 // pred_region
          _
        $region44: #{clip_ft_forward.1} parent=11 // pred_fallthru
          _
        // Predicated region
        $region45: #{clip_ft_forward.1} parent=11 // pred_check
          %p519 = pneg %p244
        $region46: #{clip_ft_forward.1} parent=11 // pred_check_branch
          %521 = sbr.rel (%p519) target = $region48
        $region47: #{clip_ft_forward.1} parent=11 // pred_region
          _
        $region48: #{clip_ft_forward.1} parent=11 // pred_fallthru
          _
        // Predicated region
        $region49: #{clip_ft_forward.1} parent=11 // pred_check
          %p522 = pneg %p265
        $region50: #{clip_ft_forward.1} parent=11 // pred_check_branch
          %524 = sbr.rel (%p522) target = $region52
        $region51: #{clip_ft_forward.1} parent=11 // pred_region
          _
        $region52: #{clip_ft_forward.1} parent=11 // pred_fallthru
          _
        // Predicated region
        $region53: #{clip_ft_forward.1} parent=11 // pred_check
          %p525 = pneg %p286
        $region54: #{clip_ft_forward.1} parent=11 // pred_check_branch
          %527 = sbr.rel (%p525) target = $region56
        $region55: #{clip_ft_forward.1} parent=11 // pred_region
          _
        $region56: #{clip_ft_forward.1} parent=11 // pred_fallthru
          _
        // Predicated region
        $region57: #{clip_ft_forward.1} parent=11 // pred_check
          %p528 = pneg %p307
        $region58: #{clip_ft_forward.1} parent=11 // pred_check_branch
          %530 = sbr.rel (%p528) target = $region60
        $region59: #{clip_ft_forward.1} parent=11 // pred_region
          _
        $region60: #{clip_ft_forward.1} parent=11 // pred_fallthru
          _
        // Predicated region
        $region61: #{clip_ft_forward.1} parent=11 // pred_check
          %p531 = pneg %p328
        $region62: #{clip_ft_forward.1} parent=11 // pred_check_branch
          %533 = sbr.rel (%p531) target = $region64
        $region63: #{clip_ft_forward.1} parent=11 // pred_region
          _
        $region64: #{clip_ft_forward.1} parent=11 // pred_fallthru
          _
        // Predicated region
        $region65: #{clip_ft_forward.1} parent=11 // pred_check
          %p534 = pneg %p349
        $region66: #{clip_ft_forward.1} parent=11 // pred_check_branch
          %536 = sbr.rel (%p534) target = $region68
        $region67: #{clip_ft_forward.1} parent=11 // pred_region
          _
        $region68: #{clip_ft_forward.1} parent=11 // pred_fallthru
          _
        // Predicated region
        $region69: #{clip_ft_forward.1} parent=11 // pred_check
          %p537 = pneg %p370
        $region70: #{clip_ft_forward.1} parent=11 // pred_check_branch
          %539 = sbr.rel (%p537) target = $region72
        $region71: #{clip_ft_forward.1} parent=11 // pred_region
          _
        $region72: #{clip_ft_forward.1} parent=11 // pred_fallthru
          _
        // Predicated region
        $region73: #{clip_ft_forward.1} parent=11 // pred_check
          %p540 = pneg %p391
        $region74: #{clip_ft_forward.1} parent=11 // pred_check_branch
          %542 = sbr.rel (%p540) target = $region76
        $region75: #{clip_ft_forward.1} parent=11 // pred_region
          _
        $region76: #{clip_ft_forward.1} parent=11 // pred_fallthru
          _
        // Predicated region
        $region77: #{clip_ft_forward.1} parent=11 // pred_check
          %p543 = pneg %p412
        $region78: #{clip_ft_forward.1} parent=11 // pred_check_branch
          %545 = sbr.rel (%p543) target = $region80
        $region79: #{clip_ft_forward.1} parent=11 // pred_region
          _
        $region80: #{clip_ft_forward.1} parent=11 // pred_fallthru
          _
        // Predicated region
        $region81: #{clip_ft_forward.1} parent=11 // pred_check
          %p546 = pneg %p433
        $region82: #{clip_ft_forward.1} parent=11 // pred_check_branch
          %548 = sbr.rel (%p546) target = $region84
        $region83: #{clip_ft_forward.1} parent=11 // pred_region
          _
        $region84: #{clip_ft_forward.1} parent=11 // pred_fallthru
          _
        // Predicated region
        $region85: #{clip_ft_forward.1} parent=11 // pred_check
          %p549 = pneg %p454
        $region86: #{clip_ft_forward.1} parent=11 // pred_check_branch
          %551 = sbr.rel (%p549) target = $region88
        $region87: #{clip_ft_forward.1} parent=11 // pred_region
          _
        $region88: #{clip_ft_forward.1} parent=11 // pred_fallthru
          _
      $region12: #{clip_ft_forward.1} parent=5 // pred_fallthru
        _
      %p552 = scmp.lt.s32.totalorder %s29, 2
      // Predicated region
      $region89: #{clip_ft_forward.1} parent=5 // pred_check
        %p553 = pneg %p552
      $region90: #{clip_ft_forward.1} parent=5 // pred_check_branch
        %555 = sbr.rel (%p553) target = $region92
      $region91: #{clip_ft_forward.1} parent=5 // pred_region
        // Predicated region
        $region93: #{clip_ft_forward.1} parent=91 // pred_check
          %p556 = pneg %p49
        $region94: #{clip_ft_forward.1} parent=91 // pred_check_branch
          %558 = sbr.rel (%p556) target = $region96
        $region95: #{clip_ft_forward.1} parent=91 // pred_region
          %p559 = scmp.lt.s32.totalorder %s29, 1
          %s560 = scalar_select %p559, %s29, 1
          %s561 = smul.addr %s560, 3
          %s562 = smul.addr %s561, 8
          %s563 = scalar_lea.vmem %s0, %s562
        $region96: #{clip_ft_forward.1} parent=91 // pred_fallthru
          _
      $region92: #{clip_ft_forward.1} parent=5 // pred_fallthru
        _
      %p564 = scmp.le.s32.totalorder 1, %s29
      %p565 = scmp.lt.s32.totalorder %s29, 3
      %p566 = pnand %p564, %p565
      %p567 = pneg %p566
      // Predicated region
      $region97: #{clip_ft_forward.1} parent=5 // pred_check
        _
      $region98: #{clip_ft_forward.1} parent=5 // pred_check_branch
        %569 = sbr.rel (%p566) target = $region100
      $region99: #{clip_ft_forward.1} parent=5 // pred_region
        %s570 = ssub.s32 %s29, 1
        %p571 = scmp.lt.s32.totalorder %s34, 1
        %s572 = scalar_select %p571, %s34, 1
        %s573 = smul.addr %s572, 3
        %s574 = smul.addr %s573, 8
        %s575 = scalar_lea.vmem %s0, %s574
        %p576 = pneg %p55
        %p577 = pneg %p52
        %p578 = pneg %p76
        %p579 = pneg %p73
        %p580 = pneg %p97
        %p581 = pneg %p94
        %p582 = pneg %p118
        %p583 = pneg %p115
        %p584 = pneg %p139
        %p585 = pneg %p136
        %p586 = pneg %p160
        %p587 = pneg %p157
        %p588 = pneg %p181
        %p589 = pneg %p178
        %p590 = pneg %p202
        %p591 = pneg %p199
        %p592 = pneg %p223
        %p593 = pneg %p220
        %p594 = pneg %p244
        %p595 = pneg %p241
        %p596 = pneg %p265
        %p597 = pneg %p262
        %p598 = pneg %p286
        %p599 = pneg %p283
        %p600 = pneg %p307
        %p601 = pneg %p304
        %p602 = pneg %p328
        %p603 = pneg %p325
        %p604 = pneg %p349
        %p605 = pneg %p346
        %p606 = pneg %p370
        %p607 = pneg %p367
        %p608 = pneg %p391
        %p609 = pneg %p388
        %p610 = pneg %p412
        %p611 = pneg %p409
        %p612 = pneg %p433
        %p613 = pneg %p430
        %p614 = pneg %p454
        %p615 = pneg %p451
        %p616 = pneg %p480
        %p617 = pneg %p477
        %s618 = sand.u32 %s467, 1
        %s619 = scalar_lea.sflag [#allocation3], %s618
        %s620 = sand.u32 %s467, 1
        %s621 = scalar_lea.vmem [#allocation2], %s620
        %p622 = scmp.lt.s32.totalorder %s34, 1
        %s623 = scalar_select %p622, %s34, 1
        %s624 = smul.addr %s623, 3
        %s625 = smul.addr %s624, 8
        %s626 = scalar_lea.vmem %s0, %s625
        %v627 = vld [vmem:[%s626] sm:$0xff]
        %v628 = vld [vmem:[%s626 + $0x8] sm:$0xff]
        %v629 = vld [vmem:[%s626 + $0x10] sm:$0x1]
        %v630 = vld [vmem:[%s1] sm:$0xff]
        %v631 = vld [vmem:[%s1 + $0x8] sm:$0xff]
        %v632 = vld [vmem:[%s1 + $0x10] sm:$0xff]
        %v633 = vld [vmem:[%s1 + $0x18] sm:$0xff]
        %v634 = vld [vmem:[%s1 + $0x20] sm:$0xff]
        %v635 = vld [vmem:[%s1 + $0x28] sm:$0xff]
        %v636 = vld [vmem:[%s1 + $0x30] sm:$0x1]
        %v637 = vld [vmem:[%s2] sm:$0xff]
        %v638 = vld [vmem:[%s2 + $0x8] sm:$0xff]
        %v639 = vld [vmem:[%s2 + $0x10] sm:$0x1]
        %vm640 = vcmask 400384
        %v642 = vsel %vm640, %v627, 0
        %v645 = vsel %vm640, %v628, 0
        %v648 = vsel %vm640, %v629, 0
        %vm650 = vcmask 1040384
        %v652 = vsel %vm650, %v636, 0
        %654 = vmatprep.subr.mxu0 0.0
        %655 = vmatpush1.msra.mxu0 %v630
        %656 = vmatprep.subr.mxu0 0.0
        %657 = vmatpush1.msra.mxu0 %v631
        %658 = vmatprep.subr.mxu0 0.0
        %659 = vmatpush1.msra.mxu0 %v632
        %660 = vmatprep.subr.mxu0 0.0
        %661 = vmatpush1.msra.mxu0 %v633
        %662 = vmatprep.subr.mxu0 0.0
        %663 = vmatpush1.msra.mxu0 %v634
        %664 = vmatprep.subr.mxu0 0.0
        %665 = vmatpush1.msra.mxu0 %v635
        %666 = vmatprep.subr.mxu0 0.0
        %667 = vmatpush1.msra.mxu0 %v652
        %668 = vmatprep.subr.mxu0 0.0
        %669 = vmatpush1.msra.mxu0 0.0
        %670 = vmatprep.subr.mxu0 0.0
        %671 = vmatpush1.msra.mxu0 0.0
        %672 = vmatprep.subr.mxu0 0.0
        %673 = vmatpush1.msra.mxu0 0.0
        %674 = vmatprep.subr.mxu0 0.0
        %675 = vmatpush1.msra.mxu0 0.0
        %676 = vmatprep.subr.mxu0 0.0
        %677 = vmatpush1.msra.mxu0 0.0
        %678 = vmatprep.subr.mxu0 0.0
        %679 = vmatpush1.msra.mxu0 0.0
        %680 = vmatprep.subr.mxu0 0.0
        %681 = vmatpush1.msra.mxu0 0.0
        %682 = vmatprep.subr.mxu0 0.0
        %683 = vmatpush1.msra.mxu0 0.0
        %684 = vmatprep.subr.mxu0 0.0
        %685 = vmatpush1.msra.mxu0 0.0
        %686 = vmatprep.subr.mxu0 0.0
        %687 = vmatpush1.msra.mxu0 0.0
        %688 = vmatprep.subr.mxu0 0.0
        %689 = vmatpush1.msra.mxu0 0.0
        %690 = vmatprep.subr.mxu0 0.0
        %691 = vmatpush1.msra.mxu0 0.0
        %692 = vmatprep.subr.mxu0 0.0
        %693 = vmatpush1.msra.mxu0 0.0
        %694 = vmatprep.subr.mxu0 0.0
        %695 = vmatpush1.msra.mxu0 0.0
        %696 = vmatprep.subr.mxu0 0.0
        %697 = vmatpush1.msra.mxu0 0.0
        %698 = vmatprep.subr.mxu0 0.0
        %699 = vmatpush1.msra.mxu0 0.0
        %700 = vmatprep.subr.mxu0 0.0
        %701 = vmatpush1.msra.mxu0 0.0
        %702 = vmatprep.subr.mxu0 0.0
        %703 = vmatpush1.msra.mxu0 0.0
        %704 = vmatprep.subr.mxu0 0.0
        %705 = vmatpush1.msra.mxu0 0.0
        %706 = vmatprep.subr.mxu0 0.0
        %707 = vmatpush1.msra.mxu0 0.0
        %708 = vmatprep.subr.mxu0 0.0
        %709 = vmatpush1.msra.mxu0 0.0
        %710 = vmatprep.subr.mxu0 0.0
        %711 = vmatpush1.msra.mxu0 0.0
        %712 = vmatprep.subr.mxu0 0.0
        %713 = vmatpush1.msra.mxu0 0.0
        %714 = vmatprep.subr.mxu0 0.0
        %715 = vmatpush1.msra.mxu0 0.0
        %716 = vmatprep.subr.mxu0 0.0
        %717 = vmatpush1.msra.mxu0 0.0
        %718 = vmatprep.mubr.f32.mxu0 0.0
        %719 = vmatmul.mubr.f32.gmra.mrb[0].mxu0 %v642
        %v720 = vpop.f32.mrb[0].mxu0
        %v721 = vadd.f32 %v637, %v720
        %v722 = vpop.f32.mrb[0].mxu0
        %723 = vmatprep.mubr.f32.mxu0 0.0
        %724 = vmatmul.mubr.f32.gmra.mrb[0].mxu0 %v645
        %v725 = vpop.f32.mrb[0].mxu0
        %v726 = vadd.f32 %v638, %v725
        %v727 = vpop.f32.mrb[0].mxu0
        %728 = vmatprep.mubr.f32.mxu0 0.0
        %729 = vmatmul.mubr.f32.gmra.mrb[0].mxu0 %v648
        %v730 = vpop.f32.mrb[0].mxu0
        %v731 = vadd.f32 %v639, %v730
        %v732 = vpop.f32.mrb[0].mxu0
        %733 = vdwg.mxu0
        %v734 = vld [vmem:[%s3] sm:$0x1]
        %v735 = vld [vmem:[%s4] sm:$0x1]
        %vm736 = vcmask 261120
        %v737 = vsel %vm736, %v721, 0.0
        %738 = vadd.xlane.f32.xlu0 %v737
        %v739 = vpop.xlane.xlu0 %738
        %v740 = vsel %vm736, %v726, 0.0
        %741 = vadd.xlane.f32.xlu0 %v740
        %v742 = vpop.xlane.xlu0 %741
        %vm743 = vcmask 253952
        %v744 = vsel %vm743, %v731, 0.0
        %745 = vadd.xlane.f32.xlu0 %v744
        %v746 = vpop.xlane.xlu0 %745
        %v747 = vrcp.pop 32.0
        %v748 = vmul.f32 %v739, %v747
        %v749 = vmul.f32 %v742, %v747
        %v750 = vmul.f32 %v746, %v747
        %v751 = vsub.f32 %v721, %v748
        %v752 = vsub.f32 %v726, %v749
        %v753 = vsub.f32 %v731, %v750
        %v754 = vmul.f32 %v751, %v751
        %v755 = vmul.f32 %v752, %v752
        %v756 = vmul.f32 %v753, %v753
        %v757 = vsel %vm736, %v754, 0.0
        %758 = vadd.xlane.f32.xlu0 %v757
        %v759 = vpop.xlane.xlu0 %758
        %v760 = vsel %vm736, %v755, 0.0
        %761 = vadd.xlane.f32.xlu0 %v760
        %v762 = vpop.xlane.xlu0 %761
        %v763 = vsel %vm743, %v756, 0.0
        %764 = vadd.xlane.f32.xlu0 %v763
        %v765 = vpop.xlane.xlu0 %764
        %v766 = vmul.f32 %v759, %v747
        %v767 = vmul.f32 %v762, %v747
        %v768 = vmul.f32 %v765, %v747
        %v769 = vadd.f32 %v766, 1e-05
        %v770 = vadd.f32 %v767, 1e-05
        %v771 = vadd.f32 %v768, 1e-05
        %v772 = vrsqrt.pop %v769
        %v773 = vrsqrt.pop %v770
        %v774 = vrsqrt.pop %v771
        %v775 = vmul.f32 %v751, %v772
        %v776 = vmul.f32 %v752, %v773
        %v777 = vmul.f32 %v753, %v774
        %v779 = vlaneseq
        %v780 = vshrl.u32 %v779, 7
        %v781 = vsub.s32 0, %v780
        %v782 = vrot.slane %v734, %v781
        %v784 = vmul.f32 %v775, %v782
        %v785 = vmul.f32 %v776, %v782
        %v786 = vmul.f32 %v777, %v782
        %v788 = vlaneseq
        %v789 = vshrl.u32 %v788, 7
        %v790 = vsub.s32 0, %v789
        %v791 = vrot.slane %v735, %v790
        %v793 = vadd.f32 %v784, %v791
        %v794 = vadd.f32 %v785, %v791
        %v795 = vadd.f32 %v786, %v791
        %v796 = vld [vmem:[%s5] sm:$0x1]
        %v797 = vld [vmem:[%s6] sm:$0x1]
        %v798 = vsel %vm736, %v793, 0.0
        %799 = vadd.xlane.f32.xlu0 %v798
        %v800 = vpop.xlane.xlu0 %799
        %v801 = vsel %vm736, %v794, 0.0
        %802 = vadd.xlane.f32.xlu0 %v801
        %v803 = vpop.xlane.xlu0 %802
        %v804 = vsel %vm743, %v795, 0.0
        %805 = vadd.xlane.f32.xlu0 %v804
        %v806 = vpop.xlane.xlu0 %805
        %v807 = vmul.f32 %v800, %v747
        %v808 = vmul.f32 %v803, %v747
        %v809 = vmul.f32 %v806, %v747
        %v810 = vsub.f32 %v793, %v807
        %v811 = vsub.f32 %v794, %v808
        %v812 = vsub.f32 %v795, %v809
        %v813 = vmul.f32 %v810, %v810
        %v814 = vmul.f32 %v811, %v811
        %v815 = vmul.f32 %v812, %v812
        %v816 = vsel %vm736, %v813, 0.0
        %817 = vadd.xlane.f32.xlu0 %v816
        %v818 = vpop.xlane.xlu0 %817
        %v819 = vsel %vm736, %v814, 0.0
        %820 = vadd.xlane.f32.xlu0 %v819
        %v821 = vpop.xlane.xlu0 %820
        %v822 = vsel %vm743, %v815, 0.0
        %823 = vadd.xlane.f32.xlu0 %v822
        %v824 = vpop.xlane.xlu0 %823
        %v825 = vmul.f32 %v818, %v747
        %v826 = vmul.f32 %v821, %v747
        %v827 = vmul.f32 %v824, %v747
        %v828 = vadd.f32 %v825, 1e-05
        %v829 = vadd.f32 %v826, 1e-05
        %v830 = vadd.f32 %v827, 1e-05
        %v831 = vrsqrt.pop %v828
        %v832 = vrsqrt.pop %v829
        %v833 = vrsqrt.pop %v830
        %v834 = vmul.f32 %v810, %v831
        %v835 = vmul.f32 %v811, %v832
        %v836 = vmul.f32 %v812, %v833
        %v838 = vlaneseq
        %v839 = vshrl.u32 %v838, 7
        %v840 = vsub.s32 0, %v839
        %v841 = vrot.slane %v796, %v840
        %v843 = vmul.f32 %v834, %v841
        %v844 = vmul.f32 %v835, %v841
        %v845 = vmul.f32 %v836, %v841
        %v847 = vlaneseq
        %v848 = vshrl.u32 %v847, 7
        %v849 = vsub.s32 0, %v848
        %v850 = vrot.slane %v797, %v849
        %v852 = vadd.f32 %v843, %v850
        %v853 = vadd.f32 %v844, %v850
        %v854 = vadd.f32 %v845, %v850
        %v855 = vld [vmem:[%s7] sm:$0xff]
        %v856 = vld [vmem:[%s7 + $0x8] sm:$0xff]
        %v857 = vld [vmem:[%s7 + $0x10] sm:$0xff]
        %v858 = vld [vmem:[%s7 + $0x18] sm:$0xff]
        %v859 = vld [vmem:[%s8] sm:$0x1]
        %v861 = vlaneseq
        %v862 = vshrl.u32 %v861, 7
        %v863 = vsub.s32 0, %v862
        %v864 = vrot.slane %v859, %v863
        %v867 = vsel %vm736, %v852, 0
        %v870 = vsel %vm736, %v853, 0
        %v873 = vsel %vm736, %v854, 0
        %875 = vmatprep.subr.mxu0 0.0
        %876 = vmatpush1.msra.mxu0 %v855
        %877 = vmatprep.subr.mxu0 0.0
        %878 = vmatpush1.msra.mxu0 %v856
        %879 = vmatprep.subr.mxu0 0.0
        %880 = vmatpush1.msra.mxu0 %v857
        %881 = vmatprep.subr.mxu0 0.0
        %882 = vmatpush1.msra.mxu0 %v858
        %883 = vmatprep.subr.mxu0 0.0
        %884 = vmatpush1.msra.mxu0 0.0
        %885 = vmatprep.subr.mxu0 0.0
        %886 = vmatpush1.msra.mxu0 0.0
        %887 = vmatprep.subr.mxu0 0.0
        %888 = vmatpush1.msra.mxu0 0.0
        %889 = vmatprep.subr.mxu0 0.0
        %890 = vmatpush1.msra.mxu0 0.0
        %891 = vmatprep.subr.mxu0 0.0
        %892 = vmatpush1.msra.mxu0 0.0
        %893 = vmatprep.subr.mxu0 0.0
        %894 = vmatpush1.msra.mxu0 0.0
        %895 = vmatprep.subr.mxu0 0.0
        %896 = vmatpush1.msra.mxu0 0.0
        %897 = vmatprep.subr.mxu0 0.0
        %898 = vmatpush1.msra.mxu0 0.0
        %899 = vmatprep.subr.mxu0 0.0
        %900 = vmatpush1.msra.mxu0 0.0
        %901 = vmatprep.subr.mxu0 0.0
        %902 = vmatpush1.msra.mxu0 0.0
        %903 = vmatprep.subr.mxu0 0.0
        %904 = vmatpush1.msra.mxu0 0.0
        %905 = vmatprep.subr.mxu0 0.0
        %906 = vmatpush1.msra.mxu0 0.0
        %907 = vmatprep.subr.mxu0 0.0
        %908 = vmatpush1.msra.mxu0 0.0
        %909 = vmatprep.subr.mxu0 0.0
        %910 = vmatpush1.msra.mxu0 0.0
        %911 = vmatprep.subr.mxu0 0.0
        %912 = vmatpush1.msra.mxu0 0.0
        %913 = vmatprep.subr.mxu0 0.0
        %914 = vmatpush1.msra.mxu0 0.0
        %915 = vmatprep.subr.mxu0 0.0
        %916 = vmatpush1.msra.mxu0 0.0
        %917 = vmatprep.subr.mxu0 0.0
        %918 = vmatpush1.msra.mxu0 0.0
        %919 = vmatprep.subr.mxu0 0.0
        %920 = vmatpush1.msra.mxu0 0.0
        %921 = vmatprep.subr.mxu0 0.0
        %922 = vmatpush1.msra.mxu0 0.0
        %923 = vmatprep.subr.mxu0 0.0
        %924 = vmatpush1.msra.mxu0 0.0
        %925 = vmatprep.subr.mxu0 0.0
        %926 = vmatpush1.msra.mxu0 0.0
        %927 = vmatprep.subr.mxu0 0.0
        %928 = vmatpush1.msra.mxu0 0.0
        %929 = vmatprep.subr.mxu0 0.0
        %930 = vmatpush1.msra.mxu0 0.0
        %931 = vmatprep.subr.mxu0 0.0
        %932 = vmatpush1.msra.mxu0 0.0
        %933 = vmatprep.subr.mxu0 0.0
        %934 = vmatpush1.msra.mxu0 0.0
        %935 = vmatprep.subr.mxu0 0.0
        %936 = vmatpush1.msra.mxu0 0.0
        %937 = vmatprep.subr.mxu0 0.0
        %938 = vmatpush1.msra.mxu0 0.0
        %939 = vmatprep.mubr.f32.mxu0 0.0
        %940 = vmatmul.mubr.f32.gmra.mrb[0].mxu0 %v867
        %v941 = vpop.f32.mrb[0].mxu0
        %v942 = vadd.f32 %v864, %v941
        %v943 = vpop.f32.mrb[0].mxu0
        %944 = vmatprep.mubr.f32.mxu0 0.0
        %945 = vmatmul.mubr.f32.gmra.mrb[0].mxu0 %v870
        %v946 = vpop.f32.mrb[0].mxu0
        %v947 = vadd.f32 %v864, %v946
        %v948 = vpop.f32.mrb[0].mxu0
        %949 = vmatprep.mubr.f32.mxu0 0.0
        %950 = vmatmul.mubr.f32.gmra.mrb[0].mxu0 %v873
        %v951 = vpop.f32.mrb[0].mxu0
        %v952 = vadd.f32 %v864, %v951
        %v953 = vpop.f32.mrb[0].mxu0
        %954 = vdwg.mxu0
        %958 = vrot.lane.b32.xlu0 %v942, 96
        %v959 = vpop.permute.xlu0 %958
        %960 = vrot.lane.b32.xlu0 %v947, 96
        %v961 = vpop.permute.xlu0 %960
        %962 = vrot.lane.b32.xlu0 %v952, 96
        %v963 = vpop.permute.xlu0 %962
        %vm964 = vcmask 64512
        %v965 = vsel %vm964, %v942, 0
        %v967 = vsel %vm964, %v947, 0
        %v969 = vsel %vm964, %v952, 0
        %v971 = vsel %vm964, %v959, 0
        %v973 = vsel %vm964, %v961, 0
        %v975 = vsel %vm964, %v963, 0
        %977 = vmatprep.subr.mxu0 0.0
        %978 = vmatpush1.xpose.msra.mxu0 %v971
        %979 = vmatprep.subr.mxu0 0.0
        %980 = vmatpush1.xpose.msra.mxu0 %v973
        %981 = vmatprep.subr.mxu0 0.0
        %982 = vmatpush1.xpose.msra.mxu0 %v975
        %983 = vmatprep.subr.mxu0 0.0
        %984 = vmatpush1.xpose.msra.mxu0 0.0
        %985 = vmatprep.subr.mxu0 0.0
        %986 = vmatpush1.xpose.msra.mxu0 0.0
        %987 = vmatprep.subr.mxu0 0.0
        %988 = vmatpush1.xpose.msra.mxu0 0.0
        %989 = vmatprep.subr.mxu0 0.0
        %990 = vmatpush1.xpose.msra.mxu0 0.0
        %991 = vmatprep.subr.mxu0 0.0
        %992 = vmatpush1.xpose.msra.mxu0 0.0
        %993 = vmatprep.subr.mxu0 0.0
        %994 = vmatpush1.xpose.msra.mxu0 0.0
        %995 = vmatprep.subr.mxu0 0.0
        %996 = vmatpush1.xpose.msra.mxu0 0.0
        %997 = vmatprep.subr.mxu0 0.0
        %998 = vmatpush1.xpose.msra.mxu0 0.0
        %999 = vmatprep.subr.mxu0 0.0
        %1000 = vmatpush1.xpose.msra.mxu0 0.0
        %1001 = vmatprep.subr.mxu0 0.0
        %1002 = vmatpush1.xpose.msra.mxu0 0.0
        %1003 = vmatprep.subr.mxu0 0.0
        %1004 = vmatpush1.xpose.msra.mxu0 0.0
        %1005 = vmatprep.subr.mxu0 0.0
        %1006 = vmatpush1.xpose.msra.mxu0 0.0
        %1007 = vmatprep.subr.mxu0 0.0
        %1008 = vmatpush1.xpose.msra.mxu0 0.0
        %1009 = vmatprep.subr.mxu0 0.0
        %1010 = vmatpush1.xpose.msra.mxu0 0.0
        %1011 = vmatprep.subr.mxu0 0.0
        %1012 = vmatpush1.xpose.msra.mxu0 0.0
        %1013 = vmatprep.subr.mxu0 0.0
        %1014 = vmatpush1.xpose.msra.mxu0 0.0
        %1015 = vmatprep.subr.mxu0 0.0
        %1016 = vmatpush1.xpose.msra.mxu0 0.0
        %1017 = vmatprep.subr.mxu0 0.0
        %1018 = vmatpush1.xpose.msra.mxu0 0.0
        %1019 = vmatprep.subr.mxu0 0.0
        %1020 = vmatpush1.xpose.msra.mxu0 0.0
        %1021 = vmatprep.subr.mxu0 0.0
        %1022 = vmatpush1.xpose.msra.mxu0 0.0
        %1023 = vmatprep.subr.mxu0 0.0
        %1024 = vmatpush1.xpose.msra.mxu0 0.0
        %1025 = vmatprep.subr.mxu0 0.0
        %1026 = vmatpush1.xpose.msra.mxu0 0.0
        %1027 = vmatprep.subr.mxu0 0.0
        %1028 = vmatpush1.xpose.msra.mxu0 0.0
        %1029 = vmatprep.subr.mxu0 0.0
        %1030 = vmatpush1.xpose.msra.mxu0 0.0
        %1031 = vmatprep.subr.mxu0 0.0
        %1032 = vmatpush1.xpose.msra.mxu0 0.0
        %1033 = vmatprep.subr.mxu0 0.0
        %1034 = vmatpush1.xpose.msra.mxu0 0.0
        %1035 = vmatprep.subr.mxu0 0.0
        %1036 = vmatpush1.xpose.msra.mxu0 0.0
        %1037 = vmatprep.subr.mxu0 0.0
        %1038 = vmatpush1.xpose.msra.mxu0 0.0
        %1039 = vmatprep.subr.mxu0 0.0
        %1040 = vmatpush1.xpose.msra.mxu0 0.0
        %1041 = vmatprep.mubr.f32.mxu0 0.0
        %1042 = vmatmul.mubr.f32.gmra.mrb[0].mxu0 %v965
        %v1043 = vpop.f32.mrb[0].mxu0
        %v1044 = vadd.f32 0.0, %v1043
        %v1045 = vpop.f32.mrb[0].mxu0
        %1046 = vmatprep.mubr.f32.mxu0 0.0
        %1047 = vmatmul.mubr.f32.gmra.mrb[0].mxu0 %v967
        %v1048 = vpop.f32.mrb[0].mxu0
        %v1049 = vadd.f32 0.0, %v1048
        %v1050 = vpop.f32.mrb[0].mxu0
        %1051 = vmatprep.mubr.f32.mxu0 0.0
        %1052 = vmatmul.mubr.f32.gmra.mrb[0].mxu0 %v969
        %v1053 = vpop.f32.mrb[0].mxu0
        %v1054 = vadd.f32 0.0, %v1053
        %v1055 = vpop.f32.mrb[0].mxu0
        %1056 = vdwg.mxu0
        %vm1057 = vcmask 138240
        %v1058 = vsel %vm1057, %v1044, -inf
        %1059 = vmax.xlane.f32.xlu0 %v1058
        %v1060 = vpop.xlane.xlu0 %1059
        %v1061 = vsel %vm1057, %v1049, -inf
        %1062 = vmax.xlane.f32.xlu0 %v1061
        %v1063 = vpop.xlane.xlu0 %1062
        %vm1064 = vcmask 131072
        %v1065 = vsel %vm1064, %v1054, -inf
        %1066 = vmax.xlane.f32.xlu0 %v1065
        %v1067 = vpop.xlane.xlu0 %1066
        %v1068 = vsub.f32 %v1044, %v1060
        %v1069 = vsub.f32 %v1049, %v1063
        %v1070 = vsub.f32 %v1054, %v1067
        %v1071 = vmul.f32 %v1068, 1.442695
        %v1072 = vpow.pop %v1071
        %v1073 = vmul.f32 %v1069, 1.442695
        %v1074 = vpow.pop %v1073
        %v1075 = vmul.f32 %v1070, 1.442695
        %v1076 = vpow.pop %v1075
        %v1077 = vsel %vm1057, %v1072, 0.0
        %1078 = vadd.xlane.f32.xlu0 %v1077
        %v1079 = vpop.xlane.xlu0 %1078
        %v1080 = vsel %vm1057, %v1074, 0.0
        %1081 = vadd.xlane.f32.xlu0 %v1080
        %v1082 = vpop.xlane.xlu0 %1081
        %v1083 = vsel %vm1064, %v1076, 0.0
        %1084 = vadd.xlane.f32.xlu0 %v1083
        %v1085 = vpop.xlane.xlu0 %1084
        %v1086 = vrcp.pop %v1079
        %v1087 = vrcp.pop %v1082
        %v1088 = vrcp.pop %v1085
        %v1089 = vmul.f32 %v1072, %v1086
        %v1090 = vmul.f32 %v1074, %v1087
        %v1091 = vmul.f32 %v1076, %v1088
        %1092 = vrot.lane.b32.xlu0 %v942, 64
        %v1093 = vpop.permute.xlu0 %1092
        %1094 = vrot.lane.b32.xlu0 %v947, 64
        %v1095 = vpop.permute.xlu0 %1094
        %1096 = vrot.lane.b32.xlu0 %v952, 64
        %v1097 = vpop.permute.xlu0 %1096
        %v1101 = vsel %vm1057, %v1089, 0
        %v1104 = vsel %vm1057, %v1090, 0
        %v1107 = vsel %vm1057, %v1091, 0
        %v1109 = vsel %vm650, %v1097, 0
        %1111 = vmatprep.subr.mxu0 0.0
        %1112 = vmatpush1.msra.mxu0 %v1093
        %1113 = vmatprep.subr.mxu0 0.0
        %1114 = vmatpush1.msra.mxu0 %v1095
        %1115 = vmatprep.subr.mxu0 0.0
        %1116 = vmatpush1.msra.mxu0 %v1109
        %1117 = vmatprep.subr.mxu0 0.0
        %1118 = vmatpush1.msra.mxu0 0.0
        %1119 = vmatprep.subr.mxu0 0.0
        %1120 = vmatpush1.msra.mxu0 0.0
        %1121 = vmatprep.subr.mxu0 0.0
        %1122 = vmatpush1.msra.mxu0 0.0
        %1123 = vmatprep.subr.mxu0 0.0
        %1124 = vmatpush1.msra.mxu0 0.0
        %1125 = vmatprep.subr.mxu0 0.0
        %1126 = vmatpush1.msra.mxu0 0.0
        %1127 = vmatprep.subr.mxu0 0.0
        %1128 = vmatpush1.msra.mxu0 0.0
        %1129 = vmatprep.subr.mxu0 0.0
        %1130 = vmatpush1.msra.mxu0 0.0
        %1131 = vmatprep.subr.mxu0 0.0
        %1132 = vmatpush1.msra.mxu0 0.0
        %1133 = vmatprep.subr.mxu0 0.0
        %1134 = vmatpush1.msra.mxu0 0.0
        %1135 = vmatprep.subr.mxu0 0.0
        %1136 = vmatpush1.msra.mxu0 0.0
        %1137 = vmatprep.subr.mxu0 0.0
        %1138 = vmatpush1.msra.mxu0 0.0
        %1139 = vmatprep.subr.mxu0 0.0
        %1140 = vmatpush1.msra.mxu0 0.0
        %1141 = vmatprep.subr.mxu0 0.0
        %1142 = vmatpush1.msra.mxu0 0.0
        %1143 = vmatprep.subr.mxu0 0.0
        %1144 = vmatpush1.msra.mxu0 0.0
        %1145 = vmatprep.subr.mxu0 0.0
        %1146 = vmatpush1.msra.mxu0 0.0
        %1147 = vmatprep.subr.mxu0 0.0
        %1148 = vmatpush1.msra.mxu0 0.0
        %1149 = vmatprep.subr.mxu0 0.0
        %1150 = vmatpush1.msra.mxu0 0.0
        %1151 = vmatprep.subr.mxu0 0.0
        %1152 = vmatpush1.msra.mxu0 0.0
        %1153 = vmatprep.subr.mxu0 0.0
        %1154 = vmatpush1.msra.mxu0 0.0
        %1155 = vmatprep.subr.mxu0 0.0
        %1156 = vmatpush1.msra.mxu0 0.0
        %1157 = vmatprep.subr.mxu0 0.0
        %1158 = vmatpush1.msra.mxu0 0.0
        %1159 = vmatprep.subr.mxu0 0.0
        %1160 = vmatpush1.msra.mxu0 0.0
        %1161 = vmatprep.subr.mxu0 0.0
        %1162 = vmatpush1.msra.mxu0 0.0
        %1163 = vmatprep.subr.mxu0 0.0
        %1164 = vmatpush1.msra.mxu0 0.0
        %1165 = vmatprep.subr.mxu0 0.0
        %1166 = vmatpush1.msra.mxu0 0.0
        %1167 = vmatprep.subr.mxu0 0.0
        %1168 = vmatpush1.msra.mxu0 0.0
        %1169 = vmatprep.subr.mxu0 0.0
        %1170 = vmatpush1.msra.mxu0 0.0
        %1171 = vmatprep.subr.mxu0 0.0
        %1172 = vmatpush1.msra.mxu0 0.0
        %1173 = vmatprep.subr.mxu0 0.0
        %1174 = vmatpush1.msra.mxu0 0.0
        %1175 = vmatprep.mubr.f32.mxu0 0.0
        %1176 = vmatmul.mubr.f32.gmra.mrb[0].mxu0 %v1101
        %v1177 = vpop.f32.mrb[0].mxu0
        %v1178 = vadd.f32 0.0, %v1177
        %v1179 = vpop.f32.mrb[0].mxu0
        %1180 = vmatprep.mubr.f32.mxu0 0.0
        %1181 = vmatmul.mubr.f32.gmra.mrb[0].mxu0 %v1104
        %v1182 = vpop.f32.mrb[0].mxu0
        %v1183 = vadd.f32 0.0, %v1182
        %v1184 = vpop.f32.mrb[0].mxu0
        %1185 = vmatprep.mubr.f32.mxu0 0.0
        %1186 = vmatmul.mubr.f32.gmra.mrb[0].mxu0 %v1107
        %v1187 = vpop.f32.mrb[0].mxu0
        %v1188 = vadd.f32 0.0, %v1187
        %v1189 = vpop.f32.mrb[0].mxu0
        %1190 = vdwg.mxu0
        %1191 = vrot.lane.b32.xlu0 %v942, 120
        %v1192 = vpop.permute.xlu0 %1191
        %1193 = vrot.lane.b32.xlu0 %v947, 120
        %v1194 = vpop.permute.xlu0 %1193
        %1195 = vrot.lane.b32.xlu0 %v952, 120
        %v1196 = vpop.permute.xlu0 %1195
        %1197 = vrot.lane.b32.xlu0 %v942, 88
        %v1198 = vpop.permute.xlu0 %1197
        %1199 = vrot.lane.b32.xlu0 %v947, 88
        %v1200 = vpop.permute.xlu0 %1199
        %1201 = vrot.lane.b32.xlu0 %v952, 88
        %v1202 = vpop.permute.xlu0 %1201
        %v1203 = vsel %vm964, %v1192, 0
        %v1205 = vsel %vm964, %v1194, 0
        %v1207 = vsel %vm964, %v1196, 0
        %v1209 = vsel %vm964, %v1198, 0
        %v1211 = vsel %vm964, %v1200, 0
        %v1213 = vsel %vm964, %v1202, 0
        %1215 = vmatprep.subr.mxu0 0.0
        %1216 = vmatpush1.xpose.msra.mxu0 %v1209
        %1217 = vmatprep.subr.mxu0 0.0
        %1218 = vmatpush1.xpose.msra.mxu0 %v1211
        %1219 = vmatprep.subr.mxu0 0.0
        %1220 = vmatpush1.xpose.msra.mxu0 %v1213
        %1221 = vmatprep.subr.mxu0 0.0
        %1222 = vmatpush1.xpose.msra.mxu0 0.0
        %1223 = vmatprep.subr.mxu0 0.0
        %1224 = vmatpush1.xpose.msra.mxu0 0.0
        %1225 = vmatprep.subr.mxu0 0.0
        %1226 = vmatpush1.xpose.msra.mxu0 0.0
        %1227 = vmatprep.subr.mxu0 0.0
        %1228 = vmatpush1.xpose.msra.mxu0 0.0
        %1229 = vmatprep.subr.mxu0 0.0
        %1230 = vmatpush1.xpose.msra.mxu0 0.0
        %1231 = vmatprep.subr.mxu0 0.0
        %1232 = vmatpush1.xpose.msra.mxu0 0.0
        %1233 = vmatprep.subr.mxu0 0.0
        %1234 = vmatpush1.xpose.msra.mxu0 0.0
        %1235 = vmatprep.subr.mxu0 0.0
        %1236 = vmatpush1.xpose.msra.mxu0 0.0
        %1237 = vmatprep.subr.mxu0 0.0
        %1238 = vmatpush1.xpose.msra.mxu0 0.0
        %1239 = vmatprep.subr.mxu0 0.0
        %1240 = vmatpush1.xpose.msra.mxu0 0.0
        %1241 = vmatprep.subr.mxu0 0.0
        %1242 = vmatpush1.xpose.msra.mxu0 0.0
        %1243 = vmatprep.subr.mxu0 0.0
        %1244 = vmatpush1.xpose.msra.mxu0 0.0
        %1245 = vmatprep.subr.mxu0 0.0
        %1246 = vmatpush1.xpose.msra.mxu0 0.0
        %1247 = vmatprep.subr.mxu0 0.0
        %1248 = vmatpush1.xpose.msra.mxu0 0.0
        %1249 = vmatprep.subr.mxu0 0.0
        %1250 = vmatpush1.xpose.msra.mxu0 0.0
        %1251 = vmatprep.subr.mxu0 0.0
        %1252 = vmatpush1.xpose.msra.mxu0 0.0
        %1253 = vmatprep.subr.mxu0 0.0
        %1254 = vmatpush1.xpose.msra.mxu0 0.0
        %1255 = vmatprep.subr.mxu0 0.0
        %1256 = vmatpush1.xpose.msra.mxu0 0.0
        %1257 = vmatprep.subr.mxu0 0.0
        %1258 = vmatpush1.xpose.msra.mxu0 0.0
        %1259 = vmatprep.subr.mxu0 0.0
        %1260 = vmatpush1.xpose.msra.mxu0 0.0
        %1261 = vmatprep.subr.mxu0 0.0
        %1262 = vmatpush1.xpose.msra.mxu0 0.0
        %1263 = vmatprep.subr.mxu0 0.0
        %1264 = vmatpush1.xpose.msra.mxu0 0.0
        %1265 = vmatprep.subr.mxu0 0.0
        %1266 = vmatpush1.xpose.msra.mxu0 0.0
        %1267 = vmatprep.subr.mxu0 0.0
        %1268 = vmatpush1.xpose.msra.mxu0 0.0
        %1269 = vmatprep.subr.mxu0 0.0
        %1270 = vmatpush1.xpose.msra.mxu0 0.0
        %1271 = vmatprep.subr.mxu0 0.0
        %1272 = vmatpush1.xpose.msra.mxu0 0.0
        %1273 = vmatprep.subr.mxu0 0.0
        %1274 = vmatpush1.xpose.msra.mxu0 0.0
        %1275 = vmatprep.subr.mxu0 0.0
        %1276 = vmatpush1.xpose.msra.mxu0 0.0
        %1277 = vmatprep.subr.mxu0 0.0
        %1278 = vmatpush1.xpose.msra.mxu0 0.0
        %1279 = vmatprep.mubr.f32.mxu0 0.0
        %1280 = vmatmul.mubr.f32.gmra.mrb[0].mxu0 %v1203
        %v1281 = vpop.f32.mrb[0].mxu0
        %v1282 = vadd.f32 0.0, %v1281
        %v1283 = vpop.f32.mrb[0].mxu0
        %1284 = vmatprep.mubr.f32.mxu0 0.0
        %1285 = vmatmul.mubr.f32.gmra.mrb[0].mxu0 %v1205
        %v1286 = vpop.f32.mrb[0].mxu0
        %v1287 = vadd.f32 0.0, %v1286
        %v1288 = vpop.f32.mrb[0].mxu0
        %1289 = vmatprep.mubr.f32.mxu0 0.0
        %1290 = vmatmul.mubr.f32.gmra.mrb[0].mxu0 %v1207
        %v1291 = vpop.f32.mrb[0].mxu0
        %v1292 = vadd.f32 0.0, %v1291
        %v1293 = vpop.f32.mrb[0].mxu0
        %1294 = vdwg.mxu0
        %v1295 = vsel %vm1057, %v1282, -inf
        %1296 = vmax.xlane.f32.xlu0 %v1295
        %v1297 = vpop.xlane.xlu0 %1296
        %v1298 = vsel %vm1057, %v1287, -inf
        %1299 = vmax.xlane.f32.xlu0 %v1298
        %v1300 = vpop.xlane.xlu0 %1299
        %v1301 = vsel %vm1064, %v1292, -inf
        %1302 = vmax.xlane.f32.xlu0 %v1301
        %v1303 = vpop.xlane.xlu0 %1302
        %v1304 = vsub.f32 %v1282, %v1297
        %v1305 = vsub.f32 %v1287, %v1300
        %v1306 = vsub.f32 %v1292, %v1303
        %v1307 = vmul.f32 %v1304, 1.442695
        %v1308 = vpow.pop %v1307
        %v1309 = vmul.f32 %v1305, 1.442695
        %v1310 = vpow.pop %v1309
        %v1311 = vmul.f32 %v1306, 1.442695
        %v1312 = vpow.pop %v1311
        %v1313 = vsel %vm1057, %v1308, 0.0
        %1314 = vadd.xlane.f32.xlu0 %v1313
        %v1315 = vpop.xlane.xlu0 %1314
        %v1316 = vsel %vm1057, %v1310, 0.0
        %1317 = vadd.xlane.f32.xlu0 %v1316
        %v1318 = vpop.xlane.xlu0 %1317
        %v1319 = vsel %vm1064, %v1312, 0.0
        %1320 = vadd.xlane.f32.xlu0 %v1319
        %v1321 = vpop.xlane.xlu0 %1320
        %v1322 = vrcp.pop %v1315
        %v1323 = vrcp.pop %v1318
        %v1324 = vrcp.pop %v1321
        %v1325 = vmul.f32 %v1308, %v1322
        %v1326 = vmul.f32 %v1310, %v1323
        %v1327 = vmul.f32 %v1312, %v1324
        %1328 = vrot.lane.b32.xlu0 %v942, 56
        %v1329 = vpop.permute.xlu0 %1328
        %1330 = vrot.lane.b32.xlu0 %v947, 56
        %v1331 = vpop.permute.xlu0 %1330
        %1332 = vrot.lane.b32.xlu0 %v952, 56
        %v1333 = vpop.permute.xlu0 %1332
        %v1337 = vsel %vm1057, %v1325, 0
        %v1340 = vsel %vm1057, %v1326, 0
        %v1343 = vsel %vm1057, %v1327, 0
        %v1345 = vsel %vm650, %v1333, 0
        %1347 = vmatprep.subr.mxu0 0.0
        %1348 = vmatpush1.msra.mxu0 %v1329
        %1349 = vmatprep.subr.mxu0 0.0
        %1350 = vmatpush1.msra.mxu0 %v1331
        %1351 = vmatprep.subr.mxu0 0.0
        %1352 = vmatpush1.msra.mxu0 %v1345
        %1353 = vmatprep.subr.mxu0 0.0
        %1354 = vmatpush1.msra.mxu0 0.0
        %1355 = vmatprep.subr.mxu0 0.0
        %1356 = vmatpush1.msra.mxu0 0.0
        %1357 = vmatprep.subr.mxu0 0.0
        %1358 = vmatpush1.msra.mxu0 0.0
        %1359 = vmatprep.subr.mxu0 0.0
        %1360 = vmatpush1.msra.mxu0 0.0
        %1361 = vmatprep.subr.mxu0 0.0
        %1362 = vmatpush1.msra.mxu0 0.0
        %1363 = vmatprep.subr.mxu0 0.0
        %1364 = vmatpush1.msra.mxu0 0.0
        %1365 = vmatprep.subr.mxu0 0.0
        %1366 = vmatpush1.msra.mxu0 0.0
        %1367 = vmatprep.subr.mxu0 0.0
        %1368 = vmatpush1.msra.mxu0 0.0
        %1369 = vmatprep.subr.mxu0 0.0
        %1370 = vmatpush1.msra.mxu0 0.0
        %1371 = vmatprep.subr.mxu0 0.0
        %1372 = vmatpush1.msra.mxu0 0.0
        %1373 = vmatprep.subr.mxu0 0.0
        %1374 = vmatpush1.msra.mxu0 0.0
        %1375 = vmatprep.subr.mxu0 0.0
        %1376 = vmatpush1.msra.mxu0 0.0
        %1377 = vmatprep.subr.mxu0 0.0
        %1378 = vmatpush1.msra.mxu0 0.0
        %1379 = vmatprep.subr.mxu0 0.0
        %1380 = vmatpush1.msra.mxu0 0.0
        %1381 = vmatprep.subr.mxu0 0.0
        %1382 = vmatpush1.msra.mxu0 0.0
        %1383 = vmatprep.subr.mxu0 0.0
        %1384 = vmatpush1.msra.mxu0 0.0
        %1385 = vmatprep.subr.mxu0 0.0
        %1386 = vmatpush1.msra.mxu0 0.0
        %1387 = vmatprep.subr.mxu0 0.0
        %1388 = vmatpush1.msra.mxu0 0.0
        %1389 = vmatprep.subr.mxu0 0.0
        %1390 = vmatpush1.msra.mxu0 0.0
        %1391 = vmatprep.subr.mxu0 0.0
        %1392 = vmatpush1.msra.mxu0 0.0
        %1393 = vmatprep.subr.mxu0 0.0
        %1394 = vmatpush1.msra.mxu0 0.0
        %1395 = vmatprep.subr.mxu0 0.0
        %1396 = vmatpush1.msra.mxu0 0.0
        %1397 = vmatprep.subr.mxu0 0.0
        %1398 = vmatpush1.msra.mxu0 0.0
        %1399 = vmatprep.subr.mxu0 0.0
        %1400 = vmatpush1.msra.mxu0 0.0
        %1401 = vmatprep.subr.mxu0 0.0
        %1402 = vmatpush1.msra.mxu0 0.0
        %1403 = vmatprep.subr.mxu0 0.0
        %1404 = vmatpush1.msra.mxu0 0.0
        %1405 = vmatprep.subr.mxu0 0.0
        %1406 = vmatpush1.msra.mxu0 0.0
        %1407 = vmatprep.subr.mxu0 0.0
        %1408 = vmatpush1.msra.mxu0 0.0
        %1409 = vmatprep.subr.mxu0 0.0
        %1410 = vmatpush1.msra.mxu0 0.0
        %1411 = vmatprep.mubr.f32.mxu0 0.0
        %1412 = vmatmul.mubr.f32.gmra.mrb[0].mxu0 %v1337
        %v1413 = vpop.f32.mrb[0].mxu0
        %v1414 = vadd.f32 0.0, %v1413
        %v1415 = vpop.f32.mrb[0].mxu0
        %1416 = vmatprep.mubr.f32.mxu0 0.0
        %1417 = vmatmul.mubr.f32.gmra.mrb[0].mxu0 %v1340
        %v1418 = vpop.f32.mrb[0].mxu0
        %v1419 = vadd.f32 0.0, %v1418
        %v1420 = vpop.f32.mrb[0].mxu0
        %1421 = vmatprep.mubr.f32.mxu0 0.0
        %1422 = vmatmul.mubr.f32.gmra.mrb[0].mxu0 %v1343
        %v1423 = vpop.f32.mrb[0].mxu0
        %v1424 = vadd.f32 0.0, %v1423
        %v1425 = vpop.f32.mrb[0].mxu0
        %1426 = vdwg.mxu0
        %1427 = vrot.lane.b32.xlu0 %v942, 112
        %v1428 = vpop.permute.xlu0 %1427
        %1429 = vrot.lane.b32.xlu0 %v947, 112
        %v1430 = vpop.permute.xlu0 %1429
        %1431 = vrot.lane.b32.xlu0 %v952, 112
        %v1432 = vpop.permute.xlu0 %1431
        %1433 = vrot.lane.b32.xlu0 %v942, 80
        %v1434 = vpop.permute.xlu0 %1433
        %1435 = vrot.lane.b32.xlu0 %v947, 80
        %v1436 = vpop.permute.xlu0 %1435
        %1437 = vrot.lane.b32.xlu0 %v952, 80
        %v1438 = vpop.permute.xlu0 %1437
        %v1439 = vsel %vm964, %v1428, 0
        %v1441 = vsel %vm964, %v1430, 0
        %v1443 = vsel %vm964, %v1432, 0
        %v1445 = vsel %vm964, %v1434, 0
        %v1447 = vsel %vm964, %v1436, 0
        %v1449 = vsel %vm964, %v1438, 0
        %1451 = vmatprep.subr.mxu0 0.0
        %1452 = vmatpush1.xpose.msra.mxu0 %v1445
        %1453 = vmatprep.subr.mxu0 0.0
        %1454 = vmatpush1.xpose.msra.mxu0 %v1447
        %1455 = vmatprep.subr.mxu0 0.0
        %1456 = vmatpush1.xpose.msra.mxu0 %v1449
        %1457 = vmatprep.subr.mxu0 0.0
        %1458 = vmatpush1.xpose.msra.mxu0 0.0
        %1459 = vmatprep.subr.mxu0 0.0
        %1460 = vmatpush1.xpose.msra.mxu0 0.0
        %1461 = vmatprep.subr.mxu0 0.0
        %1462 = vmatpush1.xpose.msra.mxu0 0.0
        %1463 = vmatprep.subr.mxu0 0.0
        %1464 = vmatpush1.xpose.msra.mxu0 0.0
        %1465 = vmatprep.subr.mxu0 0.0
        %1466 = vmatpush1.xpose.msra.mxu0 0.0
        %1467 = vmatprep.subr.mxu0 0.0
        %1468 = vmatpush1.xpose.msra.mxu0 0.0
        %1469 = vmatprep.subr.mxu0 0.0
        %1470 = vmatpush1.xpose.msra.mxu0 0.0
        %1471 = vmatprep.subr.mxu0 0.0
        %1472 = vmatpush1.xpose.msra.mxu0 0.0
        %1473 = vmatprep.subr.mxu0 0.0
        %1474 = vmatpush1.xpose.msra.mxu0 0.0
        %1475 = vmatprep.subr.mxu0 0.0
        %1476 = vmatpush1.xpose.msra.mxu0 0.0
        %1477 = vmatprep.subr.mxu0 0.0
        %1478 = vmatpush1.xpose.msra.mxu0 0.0
        %1479 = vmatprep.subr.mxu0 0.0
        %1480 = vmatpush1.xpose.msra.mxu0 0.0
        %1481 = vmatprep.subr.mxu0 0.0
        %1482 = vmatpush1.xpose.msra.mxu0 0.0
        %1483 = vmatprep.subr.mxu0 0.0
        %1484 = vmatpush1.xpose.msra.mxu0 0.0
        %1485 = vmatprep.subr.mxu0 0.0
        %1486 = vmatpush1.xpose.msra.mxu0 0.0
        %1487 = vmatprep.subr.mxu0 0.0
        %1488 = vmatpush1.xpose.msra.mxu0 0.0
        %1489 = vmatprep.subr.mxu0 0.0
        %1490 = vmatpush1.xpose.msra.mxu0 0.0
        %1491 = vmatprep.subr.mxu0 0.0
        %1492 = vmatpush1.xpose.msra.mxu0 0.0
        %1493 = vmatprep.subr.mxu0 0.0
        %1494 = vmatpush1.xpose.msra.mxu0 0.0
        %1495 = vmatprep.subr.mxu0 0.0
        %1496 = vmatpush1.xpose.msra.mxu0 0.0
        %1497 = vmatprep.subr.mxu0 0.0
        %1498 = vmatpush1.xpose.msra.mxu0 0.0
        %1499 = vmatprep.subr.mxu0 0.0
        %1500 = vmatpush1.xpose.msra.mxu0 0.0
        %1501 = vmatprep.subr.mxu0 0.0
        %1502 = vmatpush1.xpose.msra.mxu0 0.0
        %1503 = vmatprep.subr.mxu0 0.0
        %1504 = vmatpush1.xpose.msra.mxu0 0.0
        %1505 = vmatprep.subr.mxu0 0.0
        %1506 = vmatpush1.xpose.msra.mxu0 0.0
        %1507 = vmatprep.subr.mxu0 0.0
        %1508 = vmatpush1.xpose.msra.mxu0 0.0
        %1509 = vmatprep.subr.mxu0 0.0
        %1510 = vmatpush1.xpose.msra.mxu0 0.0
        %1511 = vmatprep.subr.mxu0 0.0
        %1512 = vmatpush1.xpose.msra.mxu0 0.0
        %1513 = vmatprep.subr.mxu0 0.0
        %1514 = vmatpush1.xpose.msra.mxu0 0.0
        %1515 = vmatprep.mubr.f32.mxu0 0.0
        %1516 = vmatmul.mubr.f32.gmra.mrb[0].mxu0 %v1439
        %v1517 = vpop.f32.mrb[0].mxu0
        %v1518 = vadd.f32 0.0, %v1517
        %v1519 = vpop.f32.mrb[0].mxu0
        %1520 = vmatprep.mubr.f32.mxu0 0.0
        %1521 = vmatmul.mubr.f32.gmra.mrb[0].mxu0 %v1441
        %v1522 = vpop.f32.mrb[0].mxu0
        %v1523 = vadd.f32 0.0, %v1522
        %v1524 = vpop.f32.mrb[0].mxu0
        %1525 = vmatprep.mubr.f32.mxu0 0.0
        %1526 = vmatmul.mubr.f32.gmra.mrb[0].mxu0 %v1443
        %v1527 = vpop.f32.mrb[0].mxu0
        %v1528 = vadd.f32 0.0, %v1527
        %v1529 = vpop.f32.mrb[0].mxu0
        %1530 = vdwg.mxu0
        %v1531 = vsel %vm1057, %v1518, -inf
        %1532 = vmax.xlane.f32.xlu0 %v1531
        %v1533 = vpop.xlane.xlu0 %1532
        %v1534 = vsel %vm1057, %v1523, -inf
        %1535 = vmax.xlane.f32.xlu0 %v1534
        %v1536 = vpop.xlane.xlu0 %1535
        %v1537 = vsel %vm1064, %v1528, -inf
        %1538 = vmax.xlane.f32.xlu0 %v1537
        %v1539 = vpop.xlane.xlu0 %1538
        %v1540 = vsub.f32 %v1518, %v1533
        %v1541 = vsub.f32 %v1523, %v1536
        %v1542 = vsub.f32 %v1528, %v1539
        %v1543 = vmul.f32 %v1540, 1.442695
        %v1544 = vpow.pop %v1543
        %v1545 = vmul.f32 %v1541, 1.442695
        %v1546 = vpow.pop %v1545
        %v1547 = vmul.f32 %v1542, 1.442695
        %v1548 = vpow.pop %v1547
        %v1549 = vsel %vm1057, %v1544, 0.0
        %1550 = vadd.xlane.f32.xlu0 %v1549
        %v1551 = vpop.xlane.xlu0 %1550
        %v1552 = vsel %vm1057, %v1546, 0.0
        %1553 = vadd.xlane.f32.xlu0 %v1552
        %v1554 = vpop.xlane.xlu0 %1553
        %v1555 = vsel %vm1064, %v1548, 0.0
        %1556 = vadd.xlane.f32.xlu0 %v1555
        %v1557 = vpop.xlane.xlu0 %1556
        %v1558 = vrcp.pop %v1551
        %v1559 = vrcp.pop %v1554
        %v1560 = vrcp.pop %v1557
        %v1561 = vmul.f32 %v1544, %v1558
        %v1562 = vmul.f32 %v1546, %v1559
        %v1563 = vmul.f32 %v1548, %v1560
        %1564 = vrot.lane.b32.xlu0 %v942, 48
        %v1565 = vpop.permute.xlu0 %1564
        %1566 = vrot.lane.b32.xlu0 %v947, 48
        %v1567 = vpop.permute.xlu0 %1566
        %1568 = vrot.lane.b32.xlu0 %v952, 48
        %v1569 = vpop.permute.xlu0 %1568
        %v1573 = vsel %vm1057, %v1561, 0
        %v1576 = vsel %vm1057, %v1562, 0
        %v1579 = vsel %vm1057, %v1563, 0
        %v1581 = vsel %vm650, %v1569, 0
        %1583 = vmatprep.subr.mxu0 0.0
        %1584 = vmatpush1.msra.mxu0 %v1565
        %1585 = vmatprep.subr.mxu0 0.0
        %1586 = vmatpush1.msra.mxu0 %v1567
        %1587 = vmatprep.subr.mxu0 0.0
        %1588 = vmatpush1.msra.mxu0 %v1581
        %1589 = vmatprep.subr.mxu0 0.0
        %1590 = vmatpush1.msra.mxu0 0.0
        %1591 = vmatprep.subr.mxu0 0.0
        %1592 = vmatpush1.msra.mxu0 0.0
        %1593 = vmatprep.subr.mxu0 0.0
        %1594 = vmatpush1.msra.mxu0 0.0
        %1595 = vmatprep.subr.mxu0 0.0
        %1596 = vmatpush1.msra.mxu0 0.0
        %1597 = vmatprep.subr.mxu0 0.0
        %1598 = vmatpush1.msra.mxu0 0.0
        %1599 = vmatprep.subr.mxu0 0.0
        %1600 = vmatpush1.msra.mxu0 0.0
        %1601 = vmatprep.subr.mxu0 0.0
        %1602 = vmatpush1.msra.mxu0 0.0
        %1603 = vmatprep.subr.mxu0 0.0
        %1604 = vmatpush1.msra.mxu0 0.0
        %1605 = vmatprep.subr.mxu0 0.0
        %1606 = vmatpush1.msra.mxu0 0.0
        %1607 = vmatprep.subr.mxu0 0.0
        %1608 = vmatpush1.msra.mxu0 0.0
        %1609 = vmatprep.subr.mxu0 0.0
        %1610 = vmatpush1.msra.mxu0 0.0
        %1611 = vmatprep.subr.mxu0 0.0
        %1612 = vmatpush1.msra.mxu0 0.0
        %1613 = vmatprep.subr.mxu0 0.0
        %1614 = vmatpush1.msra.mxu0 0.0
        %1615 = vmatprep.subr.mxu0 0.0
        %1616 = vmatpush1.msra.mxu0 0.0
        %1617 = vmatprep.subr.mxu0 0.0
        %1618 = vmatpush1.msra.mxu0 0.0
        %1619 = vmatprep.subr.mxu0 0.0
        %1620 = vmatpush1.msra.mxu0 0.0
        %1621 = vmatprep.subr.mxu0 0.0
        %1622 = vmatpush1.msra.mxu0 0.0
        %1623 = vmatprep.subr.mxu0 0.0
        %1624 = vmatpush1.msra.mxu0 0.0
        %1625 = vmatprep.subr.mxu0 0.0
        %1626 = vmatpush1.msra.mxu0 0.0
        %1627 = vmatprep.subr.mxu0 0.0
        %1628 = vmatpush1.msra.mxu0 0.0
        %1629 = vmatprep.subr.mxu0 0.0
        %1630 = vmatpush1.msra.mxu0 0.0
        %1631 = vmatprep.subr.mxu0 0.0
        %1632 = vmatpush1.msra.mxu0 0.0
        %1633 = vmatprep.subr.mxu0 0.0
        %1634 = vmatpush1.msra.mxu0 0.0
        %1635 = vmatprep.subr.mxu0 0.0
        %1636 = vmatpush1.msra.mxu0 0.0
        %1637 = vmatprep.subr.mxu0 0.0
        %1638 = vmatpush1.msra.mxu0 0.0
        %1639 = vmatprep.subr.mxu0 0.0
        %1640 = vmatpush1.msra.mxu0 0.0
        %1641 = vmatprep.subr.mxu0 0.0
        %1642 = vmatpush1.msra.mxu0 0.0
        %1643 = vmatprep.subr.mxu0 0.0
        %1644 = vmatpush1.msra.mxu0 0.0
        %1645 = vmatprep.subr.mxu0 0.0
        %1646 = vmatpush1.msra.mxu0 0.0
        %1647 = vmatprep.mubr.f32.mxu0 0.0
        %1648 = vmatmul.mubr.f32.gmra.mrb[0].mxu0 %v1573
        %v1649 = vpop.f32.mrb[0].mxu0
        %v1650 = vadd.f32 0.0, %v1649
        %v1651 = vpop.f32.mrb[0].mxu0
        %1652 = vmatprep.mubr.f32.mxu0 0.0
        %1653 = vmatmul.mubr.f32.gmra.mrb[0].mxu0 %v1576
        %v1654 = vpop.f32.mrb[0].mxu0
        %v1655 = vadd.f32 0.0, %v1654
        %v1656 = vpop.f32.mrb[0].mxu0
        %1657 = vmatprep.mubr.f32.mxu0 0.0
        %1658 = vmatmul.mubr.f32.gmra.mrb[0].mxu0 %v1579
        %v1659 = vpop.f32.mrb[0].mxu0
        %v1660 = vadd.f32 0.0, %v1659
        %v1661 = vpop.f32.mrb[0].mxu0
        %1662 = vdwg.mxu0
        %1663 = vrot.lane.b32.xlu0 %v942, 104
        %v1664 = vpop.permute.xlu0 %1663
        %1665 = vrot.lane.b32.xlu0 %v947, 104
        %v1666 = vpop.permute.xlu0 %1665
        %1667 = vrot.lane.b32.xlu0 %v952, 104
        %v1668 = vpop.permute.xlu0 %1667
        %1669 = vrot.lane.b32.xlu0 %v942, 72
        %v1670 = vpop.permute.xlu0 %1669
        %1671 = vrot.lane.b32.xlu0 %v947, 72
        %v1672 = vpop.permute.xlu0 %1671
        %1673 = vrot.lane.b32.xlu0 %v952, 72
        %v1674 = vpop.permute.xlu0 %1673
        %v1675 = vsel %vm964, %v1664, 0
        %v1677 = vsel %vm964, %v1666, 0
        %v1679 = vsel %vm964, %v1668, 0
        %v1681 = vsel %vm964, %v1670, 0
        %v1683 = vsel %vm964, %v1672, 0
        %v1685 = vsel %vm964, %v1674, 0
        %1687 = vmatprep.subr.mxu0 0.0
        %1688 = vmatpush1.xpose.msra.mxu0 %v1681
        %1689 = vmatprep.subr.mxu0 0.0
        %1690 = vmatpush1.xpose.msra.mxu0 %v1683
        %1691 = vmatprep.subr.mxu0 0.0
        %1692 = vmatpush1.xpose.msra.mxu0 %v1685
        %1693 = vmatprep.subr.mxu0 0.0
        %1694 = vmatpush1.xpose.msra.mxu0 0.0
        %1695 = vmatprep.subr.mxu0 0.0
        %1696 = vmatpush1.xpose.msra.mxu0 0.0
        %1697 = vmatprep.subr.mxu0 0.0
        %1698 = vmatpush1.xpose.msra.mxu0 0.0
        %1699 = vmatprep.subr.mxu0 0.0
        %1700 = vmatpush1.xpose.msra.mxu0 0.0
        %1701 = vmatprep.subr.mxu0 0.0
        %1702 = vmatpush1.xpose.msra.mxu0 0.0
        %1703 = vmatprep.subr.mxu0 0.0
        %1704 = vmatpush1.xpose.msra.mxu0 0.0
        %1705 = vmatprep.subr.mxu0 0.0
        %1706 = vmatpush1.xpose.msra.mxu0 0.0
        %1707 = vmatprep.subr.mxu0 0.0
        %1708 = vmatpush1.xpose.msra.mxu0 0.0
        %1709 = vmatprep.subr.mxu0 0.0
        %1710 = vmatpush1.xpose.msra.mxu0 0.0
        %1711 = vmatprep.subr.mxu0 0.0
        %1712 = vmatpush1.xpose.msra.mxu0 0.0
        %1713 = vmatprep.subr.mxu0 0.0
        %1714 = vmatpush1.xpose.msra.mxu0 0.0
        %1715 = vmatprep.subr.mxu0 0.0
        %1716 = vmatpush1.xpose.msra.mxu0 0.0
        %1717 = vmatprep.subr.mxu0 0.0
        %1718 = vmatpush1.xpose.msra.mxu0 0.0
        %1719 = vmatprep.subr.mxu0 0.0
        %1720 = vmatpush1.xpose.msra.mxu0 0.0
        %1721 = vmatprep.subr.mxu0 0.0
        %1722 = vmatpush1.xpose.msra.mxu0 0.0
        %1723 = vmatprep.subr.mxu0 0.0
        %1724 = vmatpush1.xpose.msra.mxu0 0.0
        %1725 = vmatprep.subr.mxu0 0.0
        %1726 = vmatpush1.xpose.msra.mxu0 0.0
        %1727 = vmatprep.subr.mxu0 0.0
        %1728 = vmatpush1.xpose.msra.mxu0 0.0
        %1729 = vmatprep.subr.mxu0 0.0
        %1730 = vmatpush1.xpose.msra.mxu0 0.0
        %1731 = vmatprep.subr.mxu0 0.0
        %1732 = vmatpush1.xpose.msra.mxu0 0.0
        %1733 = vmatprep.subr.mxu0 0.0
        %1734 = vmatpush1.xpose.msra.mxu0 0.0
        %1735 = vmatprep.subr.mxu0 0.0
        %1736 = vmatpush1.xpose.msra.mxu0 0.0
        %1737 = vmatprep.subr.mxu0 0.0
        %1738 = vmatpush1.xpose.msra.mxu0 0.0
        %1739 = vmatprep.subr.mxu0 0.0
        %1740 = vmatpush1.xpose.msra.mxu0 0.0
        %1741 = vmatprep.subr.mxu0 0.0
        %1742 = vmatpush1.xpose.msra.mxu0 0.0
        %1743 = vmatprep.subr.mxu0 0.0
        %1744 = vmatpush1.xpose.msra.mxu0 0.0
        %1745 = vmatprep.subr.mxu0 0.0
        %1746 = vmatpush1.xpose.msra.mxu0 0.0
        %1747 = vmatprep.subr.mxu0 0.0
        %1748 = vmatpush1.xpose.msra.mxu0 0.0
        %1749 = vmatprep.subr.mxu0 0.0
        %1750 = vmatpush1.xpose.msra.mxu0 0.0
        %1751 = vmatprep.mubr.f32.mxu0 0.0
        %1752 = vmatmul.mubr.f32.gmra.mrb[0].mxu0 %v1675
        %v1753 = vpop.f32.mrb[0].mxu0
        %v1754 = vadd.f32 0.0, %v1753
        %v1755 = vpop.f32.mrb[0].mxu0
        %1756 = vmatprep.mubr.f32.mxu0 0.0
        %1757 = vmatmul.mubr.f32.gmra.mrb[0].mxu0 %v1677
        %v1758 = vpop.f32.mrb[0].mxu0
        %v1759 = vadd.f32 0.0, %v1758
        %v1760 = vpop.f32.mrb[0].mxu0
        %1761 = vmatprep.mubr.f32.mxu0 0.0
        %1762 = vmatmul.mubr.f32.gmra.mrb[0].mxu0 %v1679
        %v1763 = vpop.f32.mrb[0].mxu0
        %v1764 = vadd.f32 0.0, %v1763
        %v1765 = vpop.f32.mrb[0].mxu0
        %1766 = vdwg.mxu0
        %v1767 = vsel %vm1057, %v1754, -inf
        %1768 = vmax.xlane.f32.xlu0 %v1767
        %v1769 = vpop.xlane.xlu0 %1768
        %v1770 = vsel %vm1057, %v1759, -inf
        %1771 = vmax.xlane.f32.xlu0 %v1770
        %v1772 = vpop.xlane.xlu0 %1771
        %v1773 = vsel %vm1064, %v1764, -inf
        %1774 = vmax.xlane.f32.xlu0 %v1773
        %v1775 = vpop.xlane.xlu0 %1774
        %v1776 = vsub.f32 %v1754, %v1769
        %v1777 = vsub.f32 %v1759, %v1772
        %v1778 = vsub.f32 %v1764, %v1775
        %v1779 = vmul.f32 %v1776, 1.442695
        %v1780 = vpow.pop %v1779
        %v1781 = vmul.f32 %v1777, 1.442695
        %v1782 = vpow.pop %v1781
        %v1783 = vmul.f32 %v1778, 1.442695
        %v1784 = vpow.pop %v1783
        %v1785 = vsel %vm1057, %v1780, 0.0
        %1786 = vadd.xlane.f32.xlu0 %v1785
        %v1787 = vpop.xlane.xlu0 %1786
        %v1788 = vsel %vm1057, %v1782, 0.0
        %1789 = vadd.xlane.f32.xlu0 %v1788
        %v1790 = vpop.xlane.xlu0 %1789
        %v1791 = vsel %vm1064, %v1784, 0.0
        %1792 = vadd.xlane.f32.xlu0 %v1791
        %v1793 = vpop.xlane.xlu0 %1792
        %v1794 = vrcp.pop %v1787
        %v1795 = vrcp.pop %v1790
        %v1796 = vrcp.pop %v1793
        %v1797 = vmul.f32 %v1780, %v1794
        %v1798 = vmul.f32 %v1782, %v1795
        %v1799 = vmul.f32 %v1784, %v1796
        %1800 = vrot.lane.b32.xlu0 %v942, 40
        %v1801 = vpop.permute.xlu0 %1800
        %1802 = vrot.lane.b32.xlu0 %v947, 40
        %v1803 = vpop.permute.xlu0 %1802
        %1804 = vrot.lane.b32.xlu0 %v952, 40
        %v1805 = vpop.permute.xlu0 %1804
        %v1809 = vsel %vm1057, %v1797, 0
        %v1812 = vsel %vm1057, %v1798, 0
        %v1815 = vsel %vm1057, %v1799, 0
        %v1817 = vsel %vm650, %v1805, 0
        %1819 = vmatprep.subr.mxu0 0.0
        %1820 = vmatpush1.msra.mxu0 %v1801
        %1821 = vmatprep.subr.mxu0 0.0
        %1822 = vmatpush1.msra.mxu0 %v1803
        %1823 = vmatprep.subr.mxu0 0.0
        %1824 = vmatpush1.msra.mxu0 %v1817
        %1825 = vmatprep.subr.mxu0 0.0
        %1826 = vmatpush1.msra.mxu0 0.0
        %1827 = vmatprep.subr.mxu0 0.0
        %1828 = vmatpush1.msra.mxu0 0.0
        %1829 = vmatprep.subr.mxu0 0.0
        %1830 = vmatpush1.msra.mxu0 0.0
        %1831 = vmatprep.subr.mxu0 0.0
        %1832 = vmatpush1.msra.mxu0 0.0
        %1833 = vmatprep.subr.mxu0 0.0
        %1834 = vmatpush1.msra.mxu0 0.0
        %1835 = vmatprep.subr.mxu0 0.0
        %1836 = vmatpush1.msra.mxu0 0.0
        %1837 = vmatprep.subr.mxu0 0.0
        %1838 = vmatpush1.msra.mxu0 0.0
        %1839 = vmatprep.subr.mxu0 0.0
        %1840 = vmatpush1.msra.mxu0 0.0
        %1841 = vmatprep.subr.mxu0 0.0
        %1842 = vmatpush1.msra.mxu0 0.0
        %1843 = vmatprep.subr.mxu0 0.0
        %1844 = vmatpush1.msra.mxu0 0.0
        %1845 = vmatprep.subr.mxu0 0.0
        %1846 = vmatpush1.msra.mxu0 0.0
        %1847 = vmatprep.subr.mxu0 0.0
        %1848 = vmatpush1.msra.mxu0 0.0
        %1849 = vmatprep.subr.mxu0 0.0
        %1850 = vmatpush1.msra.mxu0 0.0
        %1851 = vmatprep.subr.mxu0 0.0
        %1852 = vmatpush1.msra.mxu0 0.0
        %1853 = vmatprep.subr.mxu0 0.0
        %1854 = vmatpush1.msra.mxu0 0.0
        %1855 = vmatprep.subr.mxu0 0.0
        %1856 = vmatpush1.msra.mxu0 0.0
        %1857 = vmatprep.subr.mxu0 0.0
        %1858 = vmatpush1.msra.mxu0 0.0
        %1859 = vmatprep.subr.mxu0 0.0
        %1860 = vmatpush1.msra.mxu0 0.0
        %1861 = vmatprep.subr.mxu0 0.0
        %1862 = vmatpush1.msra.mxu0 0.0
        %1863 = vmatprep.subr.mxu0 0.0
        %1864 = vmatpush1.msra.mxu0 0.0
        %1865 = vmatprep.subr.mxu0 0.0
        %1866 = vmatpush1.msra.mxu0 0.0
        %1867 = vmatprep.subr.mxu0 0.0
        %1868 = vmatpush1.msra.mxu0 0.0
        %1869 = vmatprep.subr.mxu0 0.0
        %1870 = vmatpush1.msra.mxu0 0.0
        %1871 = vmatprep.subr.mxu0 0.0
        %1872 = vmatpush1.msra.mxu0 0.0
        %1873 = vmatprep.subr.mxu0 0.0
        %1874 = vmatpush1.msra.mxu0 0.0
        %1875 = vmatprep.subr.mxu0 0.0
        %1876 = vmatpush1.msra.mxu0 0.0
        %1877 = vmatprep.subr.mxu0 0.0
        %1878 = vmatpush1.msra.mxu0 0.0
        %1879 = vmatprep.subr.mxu0 0.0
        %1880 = vmatpush1.msra.mxu0 0.0
        %1881 = vmatprep.subr.mxu0 0.0
        %1882 = vmatpush1.msra.mxu0 0.0
        %1883 = vmatprep.mubr.f32.mxu0 0.0
        %1884 = vmatmul.mubr.f32.gmra.mrb[0].mxu0 %v1809
        %v1885 = vpop.f32.mrb[0].mxu0
        %v1886 = vadd.f32 0.0, %v1885
        %v1887 = vpop.f32.mrb[0].mxu0
        %1888 = vmatprep.mubr.f32.mxu0 0.0
        %1889 = vmatmul.mubr.f32.gmra.mrb[0].mxu0 %v1812
        %v1890 = vpop.f32.mrb[0].mxu0
        %v1891 = vadd.f32 0.0, %v1890
        %v1892 = vpop.f32.mrb[0].mxu0
        %1893 = vmatprep.mubr.f32.mxu0 0.0
        %1894 = vmatmul.mubr.f32.gmra.mrb[0].mxu0 %v1815
        %v1895 = vpop.f32.mrb[0].mxu0
        %v1896 = vadd.f32 0.0, %v1895
        %v1897 = vpop.f32.mrb[0].mxu0
        %1898 = vdwg.mxu0
        %1902 = vrot.lane.b32.xlu0 %v1414, 8
        %v1903 = vpop.permute.xlu0 %1902
        %1904 = vrot.lane.b32.xlu0 %v1419, 8
        %v1905 = vpop.permute.xlu0 %1904
        %1906 = vrot.lane.b32.xlu0 %v1424, 8
        %v1907 = vpop.permute.xlu0 %1906
        %1914 = vrot.lane.b32.xlu0 %v1650, 16
        %v1915 = vpop.permute.xlu0 %1914
        %1916 = vrot.lane.b32.xlu0 %v1655, 16
        %v1917 = vpop.permute.xlu0 %1916
        %1918 = vrot.lane.b32.xlu0 %v1660, 16
        %v1919 = vpop.permute.xlu0 %1918
        %1926 = vrot.lane.b32.xlu0 %v1886, 24
        %v1927 = vpop.permute.xlu0 %1926
        %1928 = vrot.lane.b32.xlu0 %v1891, 24
        %v1929 = vpop.permute.xlu0 %1928
        %1930 = vrot.lane.b32.xlu0 %v1896, 24
        %v1931 = vpop.permute.xlu0 %1930
        %v1935 = vsel %vm964, %v1178, %v1903
        %v1936 = vsel %vm964, %v1183, %v1905
        %v1937 = vsel %vm964, %v1188, %v1907
        %vm1938 = vcmask 130048
        %v1939 = vsel %vm1938, %v1935, %v1915
        %v1940 = vsel %vm1938, %v1936, %v1917
        %v1941 = vsel %vm1938, %v1937, %v1919
        %vm1942 = vcmask 195584
        %v1943 = vsel %vm1942, %v1939, %v1927
        %v1944 = vsel %vm1942, %v1940, %v1929
        %v1945 = vsel %vm1942, %v1941, %v1931
        %v1946 = vld [vmem:[%s9] sm:$0xff]
        %v1947 = vld [vmem:[%s9 + $0x8] sm:$0xff]
        %v1948 = vld [vmem:[%s9 + $0x10] sm:$0xff]
        %v1949 = vld [vmem:[%s9 + $0x18] sm:$0xff]
        %v1951 = vsel %vm736, %v1943, 0
        %v1954 = vsel %vm736, %v1944, 0
        %v1957 = vsel %vm736, %v1945, 0
        %1959 = vmatprep.subr.mxu0 0.0
        %1960 = vmatpush1.msra.mxu0 %v1946
        %1961 = vmatprep.subr.mxu0 0.0
        %1962 = vmatpush1.msra.mxu0 %v1947
        %1963 = vmatprep.subr.mxu0 0.0
        %1964 = vmatpush1.msra.mxu0 %v1948
        %1965 = vmatprep.subr.mxu0 0.0
        %1966 = vmatpush1.msra.mxu0 %v1949
        %1967 = vmatprep.subr.mxu0 0.0
        %1968 = vmatpush1.msra.mxu0 0.0
        %1969 = vmatprep.subr.mxu0 0.0
        %1970 = vmatpush1.msra.mxu0 0.0
        %1971 = vmatprep.subr.mxu0 0.0
        %1972 = vmatpush1.msra.mxu0 0.0
        %1973 = vmatprep.subr.mxu0 0.0
        %1974 = vmatpush1.msra.mxu0 0.0
        %1975 = vmatprep.subr.mxu0 0.0
        %1976 = vmatpush1.msra.mxu0 0.0
        %1977 = vmatprep.subr.mxu0 0.0
        %1978 = vmatpush1.msra.mxu0 0.0
        %1979 = vmatprep.subr.mxu0 0.0
        %1980 = vmatpush1.msra.mxu0 0.0
        %1981 = vmatprep.subr.mxu0 0.0
        %1982 = vmatpush1.msra.mxu0 0.0
        %1983 = vmatprep.subr.mxu0 0.0
        %1984 = vmatpush1.msra.mxu0 0.0
        %1985 = vmatprep.subr.mxu0 0.0
        %1986 = vmatpush1.msra.mxu0 0.0
        %1987 = vmatprep.subr.mxu0 0.0
        %1988 = vmatpush1.msra.mxu0 0.0
        %1989 = vmatprep.subr.mxu0 0.0
        %1990 = vmatpush1.msra.mxu0 0.0
        %1991 = vmatprep.subr.mxu0 0.0
        %1992 = vmatpush1.msra.mxu0 0.0
        %1993 = vmatprep.subr.mxu0 0.0
        %1994 = vmatpush1.msra.mxu0 0.0
        %1995 = vmatprep.subr.mxu0 0.0
        %1996 = vmatpush1.msra.mxu0 0.0
        %1997 = vmatprep.subr.mxu0 0.0
        %1998 = vmatpush1.msra.mxu0 0.0
        %1999 = vmatprep.subr.mxu0 0.0
        %2000 = vmatpush1.msra.mxu0 0.0
        %2001 = vmatprep.subr.mxu0 0.0
        %2002 = vmatpush1.msra.mxu0 0.0
        %2003 = vmatprep.subr.mxu0 0.0
        %2004 = vmatpush1.msra.mxu0 0.0
        %2005 = vmatprep.subr.mxu0 0.0
        %2006 = vmatpush1.msra.mxu0 0.0
        %2007 = vmatprep.subr.mxu0 0.0
        %2008 = vmatpush1.msra.mxu0 0.0
        %2009 = vmatprep.subr.mxu0 0.0
        %2010 = vmatpush1.msra.mxu0 0.0
        %2011 = vmatprep.subr.mxu0 0.0
        %2012 = vmatpush1.msra.mxu0 0.0
        %2013 = vmatprep.subr.mxu0 0.0
        %2014 = vmatpush1.msra.mxu0 0.0
        %2015 = vmatprep.subr.mxu0 0.0
        %2016 = vmatpush1.msra.mxu0 0.0
        %2017 = vmatprep.subr.mxu0 0.0
        %2018 = vmatpush1.msra.mxu0 0.0
        %2019 = vmatprep.subr.mxu0 0.0
        %2020 = vmatpush1.msra.mxu0 0.0
        %2021 = vmatprep.subr.mxu0 0.0
        %2022 = vmatpush1.msra.mxu0 0.0
        %2023 = vmatprep.mubr.f32.mxu0 0.0
        %2024 = vmatmul.mubr.f32.gmra.mrb[0].mxu0 %v1951
        %v2025 = vpop.f32.mrb[0].mxu0
        %v2026 = vadd.f32 0.0, %v2025
        %v2027 = vpop.f32.mrb[0].mxu0
        %2028 = vmatprep.mubr.f32.mxu0 0.0
        %2029 = vmatmul.mubr.f32.gmra.mrb[0].mxu0 %v1954
        %v2030 = vpop.f32.mrb[0].mxu0
        %v2031 = vadd.f32 0.0, %v2030
        %v2032 = vpop.f32.mrb[0].mxu0
        %2033 = vmatprep.mubr.f32.mxu0 0.0
        %2034 = vmatmul.mubr.f32.gmra.mrb[0].mxu0 %v1957
        %v2035 = vpop.f32.mrb[0].mxu0
        %v2036 = vadd.f32 0.0, %v2035
        %v2037 = vpop.f32.mrb[0].mxu0
        %2038 = vdwg.mxu0
        %v2039 = vadd.f32 %v793, %v2026
        %v2040 = vadd.f32 %v794, %v2031
        %v2041 = vadd.f32 %v795, %v2036
        %v2042 = vld [vmem:[%s10] sm:$0x1]
        %v2044 = vlaneseq
        %v2045 = vshrl.u32 %v2044, 7
        %v2046 = vsub.s32 0, %v2045
        %v2047 = vrot.slane %v2042, %v2046
        %v2049 = vadd.f32 %v2039, %v2047
        %v2050 = vadd.f32 %v2040, %v2047
        %v2051 = vadd.f32 %v2041, %v2047
        %v2052 = vld [vmem:[%s11] sm:$0x1]
        %v2053 = vld [vmem:[%s12] sm:$0x1]
        %v2054 = vsel %vm736, %v2049, 0.0
        %2055 = vadd.xlane.f32.xlu0 %v2054
        %v2056 = vpop.xlane.xlu0 %2055
        %v2057 = vsel %vm736, %v2050, 0.0
        %2058 = vadd.xlane.f32.xlu0 %v2057
        %v2059 = vpop.xlane.xlu0 %2058
        %v2060 = vsel %vm743, %v2051, 0.0
        %2061 = vadd.xlane.f32.xlu0 %v2060
        %v2062 = vpop.xlane.xlu0 %2061
        %v2063 = vmul.f32 %v2056, %v747
        %v2064 = vmul.f32 %v2059, %v747
        %v2065 = vmul.f32 %v2062, %v747
        %v2066 = vsub.f32 %v2049, %v2063
        %v2067 = vsub.f32 %v2050, %v2064
        %v2068 = vsub.f32 %v2051, %v2065
        %v2069 = vmul.f32 %v2066, %v2066
        %v2070 = vmul.f32 %v2067, %v2067
        %v2071 = vmul.f32 %v2068, %v2068
        %v2072 = vsel %vm736, %v2069, 0.0
        %2073 = vadd.xlane.f32.xlu0 %v2072
        %v2074 = vpop.xlane.xlu0 %2073
        %v2075 = vsel %vm736, %v2070, 0.0
        %2076 = vadd.xlane.f32.xlu0 %v2075
        %v2077 = vpop.xlane.xlu0 %2076
        %v2078 = vsel %vm743, %v2071, 0.0
        %2079 = vadd.xlane.f32.xlu0 %v2078
        %v2080 = vpop.xlane.xlu0 %2079
        %v2081 = vmul.f32 %v2074, %v747
        %v2082 = vmul.f32 %v2077, %v747
        %v2083 = vmul.f32 %v2080, %v747
        %v2084 = vadd.f32 %v2081, 1e-05
        %v2085 = vadd.f32 %v2082, 1e-05
        %v2086 = vadd.f32 %v2083, 1e-05
        %v2087 = vrsqrt.pop %v2084
        %v2088 = vrsqrt.pop %v2085
        %v2089 = vrsqrt.pop %v2086
        %v2090 = vmul.f32 %v2066, %v2087
        %v2091 = vmul.f32 %v2067, %v2088
        %v2092 = vmul.f32 %v2068, %v2089
        %v2094 = vlaneseq
        %v2095 = vshrl.u32 %v2094, 7
        %v2096 = vsub.s32 0, %v2095
        %v2097 = vrot.slane %v2052, %v2096
        %v2099 = vmul.f32 %v2090, %v2097
        %v2100 = vmul.f32 %v2091, %v2097
        %v2101 = vmul.f32 %v2092, %v2097
        %v2103 = vlaneseq
        %v2104 = vshrl.u32 %v2103, 7
        %v2105 = vsub.s32 0, %v2104
        %v2106 = vrot.slane %v2053, %v2105
        %v2108 = vadd.f32 %v2099, %v2106
        %v2109 = vadd.f32 %v2100, %v2106
        %v2110 = vadd.f32 %v2101, %v2106
        %v2111 = vld [vmem:[%s13] sm:$0xff]
        %v2112 = vld [vmem:[%s13 + $0x8] sm:$0xff]
        %v2113 = vld [vmem:[%s13 + $0x10] sm:$0xff]
        %v2114 = vld [vmem:[%s13 + $0x18] sm:$0xff]
        %v2115 = vld [vmem:[%s14] sm:$0x1]
        %v2117 = vlaneseq
        %v2118 = vshrl.u32 %v2117, 7
        %v2119 = vsub.s32 0, %v2118
        %v2120 = vrot.slane %v2115, %v2119
        %v2123 = vsel %vm736, %v2108, 0
        %v2126 = vsel %vm736, %v2109, 0
        %v2129 = vsel %vm736, %v2110, 0
        %2131 = vmatprep.subr.mxu0 0.0
        %2132 = vmatpush1.msra.mxu0 %v2111
        %2133 = vmatprep.subr.mxu0 0.0
        %2134 = vmatpush1.msra.mxu0 %v2112
        %2135 = vmatprep.subr.mxu0 0.0
        %2136 = vmatpush1.msra.mxu0 %v2113
        %2137 = vmatprep.subr.mxu0 0.0
        %2138 = vmatpush1.msra.mxu0 %v2114
        %2139 = vmatprep.subr.mxu0 0.0
        %2140 = vmatpush1.msra.mxu0 0.0
        %2141 = vmatprep.subr.mxu0 0.0
        %2142 = vmatpush1.msra.mxu0 0.0
        %2143 = vmatprep.subr.mxu0 0.0
        %2144 = vmatpush1.msra.mxu0 0.0
        %2145 = vmatprep.subr.mxu0 0.0
        %2146 = vmatpush1.msra.mxu0 0.0
        %2147 = vmatprep.subr.mxu0 0.0
        %2148 = vmatpush1.msra.mxu0 0.0
        %2149 = vmatprep.subr.mxu0 0.0
        %2150 = vmatpush1.msra.mxu0 0.0
        %2151 = vmatprep.subr.mxu0 0.0
        %2152 = vmatpush1.msra.mxu0 0.0
        %2153 = vmatprep.subr.mxu0 0.0
        %2154 = vmatpush1.msra.mxu0 0.0
        %2155 = vmatprep.subr.mxu0 0.0
        %2156 = vmatpush1.msra.mxu0 0.0
        %2157 = vmatprep.subr.mxu0 0.0
        %2158 = vmatpush1.msra.mxu0 0.0
        %2159 = vmatprep.subr.mxu0 0.0
        %2160 = vmatpush1.msra.mxu0 0.0
        %2161 = vmatprep.subr.mxu0 0.0
        %2162 = vmatpush1.msra.mxu0 0.0
        %2163 = vmatprep.subr.mxu0 0.0
        %2164 = vmatpush1.msra.mxu0 0.0
        %2165 = vmatprep.subr.mxu0 0.0
        %2166 = vmatpush1.msra.mxu0 0.0
        %2167 = vmatprep.subr.mxu0 0.0
        %2168 = vmatpush1.msra.mxu0 0.0
        %2169 = vmatprep.subr.mxu0 0.0
        %2170 = vmatpush1.msra.mxu0 0.0
        %2171 = vmatprep.subr.mxu0 0.0
        %2172 = vmatpush1.msra.mxu0 0.0
        %2173 = vmatprep.subr.mxu0 0.0
        %2174 = vmatpush1.msra.mxu0 0.0
        %2175 = vmatprep.subr.mxu0 0.0
        %2176 = vmatpush1.msra.mxu0 0.0
        %2177 = vmatprep.subr.mxu0 0.0
        %2178 = vmatpush1.msra.mxu0 0.0
        %2179 = vmatprep.subr.mxu0 0.0
        %2180 = vmatpush1.msra.mxu0 0.0
        %2181 = vmatprep.subr.mxu0 0.0
        %2182 = vmatpush1.msra.mxu0 0.0
        %2183 = vmatprep.subr.mxu0 0.0
        %2184 = vmatpush1.msra.mxu0 0.0
        %2185 = vmatprep.subr.mxu0 0.0
        %2186 = vmatpush1.msra.mxu0 0.0
        %2187 = vmatprep.subr.mxu0 0.0
        %2188 = vmatpush1.msra.mxu0 0.0
        %2189 = vmatprep.subr.mxu0 0.0
        %2190 = vmatpush1.msra.mxu0 0.0
        %2191 = vmatprep.subr.mxu0 0.0
        %2192 = vmatpush1.msra.mxu0 0.0
        %2193 = vmatprep.subr.mxu0 0.0
        %2194 = vmatpush1.msra.mxu0 0.0
        %2195 = vmatprep.mubr.f32.mxu0 0.0
        %2196 = vmatmul.mubr.f32.gmra.mrb[0].mxu0 %v2123
        %v2197 = vpop.f32.mrb[0].mxu0
        %v2198 = vadd.f32 %v2120, %v2197
        %v2199 = vpop.f32.mrb[0].mxu0
        %2200 = vmatprep.mubr.f32.mxu0 0.0
        %2201 = vmatmul.mubr.f32.gmra.mrb[0].mxu0 %v2126
        %v2202 = vpop.f32.mrb[0].mxu0
        %v2203 = vadd.f32 %v2120, %v2202
        %v2204 = vpop.f32.mrb[0].mxu0
        %2205 = vmatprep.mubr.f32.mxu0 0.0
        %2206 = vmatmul.mubr.f32.gmra.mrb[0].mxu0 %v2129
        %v2207 = vpop.f32.mrb[0].mxu0
        %v2208 = vadd.f32 %v2120, %v2207
        %v2209 = vpop.f32.mrb[0].mxu0
        %2210 = vdwg.mxu0
        %v2211 = vmul.f32 %v2198, 1.702
        %v2212 = vmul.f32 %v2203, 1.702
        %v2213 = vmul.f32 %v2208, 1.702
        %v2214 = vxor.u32 %v2211, 2147483648
        %v2215 = vxor.u32 %v2212, 2147483648
        %v2216 = vxor.u32 %v2213, 2147483648
        %v2217 = vmul.f32 %v2214, 1.442695
        %v2218 = vpow.pop %v2217
        %v2219 = vmul.f32 %v2215, 1.442695
        %v2220 = vpow.pop %v2219
        %v2221 = vmul.f32 %v2216, 1.442695
        %v2222 = vpow.pop %v2221
        %v2223 = vadd.f32 %v2218, 1.0
        %v2224 = vadd.f32 %v2220, 1.0
        %v2225 = vadd.f32 %v2222, 1.0
        %v2226 = vrcp.pop %v2223
        %v2227 = vmul.f32 1.0, %v2226
        %v2228 = vrcp.pop %v2224
        %v2229 = vmul.f32 1.0, %v2228
        %v2230 = vrcp.pop %v2225
        %v2231 = vmul.f32 1.0, %v2230
        %v2232 = vmul.f32 %v2198, %v2227
        %v2233 = vmul.f32 %v2203, %v2229
        %v2234 = vmul.f32 %v2208, %v2231
        %v2235 = vld [vmem:[%s15] sm:$0xff]
        %v2236 = vld [vmem:[%s15 + $0x8] sm:$0xff]
        %v2237 = vld [vmem:[%s15 + $0x10] sm:$0xff]
        %v2238 = vld [vmem:[%s15 + $0x18] sm:$0xff]
        %v2239 = vld [vmem:[%s15 + $0x20] sm:$0xff]
        %v2240 = vld [vmem:[%s15 + $0x28] sm:$0xff]
        %v2241 = vld [vmem:[%s15 + $0x30] sm:$0xff]
        %v2242 = vld [vmem:[%s15 + $0x38] sm:$0xff]
        %vm2243 = vcmask 523264
        %v2245 = vsel %vm2243, %v2232, 0
        %v2248 = vsel %vm2243, %v2233, 0
        %v2251 = vsel %vm2243, %v2234, 0
        %2253 = vmatprep.subr.mxu0 0.0
        %2254 = vmatpush1.msra.mxu0 %v2235
        %2255 = vmatprep.subr.mxu0 0.0
        %2256 = vmatpush1.msra.mxu0 %v2236
        %2257 = vmatprep.subr.mxu0 0.0
        %2258 = vmatpush1.msra.mxu0 %v2237
        %2259 = vmatprep.subr.mxu0 0.0
        %2260 = vmatpush1.msra.mxu0 %v2238
        %2261 = vmatprep.subr.mxu0 0.0
        %2262 = vmatpush1.msra.mxu0 %v2239
        %2263 = vmatprep.subr.mxu0 0.0
        %2264 = vmatpush1.msra.mxu0 %v2240
        %2265 = vmatprep.subr.mxu0 0.0
        %2266 = vmatpush1.msra.mxu0 %v2241
        %2267 = vmatprep.subr.mxu0 0.0
        %2268 = vmatpush1.msra.mxu0 %v2242
        %2269 = vmatprep.subr.mxu0 0.0
        %2270 = vmatpush1.msra.mxu0 0.0
        %2271 = vmatprep.subr.mxu0 0.0
        %2272 = vmatpush1.msra.mxu0 0.0
        %2273 = vmatprep.subr.mxu0 0.0
        %2274 = vmatpush1.msra.mxu0 0.0
        %2275 = vmatprep.subr.mxu0 0.0
        %2276 = vmatpush1.msra.mxu0 0.0
        %2277 = vmatprep.subr.mxu0 0.0
        %2278 = vmatpush1.msra.mxu0 0.0
        %2279 = vmatprep.subr.mxu0 0.0
        %2280 = vmatpush1.msra.mxu0 0.0
        %2281 = vmatprep.subr.mxu0 0.0
        %2282 = vmatpush1.msra.mxu0 0.0
        %2283 = vmatprep.subr.mxu0 0.0
        %2284 = vmatpush1.msra.mxu0 0.0
        %2285 = vmatprep.subr.mxu0 0.0
        %2286 = vmatpush1.msra.mxu0 0.0
        %2287 = vmatprep.subr.mxu0 0.0
        %2288 = vmatpush1.msra.mxu0 0.0
        %2289 = vmatprep.subr.mxu0 0.0
        %2290 = vmatpush1.msra.mxu0 0.0
        %2291 = vmatprep.subr.mxu0 0.0
        %2292 = vmatpush1.msra.mxu0 0.0
        %2293 = vmatprep.subr.mxu0 0.0
        %2294 = vmatpush1.msra.mxu0 0.0
        %2295 = vmatprep.subr.mxu0 0.0
        %2296 = vmatpush1.msra.mxu0 0.0
        %2297 = vmatprep.subr.mxu0 0.0
        %2298 = vmatpush1.msra.mxu0 0.0
        %2299 = vmatprep.subr.mxu0 0.0
        %2300 = vmatpush1.msra.mxu0 0.0
        %2301 = vmatprep.subr.mxu0 0.0
        %2302 = vmatpush1.msra.mxu0 0.0
        %2303 = vmatprep.subr.mxu0 0.0
        %2304 = vmatpush1.msra.mxu0 0.0
        %2305 = vmatprep.subr.mxu0 0.0
        %2306 = vmatpush1.msra.mxu0 0.0
        %2307 = vmatprep.subr.mxu0 0.0
        %2308 = vmatpush1.msra.mxu0 0.0
        %2309 = vmatprep.subr.mxu0 0.0
        %2310 = vmatpush1.msra.mxu0 0.0
        %2311 = vmatprep.subr.mxu0 0.0
        %2312 = vmatpush1.msra.mxu0 0.0
        %2313 = vmatprep.subr.mxu0 0.0
        %2314 = vmatpush1.msra.mxu0 0.0
        %2315 = vmatprep.subr.mxu0 0.0
        %2316 = vmatpush1.msra.mxu0 0.0
        %2317 = vmatprep.mubr.f32.mxu0 0.0
        %2318 = vmatmul.mubr.f32.gmra.mrb[0].mxu0 %v2245
        %v2319 = vpop.f32.mrb[0].mxu0
        %v2320 = vadd.f32 0.0, %v2319
        %v2321 = vpop.f32.mrb[0].mxu0
        %2322 = vmatprep.mubr.f32.mxu0 0.0
        %2323 = vmatmul.mubr.f32.gmra.mrb[0].mxu0 %v2248
        %v2324 = vpop.f32.mrb[0].mxu0
        %v2325 = vadd.f32 0.0, %v2324
        %v2326 = vpop.f32.mrb[0].mxu0
        %2327 = vmatprep.mubr.f32.mxu0 0.0
        %2328 = vmatmul.mubr.f32.gmra.mrb[0].mxu0 %v2251
        %v2329 = vpop.f32.mrb[0].mxu0
        %v2330 = vadd.f32 0.0, %v2329
        %v2331 = vpop.f32.mrb[0].mxu0
        %2332 = vdwg.mxu0
        %v2333 = vadd.f32 %v2049, %v2320
        %v2334 = vadd.f32 %v2050, %v2325
        %v2335 = vadd.f32 %v2051, %v2330
        %v2336 = vld [vmem:[%s16] sm:$0x1]
        %v2338 = vlaneseq
        %v2339 = vshrl.u32 %v2338, 7
        %v2340 = vsub.s32 0, %v2339
        %v2341 = vrot.slane %v2336, %v2340
        %v2343 = vadd.f32 %v2333, %v2341
        %v2344 = vadd.f32 %v2334, %v2341
        %v2345 = vadd.f32 %v2335, %v2341
        %s2346 = scalar_lea.vmem %s5, 1
        %v2347 = vld [vmem:[%s2346] sm:$0x1]
        %s2348 = scalar_lea.vmem %s6, 1
        %v2349 = vld [vmem:[%s2348] sm:$0x1]
        %v2350 = vsel %vm736, %v2343, 0.0
        %2351 = vadd.xlane.f32.xlu0 %v2350
        %v2352 = vpop.xlane.xlu0 %2351
        %v2353 = vsel %vm736, %v2344, 0.0
        %2354 = vadd.xlane.f32.xlu0 %v2353
        %v2355 = vpop.xlane.xlu0 %2354
        %v2356 = vsel %vm743, %v2345, 0.0
        %2357 = vadd.xlane.f32.xlu0 %v2356
        %v2358 = vpop.xlane.xlu0 %2357
        %v2359 = vmul.f32 %v2352, %v747
        %v2360 = vmul.f32 %v2355, %v747
        %v2361 = vmul.f32 %v2358, %v747
        %v2362 = vsub.f32 %v2343, %v2359
        %v2363 = vsub.f32 %v2344, %v2360
        %v2364 = vsub.f32 %v2345, %v2361
        %v2365 = vmul.f32 %v2362, %v2362
        %v2366 = vmul.f32 %v2363, %v2363
        %v2367 = vmul.f32 %v2364, %v2364
        %v2368 = vsel %vm736, %v2365, 0.0
        %2369 = vadd.xlane.f32.xlu0 %v2368
        %v2370 = vpop.xlane.xlu0 %2369
        %v2371 = vsel %vm736, %v2366, 0.0
        %2372 = vadd.xlane.f32.xlu0 %v2371
        %v2373 = vpop.xlane.xlu0 %2372
        %v2374 = vsel %vm743, %v2367, 0.0
        %2375 = vadd.xlane.f32.xlu0 %v2374
        %v2376 = vpop.xlane.xlu0 %2375
        %v2377 = vmul.f32 %v2370, %v747
        %v2378 = vmul.f32 %v2373, %v747
        %v2379 = vmul.f32 %v2376, %v747
        %v2380 = vadd.f32 %v2377, 1e-05
        %v2381 = vadd.f32 %v2378, 1e-05
        %v2382 = vadd.f32 %v2379, 1e-05
        %v2383 = vrsqrt.pop %v2380
        %v2384 = vrsqrt.pop %v2381
        %v2385 = vrsqrt.pop %v2382
        %v2386 = vmul.f32 %v2362, %v2383
        %v2387 = vmul.f32 %v2363, %v2384
        %v2388 = vmul.f32 %v2364, %v2385
        %v2390 = vlaneseq
        %v2391 = vshrl.u32 %v2390, 7
        %v2392 = vsub.s32 0, %v2391
        %v2393 = vrot.slane %v2347, %v2392
        %v2395 = vmul.f32 %v2386, %v2393
        %v2396 = vmul.f32 %v2387, %v2393
        %v2397 = vmul.f32 %v2388, %v2393
        %v2399 = vlaneseq
        %v2400 = vshrl.u32 %v2399, 7
        %v2401 = vsub.s32 0, %v2400
        %v2402 = vrot.slane %v2349, %v2401
        %v2404 = vadd.f32 %v2395, %v2402
        %v2405 = vadd.f32 %v2396, %v2402
        %v2406 = vadd.f32 %v2397, %v2402
        %s2407 = scalar_lea.vmem %s7, 32
        %v2408 = vld [vmem:[%s2407] sm:$0xff]
        %v2409 = vld [vmem:[%s2407 + $0x8] sm:$0xff]
        %v2410 = vld [vmem:[%s2407 + $0x10] sm:$0xff]
        %v2411 = vld [vmem:[%s2407 + $0x18] sm:$0xff]
        %s2412 = scalar_lea.vmem %s8, 1
        %v2413 = vld [vmem:[%s2412] sm:$0x1]
        %v2415 = vlaneseq
        %v2416 = vshrl.u32 %v2415, 7
        %v2417 = vsub.s32 0, %v2416
        %v2418 = vrot.slane %v2413, %v2417
        %v2421 = vsel %vm736, %v2404, 0
        %v2424 = vsel %vm736, %v2405, 0
        %v2427 = vsel %vm736, %v2406, 0
        %2429 = vmatprep.subr.mxu0 0.0
        %2430 = vmatpush1.msra.mxu0 %v2408
        %2431 = vmatprep.subr.mxu0 0.0
        %2432 = vmatpush1.msra.mxu0 %v2409
        %2433 = vmatprep.subr.mxu0 0.0
        %2434 = vmatpush1.msra.mxu0 %v2410
        %2435 = vmatprep.subr.mxu0 0.0
        %2436 = vmatpush1.msra.mxu0 %v2411
        %2437 = vmatprep.subr.mxu0 0.0
        %2438 = vmatpush1.msra.mxu0 0.0
        %2439 = vmatprep.subr.mxu0 0.0
        %2440 = vmatpush1.msra.mxu0 0.0
        %2441 = vmatprep.subr.mxu0 0.0
        %2442 = vmatpush1.msra.mxu0 0.0
        %2443 = vmatprep.subr.mxu0 0.0
        %2444 = vmatpush1.msra.mxu0 0.0
        %2445 = vmatprep.subr.mxu0 0.0
        %2446 = vmatpush1.msra.mxu0 0.0
        %2447 = vmatprep.subr.mxu0 0.0
        %2448 = vmatpush1.msra.mxu0 0.0
        %2449 = vmatprep.subr.mxu0 0.0
        %2450 = vmatpush1.msra.mxu0 0.0
        %2451 = vmatprep.subr.mxu0 0.0
        %2452 = vmatpush1.msra.mxu0 0.0
        %2453 = vmatprep.subr.mxu0 0.0
        %2454 = vmatpush1.msra.mxu0 0.0
        %2455 = vmatprep.subr.mxu0 0.0
        %2456 = vmatpush1.msra.mxu0 0.0
        %2457 = vmatprep.subr.mxu0 0.0
        %2458 = vmatpush1.msra.mxu0 0.0
        %2459 = vmatprep.subr.mxu0 0.0
        %2460 = vmatpush1.msra.mxu0 0.0
        %2461 = vmatprep.subr.mxu0 0.0
        %2462 = vmatpush1.msra.mxu0 0.0
        %2463 = vmatprep.subr.mxu0 0.0
        %2464 = vmatpush1.msra.mxu0 0.0
        %2465 = vmatprep.subr.mxu0 0.0
        %2466 = vmatpush1.msra.mxu0 0.0
        %2467 = vmatprep.subr.mxu0 0.0
        %2468 = vmatpush1.msra.mxu0 0.0
        %2469 = vmatprep.subr.mxu0 0.0
        %2470 = vmatpush1.msra.mxu0 0.0
        %2471 = vmatprep.subr.mxu0 0.0
        %2472 = vmatpush1.msra.mxu0 0.0
        %2473 = vmatprep.subr.mxu0 0.0
        %2474 = vmatpush1.msra.mxu0 0.0
        %2475 = vmatprep.subr.mxu0 0.0
        %2476 = vmatpush1.msra.mxu0 0.0
        %2477 = vmatprep.subr.mxu0 0.0
        %2478 = vmatpush1.msra.mxu0 0.0
        %2479 = vmatprep.subr.mxu0 0.0
        %2480 = vmatpush1.msra.mxu0 0.0
        %2481 = vmatprep.subr.mxu0 0.0
        %2482 = vmatpush1.msra.mxu0 0.0
        %2483 = vmatprep.subr.mxu0 0.0
        %2484 = vmatpush1.msra.mxu0 0.0
        %2485 = vmatprep.subr.mxu0 0.0
        %2486 = vmatpush1.msra.mxu0 0.0
        %2487 = vmatprep.subr.mxu0 0.0
        %2488 = vmatpush1.msra.mxu0 0.0
        %2489 = vmatprep.subr.mxu0 0.0
        %2490 = vmatpush1.msra.mxu0 0.0
        %2491 = vmatprep.subr.mxu0 0.0
        %2492 = vmatpush1.msra.mxu0 0.0
        %2493 = vmatprep.mubr.f32.mxu0 0.0
        %2494 = vmatmul.mubr.f32.gmra.mrb[0].mxu0 %v2421
        %v2495 = vpop.f32.mrb[0].mxu0
        %v2496 = vadd.f32 %v2418, %v2495
        %v2497 = vpop.f32.mrb[0].mxu0
        %2498 = vmatprep.mubr.f32.mxu0 0.0
        %2499 = vmatmul.mubr.f32.gmra.mrb[0].mxu0 %v2424
        %v2500 = vpop.f32.mrb[0].mxu0
        %v2501 = vadd.f32 %v2418, %v2500
        %v2502 = vpop.f32.mrb[0].mxu0
        %2503 = vmatprep.mubr.f32.mxu0 0.0
        %2504 = vmatmul.mubr.f32.gmra.mrb[0].mxu0 %v2427
        %v2505 = vpop.f32.mrb[0].mxu0
        %v2506 = vadd.f32 %v2418, %v2505
        %v2507 = vpop.f32.mrb[0].mxu0
        %2508 = vdwg.mxu0
        %2512 = vrot.lane.b32.xlu0 %v2496, 96
        %v2513 = vpop.permute.xlu0 %2512
        %2514 = vrot.lane.b32.xlu0 %v2501, 96
        %v2515 = vpop.permute.xlu0 %2514
        %2516 = vrot.lane.b32.xlu0 %v2506, 96
        %v2517 = vpop.permute.xlu0 %2516
        %v2518 = vsel %vm964, %v2496, 0
        %v2520 = vsel %vm964, %v2501, 0
        %v2522 = vsel %vm964, %v2506, 0
        %v2524 = vsel %vm964, %v2513, 0
        %v2526 = vsel %vm964, %v2515, 0
        %v2528 = vsel %vm964, %v2517, 0
        %2530 = vmatprep.subr.mxu0 0.0
        %2531 = vmatpush1.xpose.msra.mxu0 %v2524
        %2532 = vmatprep.subr.mxu0 0.0
        %2533 = vmatpush1.xpose.msra.mxu0 %v2526
        %2534 = vmatprep.subr.mxu0 0.0
        %2535 = vmatpush1.xpose.msra.mxu0 %v2528
        %2536 = vmatprep.subr.mxu0 0.0
        %2537 = vmatpush1.xpose.msra.mxu0 0.0
        %2538 = vmatprep.subr.mxu0 0.0
        %2539 = vmatpush1.xpose.msra.mxu0 0.0
        %2540 = vmatprep.subr.mxu0 0.0
        %2541 = vmatpush1.xpose.msra.mxu0 0.0
        %2542 = vmatprep.subr.mxu0 0.0
        %2543 = vmatpush1.xpose.msra.mxu0 0.0
        %2544 = vmatprep.subr.mxu0 0.0
        %2545 = vmatpush1.xpose.msra.mxu0 0.0
        %2546 = vmatprep.subr.mxu0 0.0
        %2547 = vmatpush1.xpose.msra.mxu0 0.0
        %2548 = vmatprep.subr.mxu0 0.0
        %2549 = vmatpush1.xpose.msra.mxu0 0.0
        %2550 = vmatprep.subr.mxu0 0.0
        %2551 = vmatpush1.xpose.msra.mxu0 0.0
        %2552 = vmatprep.subr.mxu0 0.0
        %2553 = vmatpush1.xpose.msra.mxu0 0.0
        %2554 = vmatprep.subr.mxu0 0.0
        %2555 = vmatpush1.xpose.msra.mxu0 0.0
        %2556 = vmatprep.subr.mxu0 0.0
        %2557 = vmatpush1.xpose.msra.mxu0 0.0
        %2558 = vmatprep.subr.mxu0 0.0
        %2559 = vmatpush1.xpose.msra.mxu0 0.0
        %2560 = vmatprep.subr.mxu0 0.0
        %2561 = vmatpush1.xpose.msra.mxu0 0.0
        %2562 = vmatprep.subr.mxu0 0.0
        %2563 = vmatpush1.xpose.msra.mxu0 0.0
        %2564 = vmatprep.subr.mxu0 0.0
        %2565 = vmatpush1.xpose.msra.mxu0 0.0
        %2566 = vmatprep.subr.mxu0 0.0
        %2567 = vmatpush1.xpose.msra.mxu0 0.0
        %2568 = vmatprep.subr.mxu0 0.0
        %2569 = vmatpush1.xpose.msra.mxu0 0.0
        %2570 = vmatprep.subr.mxu0 0.0
        %2571 = vmatpush1.xpose.msra.mxu0 0.0
        %2572 = vmatprep.subr.mxu0 0.0
        %2573 = vmatpush1.xpose.msra.mxu0 0.0
        %2574 = vmatprep.subr.mxu0 0.0
        %2575 = vmatpush1.xpose.msra.mxu0 0.0
        %2576 = vmatprep.subr.mxu0 0.0
        %2577 = vmatpush1.xpose.msra.mxu0 0.0
        %2578 = vmatprep.subr.mxu0 0.0
        %2579 = vmatpush1.xpose.msra.mxu0 0.0
        %2580 = vmatprep.subr.mxu0 0.0
        %2581 = vmatpush1.xpose.msra.mxu0 0.0
        %2582 = vmatprep.subr.mxu0 0.0
        %2583 = vmatpush1.xpose.msra.mxu0 0.0
        %2584 = vmatprep.subr.mxu0 0.0
        %2585 = vmatpush1.xpose.msra.mxu0 0.0
        %2586 = vmatprep.subr.mxu0 0.0
        %2587 = vmatpush1.xpose.msra.mxu0 0.0
        %2588 = vmatprep.subr.mxu0 0.0
        %2589 = vmatpush1.xpose.msra.mxu0 0.0
        %2590 = vmatprep.subr.mxu0 0.0
        %2591 = vmatpush1.xpose.msra.mxu0 0.0
        %2592 = vmatprep.subr.mxu0 0.0
        %2593 = vmatpush1.xpose.msra.mxu0 0.0
        %2594 = vmatprep.mubr.f32.mxu0 0.0
        %2595 = vmatmul.mubr.f32.gmra.mrb[0].mxu0 %v2518
        %v2596 = vpop.f32.mrb[0].mxu0
        %v2597 = vadd.f32 0.0, %v2596
        %v2598 = vpop.f32.mrb[0].mxu0
        %2599 = vmatprep.mubr.f32.mxu0 0.0
        %2600 = vmatmul.mubr.f32.gmra.mrb[0].mxu0 %v2520
        %v2601 = vpop.f32.mrb[0].mxu0
        %v2602 = vadd.f32 0.0, %v2601
        %v2603 = vpop.f32.mrb[0].mxu0
        %2604 = vmatprep.mubr.f32.mxu0 0.0
        %2605 = vmatmul.mubr.f32.gmra.mrb[0].mxu0 %v2522
        %v2606 = vpop.f32.mrb[0].mxu0
        %v2607 = vadd.f32 0.0, %v2606
        %v2608 = vpop.f32.mrb[0].mxu0
        %2609 = vdwg.mxu0
        %v2610 = vsel %vm1057, %v2597, -inf
        %2611 = vmax.xlane.f32.xlu0 %v2610
        %v2612 = vpop.xlane.xlu0 %2611
        %v2613 = vsel %vm1057, %v2602, -inf
        %2614 = vmax.xlane.f32.xlu0 %v2613
        %v2615 = vpop.xlane.xlu0 %2614
        %v2616 = vsel %vm1064, %v2607, -inf
        %2617 = vmax.xlane.f32.xlu0 %v2616
        %v2618 = vpop.xlane.xlu0 %2617
        %v2619 = vsub.f32 %v2597, %v2612
        %v2620 = vsub.f32 %v2602, %v2615
        %v2621 = vsub.f32 %v2607, %v2618
        %v2622 = vmul.f32 %v2619, 1.442695
        %v2623 = vpow.pop %v2622
        %v2624 = vmul.f32 %v2620, 1.442695
        %v2625 = vpow.pop %v2624
        %v2626 = vmul.f32 %v2621, 1.442695
        %v2627 = vpow.pop %v2626
        %v2628 = vsel %vm1057, %v2623, 0.0
        %2629 = vadd.xlane.f32.xlu0 %v2628
        %v2630 = vpop.xlane.xlu0 %2629
        %v2631 = vsel %vm1057, %v2625, 0.0
        %2632 = vadd.xlane.f32.xlu0 %v2631
        %v2633 = vpop.xlane.xlu0 %2632
        %v2634 = vsel %vm1064, %v2627, 0.0
        %2635 = vadd.xlane.f32.xlu0 %v2634
        %v2636 = vpop.xlane.xlu0 %2635
        %v2637 = vrcp.pop %v2630
        %v2638 = vrcp.pop %v2633
        %v2639 = vrcp.pop %v2636
        %v2640 = vmul.f32 %v2623, %v2637
        %v2641 = vmul.f32 %v2625, %v2638
        %v2642 = vmul.f32 %v2627, %v2639
        %2643 = vrot.lane.b32.xlu0 %v2496, 64
        %v2644 = vpop.permute.xlu0 %2643
        %2645 = vrot.lane.b32.xlu0 %v2501, 64
        %v2646 = vpop.permute.xlu0 %2645
        %2647 = vrot.lane.b32.xlu0 %v2506, 64
        %v2648 = vpop.permute.xlu0 %2647
        %v2652 = vsel %vm1057, %v2640, 0
        %v2655 = vsel %vm1057, %v2641, 0
        %v2658 = vsel %vm1057, %v2642, 0
        %v2660 = vsel %vm650, %v2648, 0
        %2662 = vmatprep.subr.mxu0 0.0
        %2663 = vmatpush1.msra.mxu0 %v2644
        %2664 = vmatprep.subr.mxu0 0.0
        %2665 = vmatpush1.msra.mxu0 %v2646
        %2666 = vmatprep.subr.mxu0 0.0
        %2667 = vmatpush1.msra.mxu0 %v2660
        %2668 = vmatprep.subr.mxu0 0.0
        %2669 = vmatpush1.msra.mxu0 0.0
        %2670 = vmatprep.subr.mxu0 0.0
        %2671 = vmatpush1.msra.mxu0 0.0
        %2672 = vmatprep.subr.mxu0 0.0
        %2673 = vmatpush1.msra.mxu0 0.0
        %2674 = vmatprep.subr.mxu0 0.0
        %2675 = vmatpush1.msra.mxu0 0.0
        %2676 = vmatprep.subr.mxu0 0.0
        %2677 = vmatpush1.msra.mxu0 0.0
        %2678 = vmatprep.subr.mxu0 0.0
        %2679 = vmatpush1.msra.mxu0 0.0
        %2680 = vmatprep.subr.mxu0 0.0
        %2681 = vmatpush1.msra.mxu0 0.0
        %2682 = vmatprep.subr.mxu0 0.0
        %2683 = vmatpush1.msra.mxu0 0.0
        %2684 = vmatprep.subr.mxu0 0.0
        %2685 = vmatpush1.msra.mxu0 0.0
        %2686 = vmatprep.subr.mxu0 0.0
        %2687 = vmatpush1.msra.mxu0 0.0
        %2688 = vmatprep.subr.mxu0 0.0
        %2689 = vmatpush1.msra.mxu0 0.0
        %2690 = vmatprep.subr.mxu0 0.0
        %2691 = vmatpush1.msra.mxu0 0.0
        %2692 = vmatprep.subr.mxu0 0.0
        %2693 = vmatpush1.msra.mxu0 0.0
        %2694 = vmatprep.subr.mxu0 0.0
        %2695 = vmatpush1.msra.mxu0 0.0
        %2696 = vmatprep.subr.mxu0 0.0
        %2697 = vmatpush1.msra.mxu0 0.0
        %2698 = vmatprep.subr.mxu0 0.0
        %2699 = vmatpush1.msra.mxu0 0.0
        %2700 = vmatprep.subr.mxu0 0.0
        %2701 = vmatpush1.msra.mxu0 0.0
        %2702 = vmatprep.subr.mxu0 0.0
        %2703 = vmatpush1.msra.mxu0 0.0
        %2704 = vmatprep.subr.mxu0 0.0
        %2705 = vmatpush1.msra.mxu0 0.0
        %2706 = vmatprep.subr.mxu0 0.0
        %2707 = vmatpush1.msra.mxu0 0.0
        %2708 = vmatprep.subr.mxu0 0.0
        %2709 = vmatpush1.msra.mxu0 0.0
        %2710 = vmatprep.subr.mxu0 0.0
        %2711 = vmatpush1.msra.mxu0 0.0
        %2712 = vmatprep.subr.mxu0 0.0
        %2713 = vmatpush1.msra.mxu0 0.0
        %2714 = vmatprep.subr.mxu0 0.0
        %2715 = vmatpush1.msra.mxu0 0.0
        %2716 = vmatprep.subr.mxu0 0.0
        %2717 = vmatpush1.msra.mxu0 0.0
        %2718 = vmatprep.subr.mxu0 0.0
        %2719 = vmatpush1.msra.mxu0 0.0
        %2720 = vmatprep.subr.mxu0 0.0
        %2721 = vmatpush1.msra.mxu0 0.0
        %2722 = vmatprep.subr.mxu0 0.0
        %2723 = vmatpush1.msra.mxu0 0.0
        %2724 = vmatprep.subr.mxu0 0.0
        %2725 = vmatpush1.msra.mxu0 0.0
        %2726 = vmatprep.mubr.f32.mxu0 0.0
        %2727 = vmatmul.mubr.f32.gmra.mrb[0].mxu0 %v2652
        %v2728 = vpop.f32.mrb[0].mxu0
        %v2729 = vadd.f32 0.0, %v2728
        %v2730 = vpop.f32.mrb[0].mxu0
        %2731 = vmatprep.mubr.f32.mxu0 0.0
        %2732 = vmatmul.mubr.f32.gmra.mrb[0].mxu0 %v2655
        %v2733 = vpop.f32.mrb[0].mxu0
        %v2734 = vadd.f32 0.0, %v2733
        %v2735 = vpop.f32.mrb[0].mxu0
        %2736 = vmatprep.mubr.f32.mxu0 0.0
        %2737 = vmatmul.mubr.f32.gmra.mrb[0].mxu0 %v2658
        %v2738 = vpop.f32.mrb[0].mxu0
        %v2739 = vadd.f32 0.0, %v2738
        %v2740 = vpop.f32.mrb[0].mxu0
        %2741 = vdwg.mxu0
        %2742 = vrot.lane.b32.xlu0 %v2496, 120
        %v2743 = vpop.permute.xlu0 %2742
        %2744 = vrot.lane.b32.xlu0 %v2501, 120
        %v2745 = vpop.permute.xlu0 %2744
        %2746 = vrot.lane.b32.xlu0 %v2506, 120
        %v2747 = vpop.permute.xlu0 %2746
        %2748 = vrot.lane.b32.xlu0 %v2496, 88
        %v2749 = vpop.permute.xlu0 %2748
        %2750 = vrot.lane.b32.xlu0 %v2501, 88
        %v2751 = vpop.permute.xlu0 %2750
        %2752 = vrot.lane.b32.xlu0 %v2506, 88
        %v2753 = vpop.permute.xlu0 %2752
        %v2754 = vsel %vm964, %v2743, 0
        %v2756 = vsel %vm964, %v2745, 0
        %v2758 = vsel %vm964, %v2747, 0
        %v2760 = vsel %vm964, %v2749, 0
        %v2762 = vsel %vm964, %v2751, 0
        %v2764 = vsel %vm964, %v2753, 0
        %2766 = vmatprep.subr.mxu0 0.0
        %2767 = vmatpush1.xpose.msra.mxu0 %v2760
        %2768 = vmatprep.subr.mxu0 0.0
        %2769 = vmatpush1.xpose.msra.mxu0 %v2762
        %2770 = vmatprep.subr.mxu0 0.0
        %2771 = vmatpush1.xpose.msra.mxu0 %v2764
        %2772 = vmatprep.subr.mxu0 0.0
        %2773 = vmatpush1.xpose.msra.mxu0 0.0
        %2774 = vmatprep.subr.mxu0 0.0
        %2775 = vmatpush1.xpose.msra.mxu0 0.0
        %2776 = vmatprep.subr.mxu0 0.0
        %2777 = vmatpush1.xpose.msra.mxu0 0.0
        %2778 = vmatprep.subr.mxu0 0.0
        %2779 = vmatpush1.xpose.msra.mxu0 0.0
        %2780 = vmatprep.subr.mxu0 0.0
        %2781 = vmatpush1.xpose.msra.mxu0 0.0
        %2782 = vmatprep.subr.mxu0 0.0
        %2783 = vmatpush1.xpose.msra.mxu0 0.0
        %2784 = vmatprep.subr.mxu0 0.0
        %2785 = vmatpush1.xpose.msra.mxu0 0.0
        %2786 = vmatprep.subr.mxu0 0.0
        %2787 = vmatpush1.xpose.msra.mxu0 0.0
        %2788 = vmatprep.subr.mxu0 0.0
        %2789 = vmatpush1.xpose.msra.mxu0 0.0
        %2790 = vmatprep.subr.mxu0 0.0
        %2791 = vmatpush1.xpose.msra.mxu0 0.0
        %2792 = vmatprep.subr.mxu0 0.0
        %2793 = vmatpush1.xpose.msra.mxu0 0.0
        %2794 = vmatprep.subr.mxu0 0.0
        %2795 = vmatpush1.xpose.msra.mxu0 0.0
        %2796 = vmatprep.subr.mxu0 0.0
        %2797 = vmatpush1.xpose.msra.mxu0 0.0
        %2798 = vmatprep.subr.mxu0 0.0
        %2799 = vmatpush1.xpose.msra.mxu0 0.0
        %2800 = vmatprep.subr.mxu0 0.0
        %2801 = vmatpush1.xpose.msra.mxu0 0.0
        %2802 = vmatprep.subr.mxu0 0.0
        %2803 = vmatpush1.xpose.msra.mxu0 0.0
        %2804 = vmatprep.subr.mxu0 0.0
        %2805 = vmatpush1.xpose.msra.mxu0 0.0
        %2806 = vmatprep.subr.mxu0 0.0
        %2807 = vmatpush1.xpose.msra.mxu0 0.0
        %2808 = vmatprep.subr.mxu0 0.0
        %2809 = vmatpush1.xpose.msra.mxu0 0.0
        %2810 = vmatprep.subr.mxu0 0.0
        %2811 = vmatpush1.xpose.msra.mxu0 0.0
        %2812 = vmatprep.subr.mxu0 0.0
        %2813 = vmatpush1.xpose.msra.mxu0 0.0
        %2814 = vmatprep.subr.mxu0 0.0
        %2815 = vmatpush1.xpose.msra.mxu0 0.0
        %2816 = vmatprep.subr.mxu0 0.0
        %2817 = vmatpush1.xpose.msra.mxu0 0.0
        %2818 = vmatprep.subr.mxu0 0.0
        %2819 = vmatpush1.xpose.msra.mxu0 0.0
        %2820 = vmatprep.subr.mxu0 0.0
        %2821 = vmatpush1.xpose.msra.mxu0 0.0
        %2822 = vmatprep.subr.mxu0 0.0
        %2823 = vmatpush1.xpose.msra.mxu0 0.0
        %2824 = vmatprep.subr.mxu0 0.0
        %2825 = vmatpush1.xpose.msra.mxu0 0.0
        %2826 = vmatprep.subr.mxu0 0.0
        %2827 = vmatpush1.xpose.msra.mxu0 0.0
        %2828 = vmatprep.subr.mxu0 0.0
        %2829 = vmatpush1.xpose.msra.mxu0 0.0
        %2830 = vmatprep.mubr.f32.mxu0 0.0
        %2831 = vmatmul.mubr.f32.gmra.mrb[0].mxu0 %v2754
        %v2832 = vpop.f32.mrb[0].mxu0
        %v2833 = vadd.f32 0.0, %v2832
        %v2834 = vpop.f32.mrb[0].mxu0
        %2835 = vmatprep.mubr.f32.mxu0 0.0
        %2836 = vmatmul.mubr.f32.gmra.mrb[0].mxu0 %v2756
        %v2837 = vpop.f32.mrb[0].mxu0
        %v2838 = vadd.f32 0.0, %v2837
        %v2839 = vpop.f32.mrb[0].mxu0
        %2840 = vmatprep.mubr.f32.mxu0 0.0
        %2841 = vmatmul.mubr.f32.gmra.mrb[0].mxu0 %v2758
        %v2842 = vpop.f32.mrb[0].mxu0
        %v2843 = vadd.f32 0.0, %v2842
        %v2844 = vpop.f32.mrb[0].mxu0
        %2845 = vdwg.mxu0
        %v2846 = vsel %vm1057, %v2833, -inf
        %2847 = vmax.xlane.f32.xlu0 %v2846
        %v2848 = vpop.xlane.xlu0 %2847
        %v2849 = vsel %vm1057, %v2838, -inf
        %2850 = vmax.xlane.f32.xlu0 %v2849
        %v2851 = vpop.xlane.xlu0 %2850
        %v2852 = vsel %vm1064, %v2843, -inf
        %2853 = vmax.xlane.f32.xlu0 %v2852
        %v2854 = vpop.xlane.xlu0 %2853
        %v2855 = vsub.f32 %v2833, %v2848
        %v2856 = vsub.f32 %v2838, %v2851
        %v2857 = vsub.f32 %v2843, %v2854
        %v2858 = vmul.f32 %v2855, 1.442695
        %v2859 = vpow.pop %v2858
        %v2860 = vmul.f32 %v2856, 1.442695
        %v2861 = vpow.pop %v2860
        %v2862 = vmul.f32 %v2857, 1.442695
        %v2863 = vpow.pop %v2862
        %v2864 = vsel %vm1057, %v2859, 0.0
        %2865 = vadd.xlane.f32.xlu0 %v2864
        %v2866 = vpop.xlane.xlu0 %2865
        %v2867 = vsel %vm1057, %v2861, 0.0
        %2868 = vadd.xlane.f32.xlu0 %v2867
        %v2869 = vpop.xlane.xlu0 %2868
        %v2870 = vsel %vm1064, %v2863, 0.0
        %2871 = vadd.xlane.f32.xlu0 %v2870
        %v2872 = vpop.xlane.xlu0 %2871
        %v2873 = vrcp.pop %v2866
        %v2874 = vrcp.pop %v2869
        %v2875 = vrcp.pop %v2872
        %v2876 = vmul.f32 %v2859, %v2873
        %v2877 = vmul.f32 %v2861, %v2874
        %v2878 = vmul.f32 %v2863, %v2875
        %2879 = vrot.lane.b32.xlu0 %v2496, 56
        %v2880 = vpop.permute.xlu0 %2879
        %2881 = vrot.lane.b32.xlu0 %v2501, 56
        %v2882 = vpop.permute.xlu0 %2881
        %2883 = vrot.lane.b32.xlu0 %v2506, 56
        %v2884 = vpop.permute.xlu0 %2883
        %v2888 = vsel %vm1057, %v2876, 0
        %v2891 = vsel %vm1057, %v2877, 0
        %v2894 = vsel %vm1057, %v2878, 0
        %v2896 = vsel %vm650, %v2884, 0
        %2898 = vmatprep.subr.mxu0 0.0
        %2899 = vmatpush1.msra.mxu0 %v2880
        %2900 = vmatprep.subr.mxu0 0.0
        %2901 = vmatpush1.msra.mxu0 %v2882
        %2902 = vmatprep.subr.mxu0 0.0
        %2903 = vmatpush1.msra.mxu0 %v2896
        %2904 = vmatprep.subr.mxu0 0.0
        %2905 = vmatpush1.msra.mxu0 0.0
        %2906 = vmatprep.subr.mxu0 0.0
        %2907 = vmatpush1.msra.mxu0 0.0
        %2908 = vmatprep.subr.mxu0 0.0
        %2909 = vmatpush1.msra.mxu0 0.0
        %2910 = vmatprep.subr.mxu0 0.0
        %2911 = vmatpush1.msra.mxu0 0.0
        %2912 = vmatprep.subr.mxu0 0.0
        %2913 = vmatpush1.msra.mxu0 0.0
        %2914 = vmatprep.subr.mxu0 0.0
        %2915 = vmatpush1.msra.mxu0 0.0
        %2916 = vmatprep.subr.mxu0 0.0
        %2917 = vmatpush1.msra.mxu0 0.0
        %2918 = vmatprep.subr.mxu0 0.0
        %2919 = vmatpush1.msra.mxu0 0.0
        %2920 = vmatprep.subr.mxu0 0.0
        %2921 = vmatpush1.msra.mxu0 0.0
        %2922 = vmatprep.subr.mxu0 0.0
        %2923 = vmatpush1.msra.mxu0 0.0
        %2924 = vmatprep.subr.mxu0 0.0
        %2925 = vmatpush1.msra.mxu0 0.0
        %2926 = vmatprep.subr.mxu0 0.0
        %2927 = vmatpush1.msra.mxu0 0.0
        %2928 = vmatprep.subr.mxu0 0.0
        %2929 = vmatpush1.msra.mxu0 0.0
        %2930 = vmatprep.subr.mxu0 0.0
        %2931 = vmatpush1.msra.mxu0 0.0
        %2932 = vmatprep.subr.mxu0 0.0
        %2933 = vmatpush1.msra.mxu0 0.0
        %2934 = vmatprep.subr.mxu0 0.0
        %2935 = vmatpush1.msra.mxu0 0.0
        %2936 = vmatprep.subr.mxu0 0.0
        %2937 = vmatpush1.msra.mxu0 0.0
        %2938 = vmatprep.subr.mxu0 0.0
        %2939 = vmatpush1.msra.mxu0 0.0
        %2940 = vmatprep.subr.mxu0 0.0
        %2941 = vmatpush1.msra.mxu0 0.0
        %2942 = vmatprep.subr.mxu0 0.0
        %2943 = vmatpush1.msra.mxu0 0.0
        %2944 = vmatprep.subr.mxu0 0.0
        %2945 = vmatpush1.msra.mxu0 0.0
        %2946 = vmatprep.subr.mxu0 0.0
        %2947 = vmatpush1.msra.mxu0 0.0
        %2948 = vmatprep.subr.mxu0 0.0
        %2949 = vmatpush1.msra.mxu0 0.0
        %2950 = vmatprep.subr.mxu0 0.0
        %2951 = vmatpush1.msra.mxu0 0.0
        %2952 = vmatprep.subr.mxu0 0.0
        %2953 = vmatpush1.msra.mxu0 0.0
        %2954 = vmatprep.subr.mxu0 0.0
        %2955 = vmatpush1.msra.mxu0 0.0
        %2956 = vmatprep.subr.mxu0 0.0
        %2957 = vmatpush1.msra.mxu0 0.0
        %2958 = vmatprep.subr.mxu0 0.0
        %2959 = vmatpush1.msra.mxu0 0.0
        %2960 = vmatprep.subr.mxu0 0.0
        %2961 = vmatpush1.msra.mxu0 0.0
        %2962 = vmatprep.mubr.f32.mxu0 0.0
        %2963 = vmatmul.mubr.f32.gmra.mrb[0].mxu0 %v2888
        %v2964 = vpop.f32.mrb[0].mxu0
        %v2965 = vadd.f32 0.0, %v2964
        %v2966 = vpop.f32.mrb[0].mxu0
        %2967 = vmatprep.mubr.f32.mxu0 0.0
        %2968 = vmatmul.mubr.f32.gmra.mrb[0].mxu0 %v2891
        %v2969 = vpop.f32.mrb[0].mxu0
        %v2970 = vadd.f32 0.0, %v2969
        %v2971 = vpop.f32.mrb[0].mxu0
        %2972 = vmatprep.mubr.f32.mxu0 0.0
        %2973 = vmatmul.mubr.f32.gmra.mrb[0].mxu0 %v2894
        %v2974 = vpop.f32.mrb[0].mxu0
        %v2975 = vadd.f32 0.0, %v2974
        %v2976 = vpop.f32.mrb[0].mxu0
        %2977 = vdwg.mxu0
        %2978 = vrot.lane.b32.xlu0 %v2496, 112
        %v2979 = vpop.permute.xlu0 %2978
        %2980 = vrot.lane.b32.xlu0 %v2501, 112
        %v2981 = vpop.permute.xlu0 %2980
        %2982 = vrot.lane.b32.xlu0 %v2506, 112
        %v2983 = vpop.permute.xlu0 %2982
        %2984 = vrot.lane.b32.xlu0 %v2496, 80
        %v2985 = vpop.permute.xlu0 %2984
        %2986 = vrot.lane.b32.xlu0 %v2501, 80
        %v2987 = vpop.permute.xlu0 %2986
        %2988 = vrot.lane.b32.xlu0 %v2506, 80
        %v2989 = vpop.permute.xlu0 %2988
        %v2990 = vsel %vm964, %v2979, 0
        %v2992 = vsel %vm964, %v2981, 0
        %v2994 = vsel %vm964, %v2983, 0
        %v2996 = vsel %vm964, %v2985, 0
        %v2998 = vsel %vm964, %v2987, 0
        %v3000 = vsel %vm964, %v2989, 0
        %3002 = vmatprep.subr.mxu0 0.0
        %3003 = vmatpush1.xpose.msra.mxu0 %v2996
        %3004 = vmatprep.subr.mxu0 0.0
        %3005 = vmatpush1.xpose.msra.mxu0 %v2998
        %3006 = vmatprep.subr.mxu0 0.0
        %3007 = vmatpush1.xpose.msra.mxu0 %v3000
        %3008 = vmatprep.subr.mxu0 0.0
        %3009 = vmatpush1.xpose.msra.mxu0 0.0
        %3010 = vmatprep.subr.mxu0 0.0
        %3011 = vmatpush1.xpose.msra.mxu0 0.0
        %3012 = vmatprep.subr.mxu0 0.0
        %3013 = vmatpush1.xpose.msra.mxu0 0.0
        %3014 = vmatprep.subr.mxu0 0.0
        %3015 = vmatpush1.xpose.msra.mxu0 0.0
        %3016 = vmatprep.subr.mxu0 0.0
        %3017 = vmatpush1.xpose.msra.mxu0 0.0
        %3018 = vmatprep.subr.mxu0 0.0
        %3019 = vmatpush1.xpose.msra.mxu0 0.0
        %3020 = vmatprep.subr.mxu0 0.0
        %3021 = vmatpush1.xpose.msra.mxu0 0.0
        %3022 = vmatprep.subr.mxu0 0.0
        %3023 = vmatpush1.xpose.msra.mxu0 0.0
        %3024 = vmatprep.subr.mxu0 0.0
        %3025 = vmatpush1.xpose.msra.mxu0 0.0
        %3026 = vmatprep.subr.mxu0 0.0
        %3027 = vmatpush1.xpose.msra.mxu0 0.0
        %3028 = vmatprep.subr.mxu0 0.0
        %3029 = vmatpush1.xpose.msra.mxu0 0.0
        %3030 = vmatprep.subr.mxu0 0.0
        %3031 = vmatpush1.xpose.msra.mxu0 0.0
        %3032 = vmatprep.subr.mxu0 0.0
        %3033 = vmatpush1.xpose.msra.mxu0 0.0
        %3034 = vmatprep.subr.mxu0 0.0
        %3035 = vmatpush1.xpose.msra.mxu0 0.0
        %3036 = vmatprep.subr.mxu0 0.0
        %3037 = vmatpush1.xpose.msra.mxu0 0.0
        %3038 = vmatprep.subr.mxu0 0.0
        %3039 = vmatpush1.xpose.msra.mxu0 0.0
        %3040 = vmatprep.subr.mxu0 0.0
        %3041 = vmatpush1.xpose.msra.mxu0 0.0
        %3042 = vmatprep.subr.mxu0 0.0
        %3043 = vmatpush1.xpose.msra.mxu0 0.0
        %3044 = vmatprep.subr.mxu0 0.0
        %3045 = vmatpush1.xpose.msra.mxu0 0.0
        %3046 = vmatprep.subr.mxu0 0.0
        %3047 = vmatpush1.xpose.msra.mxu0 0.0
        %3048 = vmatprep.subr.mxu0 0.0
        %3049 = vmatpush1.xpose.msra.mxu0 0.0
        %3050 = vmatprep.subr.mxu0 0.0
        %3051 = vmatpush1.xpose.msra.mxu0 0.0
        %3052 = vmatprep.subr.mxu0 0.0
        %3053 = vmatpush1.xpose.msra.mxu0 0.0
        %3054 = vmatprep.subr.mxu0 0.0
        %3055 = vmatpush1.xpose.msra.mxu0 0.0
        %3056 = vmatprep.subr.mxu0 0.0
        %3057 = vmatpush1.xpose.msra.mxu0 0.0
        %3058 = vmatprep.subr.mxu0 0.0
        %3059 = vmatpush1.xpose.msra.mxu0 0.0
        %3060 = vmatprep.subr.mxu0 0.0
        %3061 = vmatpush1.xpose.msra.mxu0 0.0
        %3062 = vmatprep.subr.mxu0 0.0
        %3063 = vmatpush1.xpose.msra.mxu0 0.0
        %3064 = vmatprep.subr.mxu0 0.0
        %3065 = vmatpush1.xpose.msra.mxu0 0.0
        %3066 = vmatprep.mubr.f32.mxu0 0.0
        %3067 = vmatmul.mubr.f32.gmra.mrb[0].mxu0 %v2990
        %v3068 = vpop.f32.mrb[0].mxu0
        %v3069 = vadd.f32 0.0, %v3068
        %v3070 = vpop.f32.mrb[0].mxu0
        %3071 = vmatprep.mubr.f32.mxu0 0.0
        %3072 = vmatmul.mubr.f32.gmra.mrb[0].mxu0 %v2992
        %v3073 = vpop.f32.mrb[0].mxu0
        %v3074 = vadd.f32 0.0, %v3073
        %v3075 = vpop.f32.mrb[0].mxu0
        %3076 = vmatprep.mubr.f32.mxu0 0.0
        %3077 = vmatmul.mubr.f32.gmra.mrb[0].mxu0 %v2994
        %v3078 = vpop.f32.mrb[0].mxu0
        %v3079 = vadd.f32 0.0, %v3078
        %v3080 = vpop.f32.mrb[0].mxu0
        %3081 = vdwg.mxu0
        %v3082 = vsel %vm1057, %v3069, -inf
        %3083 = vmax.xlane.f32.xlu0 %v3082
        %v3084 = vpop.xlane.xlu0 %3083
        %v3085 = vsel %vm1057, %v3074, -inf
        %3086 = vmax.xlane.f32.xlu0 %v3085
        %v3087 = vpop.xlane.xlu0 %3086
        %v3088 = vsel %vm1064, %v3079, -inf
        %3089 = vmax.xlane.f32.xlu0 %v3088
        %v3090 = vpop.xlane.xlu0 %3089
        %v3091 = vsub.f32 %v3069, %v3084
        %v3092 = vsub.f32 %v3074, %v3087
        %v3093 = vsub.f32 %v3079, %v3090
        %v3094 = vmul.f32 %v3091, 1.442695
        %v3095 = vpow.pop %v3094
        %v3096 = vmul.f32 %v3092, 1.442695
        %v3097 = vpow.pop %v3096
        %v3098 = vmul.f32 %v3093, 1.442695
        %v3099 = vpow.pop %v3098
        %v3100 = vsel %vm1057, %v3095, 0.0
        %3101 = vadd.xlane.f32.xlu0 %v3100
        %v3102 = vpop.xlane.xlu0 %3101
        %v3103 = vsel %vm1057, %v3097, 0.0
        %3104 = vadd.xlane.f32.xlu0 %v3103
        %v3105 = vpop.xlane.xlu0 %3104
        %v3106 = vsel %vm1064, %v3099, 0.0
        %3107 = vadd.xlane.f32.xlu0 %v3106
        %v3108 = vpop.xlane.xlu0 %3107
        %v3109 = vrcp.pop %v3102
        %v3110 = vrcp.pop %v3105
        %v3111 = vrcp.pop %v3108
        %v3112 = vmul.f32 %v3095, %v3109
        %v3113 = vmul.f32 %v3097, %v3110
        %v3114 = vmul.f32 %v3099, %v3111
        %3115 = vrot.lane.b32.xlu0 %v2496, 48
        %v3116 = vpop.permute.xlu0 %3115
        %3117 = vrot.lane.b32.xlu0 %v2501, 48
        %v3118 = vpop.permute.xlu0 %3117
        %3119 = vrot.lane.b32.xlu0 %v2506, 48
        %v3120 = vpop.permute.xlu0 %3119
        %v3124 = vsel %vm1057, %v3112, 0
        %v3127 = vsel %vm1057, %v3113, 0
        %v3130 = vsel %vm1057, %v3114, 0
        %v3132 = vsel %vm650, %v3120, 0
        %3134 = vmatprep.subr.mxu0 0.0
        %3135 = vmatpush1.msra.mxu0 %v3116
        %3136 = vmatprep.subr.mxu0 0.0
        %3137 = vmatpush1.msra.mxu0 %v3118
        %3138 = vmatprep.subr.mxu0 0.0
        %3139 = vmatpush1.msra.mxu0 %v3132
        %3140 = vmatprep.subr.mxu0 0.0
        %3141 = vmatpush1.msra.mxu0 0.0
        %3142 = vmatprep.subr.mxu0 0.0
        %3143 = vmatpush1.msra.mxu0 0.0
        %3144 = vmatprep.subr.mxu0 0.0
        %3145 = vmatpush1.msra.mxu0 0.0
        %3146 = vmatprep.subr.mxu0 0.0
        %3147 = vmatpush1.msra.mxu0 0.0
        %3148 = vmatprep.subr.mxu0 0.0
        %3149 = vmatpush1.msra.mxu0 0.0
        %3150 = vmatprep.subr.mxu0 0.0
        %3151 = vmatpush1.msra.mxu0 0.0
        %3152 = vmatprep.subr.mxu0 0.0
        %3153 = vmatpush1.msra.mxu0 0.0
        %3154 = vmatprep.subr.mxu0 0.0
        %3155 = vmatpush1.msra.mxu0 0.0
        %3156 = vmatprep.subr.mxu0 0.0
        %3157 = vmatpush1.msra.mxu0 0.0
        %3158 = vmatprep.subr.mxu0 0.0
        %3159 = vmatpush1.msra.mxu0 0.0
        %3160 = vmatprep.subr.mxu0 0.0
        %3161 = vmatpush1.msra.mxu0 0.0
        %3162 = vmatprep.subr.mxu0 0.0
        %3163 = vmatpush1.msra.mxu0 0.0
        %3164 = vmatprep.subr.mxu0 0.0
        %3165 = vmatpush1.msra.mxu0 0.0
        %3166 = vmatprep.subr.mxu0 0.0
        %3167 = vmatpush1.msra.mxu0 0.0
        %3168 = vmatprep.subr.mxu0 0.0
        %3169 = vmatpush1.msra.mxu0 0.0
        %3170 = vmatprep.subr.mxu0 0.0
        %3171 = vmatpush1.msra.mxu0 0.0
        %3172 = vmatprep.subr.mxu0 0.0
        %3173 = vmatpush1.msra.mxu0 0.0
        %3174 = vmatprep.subr.mxu0 0.0
        %3175 = vmatpush1.msra.mxu0 0.0
        %3176 = vmatprep.subr.mxu0 0.0
        %3177 = vmatpush1.msra.mxu0 0.0
        %3178 = vmatprep.subr.mxu0 0.0
        %3179 = vmatpush1.msra.mxu0 0.0
        %3180 = vmatprep.subr.mxu0 0.0
        %3181 = vmatpush1.msra.mxu0 0.0
        %3182 = vmatprep.subr.mxu0 0.0
        %3183 = vmatpush1.msra.mxu0 0.0
        %3184 = vmatprep.subr.mxu0 0.0
        %3185 = vmatpush1.msra.mxu0 0.0
        %3186 = vmatprep.subr.mxu0 0.0
        %3187 = vmatpush1.msra.mxu0 0.0
        %3188 = vmatprep.subr.mxu0 0.0
        %3189 = vmatpush1.msra.mxu0 0.0
        %3190 = vmatprep.subr.mxu0 0.0
        %3191 = vmatpush1.msra.mxu0 0.0
        %3192 = vmatprep.subr.mxu0 0.0
        %3193 = vmatpush1.msra.mxu0 0.0
        %3194 = vmatprep.subr.mxu0 0.0
        %3195 = vmatpush1.msra.mxu0 0.0
        %3196 = vmatprep.subr.mxu0 0.0
        %3197 = vmatpush1.msra.mxu0 0.0
        %3198 = vmatprep.mubr.f32.mxu0 0.0
        %3199 = vmatmul.mubr.f32.gmra.mrb[0].mxu0 %v3124
        %v3200 = vpop.f32.mrb[0].mxu0
        %v3201 = vadd.f32 0.0, %v3200
        %v3202 = vpop.f32.mrb[0].mxu0
        %3203 = vmatprep.mubr.f32.mxu0 0.0
        %3204 = vmatmul.mubr.f32.gmra.mrb[0].mxu0 %v3127
        %v3205 = vpop.f32.mrb[0].mxu0
        %v3206 = vadd.f32 0.0, %v3205
        %v3207 = vpop.f32.mrb[0].mxu0
        %3208 = vmatprep.mubr.f32.mxu0 0.0
        %3209 = vmatmul.mubr.f32.gmra.mrb[0].mxu0 %v3130
        %v3210 = vpop.f32.mrb[0].mxu0
        %v3211 = vadd.f32 0.0, %v3210
        %v3212 = vpop.f32.mrb[0].mxu0
        %3213 = vdwg.mxu0
        %3214 = vrot.lane.b32.xlu0 %v2496, 104
        %v3215 = vpop.permute.xlu0 %3214
        %3216 = vrot.lane.b32.xlu0 %v2501, 104
        %v3217 = vpop.permute.xlu0 %3216
        %3218 = vrot.lane.b32.xlu0 %v2506, 104
        %v3219 = vpop.permute.xlu0 %3218
        %3220 = vrot.lane.b32.xlu0 %v2496, 72
        %v3221 = vpop.permute.xlu0 %3220
        %3222 = vrot.lane.b32.xlu0 %v2501, 72
        %v3223 = vpop.permute.xlu0 %3222
        %3224 = vrot.lane.b32.xlu0 %v2506, 72
        %v3225 = vpop.permute.xlu0 %3224
        %v3226 = vsel %vm964, %v3215, 0
        %v3228 = vsel %vm964, %v3217, 0
        %v3230 = vsel %vm964, %v3219, 0
        %v3232 = vsel %vm964, %v3221, 0
        %v3234 = vsel %vm964, %v3223, 0
        %v3236 = vsel %vm964, %v3225, 0
        %3238 = vmatprep.subr.mxu0 0.0
        %3239 = vmatpush1.xpose.msra.mxu0 %v3232
        %3240 = vmatprep.subr.mxu0 0.0
        %3241 = vmatpush1.xpose.msra.mxu0 %v3234
        %3242 = vmatprep.subr.mxu0 0.0
        %3243 = vmatpush1.xpose.msra.mxu0 %v3236
        %3244 = vmatprep.subr.mxu0 0.0
        %3245 = vmatpush1.xpose.msra.mxu0 0.0
        %3246 = vmatprep.subr.mxu0 0.0
        %3247 = vmatpush1.xpose.msra.mxu0 0.0
        %3248 = vmatprep.subr.mxu0 0.0
        %3249 = vmatpush1.xpose.msra.mxu0 0.0
        %3250 = vmatprep.subr.mxu0 0.0
        %3251 = vmatpush1.xpose.msra.mxu0 0.0
        %3252 = vmatprep.subr.mxu0 0.0
        %3253 = vmatpush1.xpose.msra.mxu0 0.0
        %3254 = vmatprep.subr.mxu0 0.0
        %3255 = vmatpush1.xpose.msra.mxu0 0.0
        %3256 = vmatprep.subr.mxu0 0.0
        %3257 = vmatpush1.xpose.msra.mxu0 0.0
        %3258 = vmatprep.subr.mxu0 0.0
        %3259 = vmatpush1.xpose.msra.mxu0 0.0
        %3260 = vmatprep.subr.mxu0 0.0
        %3261 = vmatpush1.xpose.msra.mxu0 0.0
        %3262 = vmatprep.subr.mxu0 0.0
        %3263 = vmatpush1.xpose.msra.mxu0 0.0
        %3264 = vmatprep.subr.mxu0 0.0
        %3265 = vmatpush1.xpose.msra.mxu0 0.0
        %3266 = vmatprep.subr.mxu0 0.0
        %3267 = vmatpush1.xpose.msra.mxu0 0.0
        %3268 = vmatprep.subr.mxu0 0.0
        %3269 = vmatpush1.xpose.msra.mxu0 0.0
        %3270 = vmatprep.subr.mxu0 0.0
        %3271 = vmatpush1.xpose.msra.mxu0 0.0
        %3272 = vmatprep.subr.mxu0 0.0
        %3273 = vmatpush1.xpose.msra.mxu0 0.0
        %3274 = vmatprep.subr.mxu0 0.0
        %3275 = vmatpush1.xpose.msra.mxu0 0.0
        %3276 = vmatprep.subr.mxu0 0.0
        %3277 = vmatpush1.xpose.msra.mxu0 0.0
        %3278 = vmatprep.subr.mxu0 0.0
        %3279 = vmatpush1.xpose.msra.mxu0 0.0
        %3280 = vmatprep.subr.mxu0 0.0
        %3281 = vmatpush1.xpose.msra.mxu0 0.0
        %3282 = vmatprep.subr.mxu0 0.0
        %3283 = vmatpush1.xpose.msra.mxu0 0.0
        %3284 = vmatprep.subr.mxu0 0.0
        %3285 = vmatpush1.xpose.msra.mxu0 0.0
        %3286 = vmatprep.subr.mxu0 0.0
        %3287 = vmatpush1.xpose.msra.mxu0 0.0
        %3288 = vmatprep.subr.mxu0 0.0
        %3289 = vmatpush1.xpose.msra.mxu0 0.0
        %3290 = vmatprep.subr.mxu0 0.0
        %3291 = vmatpush1.xpose.msra.mxu0 0.0
        %3292 = vmatprep.subr.mxu0 0.0
        %3293 = vmatpush1.xpose.msra.mxu0 0.0
        %3294 = vmatprep.subr.mxu0 0.0
        %3295 = vmatpush1.xpose.msra.mxu0 0.0
        %3296 = vmatprep.subr.mxu0 0.0
        %3297 = vmatpush1.xpose.msra.mxu0 0.0
        %3298 = vmatprep.subr.mxu0 0.0
        %3299 = vmatpush1.xpose.msra.mxu0 0.0
        %3300 = vmatprep.subr.mxu0 0.0
        %3301 = vmatpush1.xpose.msra.mxu0 0.0
        %3302 = vmatprep.mubr.f32.mxu0 0.0
        %3303 = vmatmul.mubr.f32.gmra.mrb[0].mxu0 %v3226
        %v3304 = vpop.f32.mrb[0].mxu0
        %v3305 = vadd.f32 0.0, %v3304
        %v3306 = vpop.f32.mrb[0].mxu0
        %3307 = vmatprep.mubr.f32.mxu0 0.0
        %3308 = vmatmul.mubr.f32.gmra.mrb[0].mxu0 %v3228
        %v3309 = vpop.f32.mrb[0].mxu0
        %v3310 = vadd.f32 0.0, %v3309
        %v3311 = vpop.f32.mrb[0].mxu0
        %3312 = vmatprep.mubr.f32.mxu0 0.0
        %3313 = vmatmul.mubr.f32.gmra.mrb[0].mxu0 %v3230
        %v3314 = vpop.f32.mrb[0].mxu0
        %v3315 = vadd.f32 0.0, %v3314
        %v3316 = vpop.f32.mrb[0].mxu0
        %3317 = vdwg.mxu0
        %v3318 = vsel %vm1057, %v3305, -inf
        %3319 = vmax.xlane.f32.xlu0 %v3318
        %v3320 = vpop.xlane.xlu0 %3319
        %v3321 = vsel %vm1057, %v3310, -inf
        %3322 = vmax.xlane.f32.xlu0 %v3321
        %v3323 = vpop.xlane.xlu0 %3322
        %v3324 = vsel %vm1064, %v3315, -inf
        %3325 = vmax.xlane.f32.xlu0 %v3324
        %v3326 = vpop.xlane.xlu0 %3325
        %v3327 = vsub.f32 %v3305, %v3320
        %v3328 = vsub.f32 %v3310, %v3323
        %v3329 = vsub.f32 %v3315, %v3326
        %v3330 = vmul.f32 %v3327, 1.442695
        %v3331 = vpow.pop %v3330
        %v3332 = vmul.f32 %v3328, 1.442695
        %v3333 = vpow.pop %v3332
        %v3334 = vmul.f32 %v3329, 1.442695
        %v3335 = vpow.pop %v3334
        %v3336 = vsel %vm1057, %v3331, 0.0
        %3337 = vadd.xlane.f32.xlu0 %v3336
        %v3338 = vpop.xlane.xlu0 %3337
        %v3339 = vsel %vm1057, %v3333, 0.0
        %3340 = vadd.xlane.f32.xlu0 %v3339
        %v3341 = vpop.xlane.xlu0 %3340
        %v3342 = vsel %vm1064, %v3335, 0.0
        %3343 = vadd.xlane.f32.xlu0 %v3342
        %v3344 = vpop.xlane.xlu0 %3343
        %v3345 = vrcp.pop %v3338
        %v3346 = vrcp.pop %v3341
        %v3347 = vrcp.pop %v3344
        %v3348 = vmul.f32 %v3331, %v3345
        %v3349 = vmul.f32 %v3333, %v3346
        %v3350 = vmul.f32 %v3335, %v3347
        %3351 = vrot.lane.b32.xlu0 %v2496, 40
        %v3352 = vpop.permute.xlu0 %3351
        %3353 = vrot.lane.b32.xlu0 %v2501, 40
        %v3354 = vpop.permute.xlu0 %3353
        %3355 = vrot.lane.b32.xlu0 %v2506, 40
        %v3356 = vpop.permute.xlu0 %3355
        %v3360 = vsel %vm1057, %v3348, 0
        %v3363 = vsel %vm1057, %v3349, 0
        %v3366 = vsel %vm1057, %v3350, 0
        %v3368 = vsel %vm650, %v3356, 0
        %3370 = vmatprep.subr.mxu0 0.0
        %3371 = vmatpush1.msra.mxu0 %v3352
        %3372 = vmatprep.subr.mxu0 0.0
        %3373 = vmatpush1.msra.mxu0 %v3354
        %3374 = vmatprep.subr.mxu0 0.0
        %3375 = vmatpush1.msra.mxu0 %v3368
        %3376 = vmatprep.subr.mxu0 0.0
        %3377 = vmatpush1.msra.mxu0 0.0
        %3378 = vmatprep.subr.mxu0 0.0
        %3379 = vmatpush1.msra.mxu0 0.0
        %3380 = vmatprep.subr.mxu0 0.0
        %3381 = vmatpush1.msra.mxu0 0.0
        %3382 = vmatprep.subr.mxu0 0.0
        %3383 = vmatpush1.msra.mxu0 0.0
        %3384 = vmatprep.subr.mxu0 0.0
        %3385 = vmatpush1.msra.mxu0 0.0
        %3386 = vmatprep.subr.mxu0 0.0
        %3387 = vmatpush1.msra.mxu0 0.0
        %3388 = vmatprep.subr.mxu0 0.0
        %3389 = vmatpush1.msra.mxu0 0.0
        %3390 = vmatprep.subr.mxu0 0.0
        %3391 = vmatpush1.msra.mxu0 0.0
        %3392 = vmatprep.subr.mxu0 0.0
        %3393 = vmatpush1.msra.mxu0 0.0
        %3394 = vmatprep.subr.mxu0 0.0
        %3395 = vmatpush1.msra.mxu0 0.0
        %3396 = vmatprep.subr.mxu0 0.0
        %3397 = vmatpush1.msra.mxu0 0.0
        %3398 = vmatprep.subr.mxu0 0.0
        %3399 = vmatpush1.msra.mxu0 0.0
        %3400 = vmatprep.subr.mxu0 0.0
        %3401 = vmatpush1.msra.mxu0 0.0
        %3402 = vmatprep.subr.mxu0 0.0
        %3403 = vmatpush1.msra.mxu0 0.0
        %3404 = vmatprep.subr.mxu0 0.0
        %3405 = vmatpush1.msra.mxu0 0.0
        %3406 = vmatprep.subr.mxu0 0.0
        %3407 = vmatpush1.msra.mxu0 0.0
        %3408 = vmatprep.subr.mxu0 0.0
        %3409 = vmatpush1.msra.mxu0 0.0
        %3410 = vmatprep.subr.mxu0 0.0
        %3411 = vmatpush1.msra.mxu0 0.0
        %3412 = vmatprep.subr.mxu0 0.0
        %3413 = vmatpush1.msra.mxu0 0.0
        %3414 = vmatprep.subr.mxu0 0.0
        %3415 = vmatpush1.msra.mxu0 0.0
        %3416 = vmatprep.subr.mxu0 0.0
        %3417 = vmatpush1.msra.mxu0 0.0
        %3418 = vmatprep.subr.mxu0 0.0
        %3419 = vmatpush1.msra.mxu0 0.0
        %3420 = vmatprep.subr.mxu0 0.0
        %3421 = vmatpush1.msra.mxu0 0.0
        %3422 = vmatprep.subr.mxu0 0.0
        %3423 = vmatpush1.msra.mxu0 0.0
        %3424 = vmatprep.subr.mxu0 0.0
        %3425 = vmatpush1.msra.mxu0 0.0
        %3426 = vmatprep.subr.mxu0 0.0
        %3427 = vmatpush1.msra.mxu0 0.0
        %3428 = vmatprep.subr.mxu0 0.0
        %3429 = vmatpush1.msra.mxu0 0.0
        %3430 = vmatprep.subr.mxu0 0.0
        %3431 = vmatpush1.msra.mxu0 0.0
        %3432 = vmatprep.subr.mxu0 0.0
        %3433 = vmatpush1.msra.mxu0 0.0
        %3434 = vmatprep.mubr.f32.mxu0 0.0
        %3435 = vmatmul.mubr.f32.gmra.mrb[0].mxu0 %v3360
        %v3436 = vpop.f32.mrb[0].mxu0
        %v3437 = vadd.f32 0.0, %v3436
        %v3438 = vpop.f32.mrb[0].mxu0
        %3439 = vmatprep.mubr.f32.mxu0 0.0
        %3440 = vmatmul.mubr.f32.gmra.mrb[0].mxu0 %v3363
        %v3441 = vpop.f32.mrb[0].mxu0
        %v3442 = vadd.f32 0.0, %v3441
        %v3443 = vpop.f32.mrb[0].mxu0
        %3444 = vmatprep.mubr.f32.mxu0 0.0
        %3445 = vmatmul.mubr.f32.gmra.mrb[0].mxu0 %v3366
        %v3446 = vpop.f32.mrb[0].mxu0
        %v3447 = vadd.f32 0.0, %v3446
        %v3448 = vpop.f32.mrb[0].mxu0
        %3449 = vdwg.mxu0
        %3453 = vrot.lane.b32.xlu0 %v2965, 8
        %v3454 = vpop.permute.xlu0 %3453
        %3455 = vrot.lane.b32.xlu0 %v2970, 8
        %v3456 = vpop.permute.xlu0 %3455
        %3457 = vrot.lane.b32.xlu0 %v2975, 8
        %v3458 = vpop.permute.xlu0 %3457
        %3465 = vrot.lane.b32.xlu0 %v3201, 16
        %v3466 = vpop.permute.xlu0 %3465
        %3467 = vrot.lane.b32.xlu0 %v3206, 16
        %v3468 = vpop.permute.xlu0 %3467
        %3469 = vrot.lane.b32.xlu0 %v3211, 16
        %v3470 = vpop.permute.xlu0 %3469
        %3477 = vrot.lane.b32.xlu0 %v3437, 24
        %v3478 = vpop.permute.xlu0 %3477
        %3479 = vrot.lane.b32.xlu0 %v3442, 24
        %v3480 = vpop.permute.xlu0 %3479
        %3481 = vrot.lane.b32.xlu0 %v3447, 24
        %v3482 = vpop.permute.xlu0 %3481
        %v3486 = vsel %vm964, %v2729, %v3454
        %v3487 = vsel %vm964, %v2734, %v3456
        %v3488 = vsel %vm964, %v2739, %v3458
        %v3489 = vsel %vm1938, %v3486, %v3466
        %v3490 = vsel %vm1938, %v3487, %v3468
        %v3491 = vsel %vm1938, %v3488, %v3470
        %v3492 = vsel %vm1942, %v3489, %v3478
        %v3493 = vsel %vm1942, %v3490, %v3480
        %v3494 = vsel %vm1942, %v3491, %v3482
        %s3495 = scalar_lea.vmem %s9, 32
        %v3496 = vld [vmem:[%s3495] sm:$0xff]
        %v3497 = vld [vmem:[%s3495 + $0x8] sm:$0xff]
        %v3498 = vld [vmem:[%s3495 + $0x10] sm:$0xff]
        %v3499 = vld [vmem:[%s3495 + $0x18] sm:$0xff]
        %v3501 = vsel %vm736, %v3492, 0
        %v3504 = vsel %vm736, %v3493, 0
        %v3507 = vsel %vm736, %v3494, 0
        %3509 = vmatprep.subr.mxu0 0.0
        %3510 = vmatpush1.msra.mxu0 %v3496
        %3511 = vmatprep.subr.mxu0 0.0
        %3512 = vmatpush1.msra.mxu0 %v3497
        %3513 = vmatprep.subr.mxu0 0.0
        %3514 = vmatpush1.msra.mxu0 %v3498
        %3515 = vmatprep.subr.mxu0 0.0
        %3516 = vmatpush1.msra.mxu0 %v3499
        %3517 = vmatprep.subr.mxu0 0.0
        %3518 = vmatpush1.msra.mxu0 0.0
        %3519 = vmatprep.subr.mxu0 0.0
        %3520 = vmatpush1.msra.mxu0 0.0
        %3521 = vmatprep.subr.mxu0 0.0
        %3522 = vmatpush1.msra.mxu0 0.0
        %3523 = vmatprep.subr.mxu0 0.0
        %3524 = vmatpush1.msra.mxu0 0.0
        %3525 = vmatprep.subr.mxu0 0.0
        %3526 = vmatpush1.msra.mxu0 0.0
        %3527 = vmatprep.subr.mxu0 0.0
        %3528 = vmatpush1.msra.mxu0 0.0
        %3529 = vmatprep.subr.mxu0 0.0
        %3530 = vmatpush1.msra.mxu0 0.0
        %3531 = vmatprep.subr.mxu0 0.0
        %3532 = vmatpush1.msra.mxu0 0.0
        %3533 = vmatprep.subr.mxu0 0.0
        %3534 = vmatpush1.msra.mxu0 0.0
        %3535 = vmatprep.subr.mxu0 0.0
        %3536 = vmatpush1.msra.mxu0 0.0
        %3537 = vmatprep.subr.mxu0 0.0
        %3538 = vmatpush1.msra.mxu0 0.0
        %3539 = vmatprep.subr.mxu0 0.0
        %3540 = vmatpush1.msra.mxu0 0.0
        %3541 = vmatprep.subr.mxu0 0.0
        %3542 = vmatpush1.msra.mxu0 0.0
        %3543 = vmatprep.subr.mxu0 0.0
        %3544 = vmatpush1.msra.mxu0 0.0
        %3545 = vmatprep.subr.mxu0 0.0
        %3546 = vmatpush1.msra.mxu0 0.0
        %3547 = vmatprep.subr.mxu0 0.0
        %3548 = vmatpush1.msra.mxu0 0.0
        %3549 = vmatprep.subr.mxu0 0.0
        %3550 = vmatpush1.msra.mxu0 0.0
        %3551 = vmatprep.subr.mxu0 0.0
        %3552 = vmatpush1.msra.mxu0 0.0
        %3553 = vmatprep.subr.mxu0 0.0
        %3554 = vmatpush1.msra.mxu0 0.0
        %3555 = vmatprep.subr.mxu0 0.0
        %3556 = vmatpush1.msra.mxu0 0.0
        %3557 = vmatprep.subr.mxu0 0.0
        %3558 = vmatpush1.msra.mxu0 0.0
        %3559 = vmatprep.subr.mxu0 0.0
        %3560 = vmatpush1.msra.mxu0 0.0
        %3561 = vmatprep.subr.mxu0 0.0
        %3562 = vmatpush1.msra.mxu0 0.0
        %3563 = vmatprep.subr.mxu0 0.0
        %3564 = vmatpush1.msra.mxu0 0.0
        %3565 = vmatprep.subr.mxu0 0.0
        %3566 = vmatpush1.msra.mxu0 0.0
        %3567 = vmatprep.subr.mxu0 0.0
        %3568 = vmatpush1.msra.mxu0 0.0
        %3569 = vmatprep.subr.mxu0 0.0
        %3570 = vmatpush1.msra.mxu0 0.0
        %3571 = vmatprep.subr.mxu0 0.0
        %3572 = vmatpush1.msra.mxu0 0.0
        %3573 = vmatprep.mubr.f32.mxu0 0.0
        %3574 = vmatmul.mubr.f32.gmra.mrb[0].mxu0 %v3501
        %v3575 = vpop.f32.mrb[0].mxu0
        %v3576 = vadd.f32 0.0, %v3575
        %v3577 = vpop.f32.mrb[0].mxu0
        %3578 = vmatprep.mubr.f32.mxu0 0.0
        %3579 = vmatmul.mubr.f32.gmra.mrb[0].mxu0 %v3504
        %v3580 = vpop.f32.mrb[0].mxu0
        %v3581 = vadd.f32 0.0, %v3580
        %v3582 = vpop.f32.mrb[0].mxu0
        %3583 = vmatprep.mubr.f32.mxu0 0.0
        %3584 = vmatmul.mubr.f32.gmra.mrb[0].mxu0 %v3507
        %v3585 = vpop.f32.mrb[0].mxu0
        %v3586 = vadd.f32 0.0, %v3585
        %v3587 = vpop.f32.mrb[0].mxu0
        %3588 = vdwg.mxu0
        %v3589 = vadd.f32 %v2343, %v3576
        %v3590 = vadd.f32 %v2344, %v3581
        %v3591 = vadd.f32 %v2345, %v3586
        %s3592 = scalar_lea.vmem %s10, 1
        %v3593 = vld [vmem:[%s3592] sm:$0x1]
        %v3595 = vlaneseq
        %v3596 = vshrl.u32 %v3595, 7
        %v3597 = vsub.s32 0, %v3596
        %v3598 = vrot.slane %v3593, %v3597
        %v3600 = vadd.f32 %v3589, %v3598
        %v3601 = vadd.f32 %v3590, %v3598
        %v3602 = vadd.f32 %v3591, %v3598
        %s3603 = scalar_lea.vmem %s11, 1
        %v3604 = vld [vmem:[%s3603] sm:$0x1]
        %s3605 = scalar_lea.vmem %s12, 1
        %v3606 = vld [vmem:[%s3605] sm:$0x1]
        %v3607 = vsel %vm736, %v3600, 0.0
        %3608 = vadd.xlane.f32.xlu0 %v3607
        %v3609 = vpop.xlane.xlu0 %3608
        %v3610 = vsel %vm736, %v3601, 0.0
        %3611 = vadd.xlane.f32.xlu0 %v3610
        %v3612 = vpop.xlane.xlu0 %3611
        %v3613 = vsel %vm743, %v3602, 0.0
        %3614 = vadd.xlane.f32.xlu0 %v3613
        %v3615 = vpop.xlane.xlu0 %3614
        %v3616 = vmul.f32 %v3609, %v747
        %v3617 = vmul.f32 %v3612, %v747
        %v3618 = vmul.f32 %v3615, %v747
        %v3619 = vsub.f32 %v3600, %v3616
        %v3620 = vsub.f32 %v3601, %v3617
        %v3621 = vsub.f32 %v3602, %v3618
        %v3622 = vmul.f32 %v3619, %v3619
        %v3623 = vmul.f32 %v3620, %v3620
        %v3624 = vmul.f32 %v3621, %v3621
        %v3625 = vsel %vm736, %v3622, 0.0
        %3626 = vadd.xlane.f32.xlu0 %v3625
        %v3627 = vpop.xlane.xlu0 %3626
        %v3628 = vsel %vm736, %v3623, 0.0
        %3629 = vadd.xlane.f32.xlu0 %v3628
        %v3630 = vpop.xlane.xlu0 %3629
        %v3631 = vsel %vm743, %v3624, 0.0
        %3632 = vadd.xlane.f32.xlu0 %v3631
        %v3633 = vpop.xlane.xlu0 %3632
        %v3634 = vmul.f32 %v3627, %v747
        %v3635 = vmul.f32 %v3630, %v747
        %v3636 = vmul.f32 %v3633, %v747
        %v3637 = vadd.f32 %v3634, 1e-05
        %v3638 = vadd.f32 %v3635, 1e-05
        %v3639 = vadd.f32 %v3636, 1e-05
        %v3640 = vrsqrt.pop %v3637
        %v3641 = vrsqrt.pop %v3638
        %v3642 = vrsqrt.pop %v3639
        %v3643 = vmul.f32 %v3619, %v3640
        %v3644 = vmul.f32 %v3620, %v3641
        %v3645 = vmul.f32 %v3621, %v3642
        %v3647 = vlaneseq
        %v3648 = vshrl.u32 %v3647, 7
        %v3649 = vsub.s32 0, %v3648
        %v3650 = vrot.slane %v3604, %v3649
        %v3652 = vmul.f32 %v3643, %v3650
        %v3653 = vmul.f32 %v3644, %v3650
        %v3654 = vmul.f32 %v3645, %v3650
        %v3656 = vlaneseq
        %v3657 = vshrl.u32 %v3656, 7
        %v3658 = vsub.s32 0, %v3657
        %v3659 = vrot.slane %v3606, %v3658
        %v3661 = vadd.f32 %v3652, %v3659
        %v3662 = vadd.f32 %v3653, %v3659
        %v3663 = vadd.f32 %v3654, %v3659
        %s3664 = scalar_lea.vmem %s13, 32
        %v3665 = vld [vmem:[%s3664] sm:$0xff]
        %v3666 = vld [vmem:[%s3664 + $0x8] sm:$0xff]
        %v3667 = vld [vmem:[%s3664 + $0x10] sm:$0xff]
        %v3668 = vld [vmem:[%s3664 + $0x18] sm:$0xff]
        %s3669 = scalar_lea.vmem %s14, 1
        %v3670 = vld [vmem:[%s3669] sm:$0x1]
        %v3672 = vlaneseq
        %v3673 = vshrl.u32 %v3672, 7
        %v3674 = vsub.s32 0, %v3673
        %v3675 = vrot.slane %v3670, %v3674
        %v3678 = vsel %vm736, %v3661, 0
        %v3681 = vsel %vm736, %v3662, 0
        %v3684 = vsel %vm736, %v3663, 0
        %3686 = vmatprep.subr.mxu0 0.0
        %3687 = vmatpush1.msra.mxu0 %v3665
        %3688 = vmatprep.subr.mxu0 0.0
        %3689 = vmatpush1.msra.mxu0 %v3666
        %3690 = vmatprep.subr.mxu0 0.0
        %3691 = vmatpush1.msra.mxu0 %v3667
        %3692 = vmatprep.subr.mxu0 0.0
        %3693 = vmatpush1.msra.mxu0 %v3668
        %3694 = vmatprep.subr.mxu0 0.0
        %3695 = vmatpush1.msra.mxu0 0.0
        %3696 = vmatprep.subr.mxu0 0.0
        %3697 = vmatpush1.msra.mxu0 0.0
        %3698 = vmatprep.subr.mxu0 0.0
        %3699 = vmatpush1.msra.mxu0 0.0
        %3700 = vmatprep.subr.mxu0 0.0
        %3701 = vmatpush1.msra.mxu0 0.0
        %3702 = vmatprep.subr.mxu0 0.0
        %3703 = vmatpush1.msra.mxu0 0.0
        %3704 = vmatprep.subr.mxu0 0.0
        %3705 = vmatpush1.msra.mxu0 0.0
        %3706 = vmatprep.subr.mxu0 0.0
        %3707 = vmatpush1.msra.mxu0 0.0
        %3708 = vmatprep.subr.mxu0 0.0
        %3709 = vmatpush1.msra.mxu0 0.0
        %3710 = vmatprep.subr.mxu0 0.0
        %3711 = vmatpush1.msra.mxu0 0.0
        %3712 = vmatprep.subr.mxu0 0.0
        %3713 = vmatpush1.msra.mxu0 0.0
        %3714 = vmatprep.subr.mxu0 0.0
        %3715 = vmatpush1.msra.mxu0 0.0
        %3716 = vmatprep.subr.mxu0 0.0
        %3717 = vmatpush1.msra.mxu0 0.0
        %3718 = vmatprep.subr.mxu0 0.0
        %3719 = vmatpush1.msra.mxu0 0.0
        %3720 = vmatprep.subr.mxu0 0.0
        %3721 = vmatpush1.msra.mxu0 0.0
        %3722 = vmatprep.subr.mxu0 0.0
        %3723 = vmatpush1.msra.mxu0 0.0
        %3724 = vmatprep.subr.mxu0 0.0
        %3725 = vmatpush1.msra.mxu0 0.0
        %3726 = vmatprep.subr.mxu0 0.0
        %3727 = vmatpush1.msra.mxu0 0.0
        %3728 = vmatprep.subr.mxu0 0.0
        %3729 = vmatpush1.msra.mxu0 0.0
        %3730 = vmatprep.subr.mxu0 0.0
        %3731 = vmatpush1.msra.mxu0 0.0
        %3732 = vmatprep.subr.mxu0 0.0
        %3733 = vmatpush1.msra.mxu0 0.0
        %3734 = vmatprep.subr.mxu0 0.0
        %3735 = vmatpush1.msra.mxu0 0.0
        %3736 = vmatprep.subr.mxu0 0.0
        %3737 = vmatpush1.msra.mxu0 0.0
        %3738 = vmatprep.subr.mxu0 0.0
        %3739 = vmatpush1.msra.mxu0 0.0
        %3740 = vmatprep.subr.mxu0 0.0
        %3741 = vmatpush1.msra.mxu0 0.0
        %3742 = vmatprep.subr.mxu0 0.0
        %3743 = vmatpush1.msra.mxu0 0.0
        %3744 = vmatprep.subr.mxu0 0.0
        %3745 = vmatpush1.msra.mxu0 0.0
        %3746 = vmatprep.subr.mxu0 0.0
        %3747 = vmatpush1.msra.mxu0 0.0
        %3748 = vmatprep.subr.mxu0 0.0
        %3749 = vmatpush1.msra.mxu0 0.0
        %3750 = vmatprep.mubr.f32.mxu0 0.0
        %3751 = vmatmul.mubr.f32.gmra.mrb[0].mxu0 %v3678
        %v3752 = vpop.f32.mrb[0].mxu0
        %v3753 = vadd.f32 %v3675, %v3752
        %v3754 = vpop.f32.mrb[0].mxu0
        %3755 = vmatprep.mubr.f32.mxu0 0.0
        %3756 = vmatmul.mubr.f32.gmra.mrb[0].mxu0 %v3681
        %v3757 = vpop.f32.mrb[0].mxu0
        %v3758 = vadd.f32 %v3675, %v3757
        %v3759 = vpop.f32.mrb[0].mxu0
        %3760 = vmatprep.mubr.f32.mxu0 0.0
        %3761 = vmatmul.mubr.f32.gmra.mrb[0].mxu0 %v3684
        %v3762 = vpop.f32.mrb[0].mxu0
        %v3763 = vadd.f32 %v3675, %v3762
        %v3764 = vpop.f32.mrb[0].mxu0
        %3765 = vdwg.mxu0
        %v3766 = vmul.f32 %v3753, 1.702
        %v3767 = vmul.f32 %v3758, 1.702
        %v3768 = vmul.f32 %v3763, 1.702
        %v3769 = vxor.u32 %v3766, 2147483648
        %v3770 = vxor.u32 %v3767, 2147483648
        %v3771 = vxor.u32 %v3768, 2147483648
        %v3772 = vmul.f32 %v3769, 1.442695
        %v3773 = vpow.pop %v3772
        %v3774 = vmul.f32 %v3770, 1.442695
        %v3775 = vpow.pop %v3774
        %v3776 = vmul.f32 %v3771, 1.442695
        %v3777 = vpow.pop %v3776
        %v3778 = vadd.f32 %v3773, 1.0
        %v3779 = vadd.f32 %v3775, 1.0
        %v3780 = vadd.f32 %v3777, 1.0
        %v3781 = vrcp.pop %v3778
        %v3782 = vmul.f32 1.0, %v3781
        %v3783 = vrcp.pop %v3779
        %v3784 = vmul.f32 1.0, %v3783
        %v3785 = vrcp.pop %v3780
        %v3786 = vmul.f32 1.0, %v3785
        %v3787 = vmul.f32 %v3753, %v3782
        %v3788 = vmul.f32 %v3758, %v3784
        %v3789 = vmul.f32 %v3763, %v3786
        %s3790 = scalar_lea.vmem %s15, 64
        %v3791 = vld [vmem:[%s3790] sm:$0xff]
        %v3792 = vld [vmem:[%s3790 + $0x8] sm:$0xff]
        %v3793 = vld [vmem:[%s3790 + $0x10] sm:$0xff]
        %v3794 = vld [vmem:[%s3790 + $0x18] sm:$0xff]
        %v3795 = vld [vmem:[%s3790 + $0x20] sm:$0xff]
        %v3796 = vld [vmem:[%s3790 + $0x28] sm:$0xff]
        %v3797 = vld [vmem:[%s3790 + $0x30] sm:$0xff]
        %v3798 = vld [vmem:[%s3790 + $0x38] sm:$0xff]
        %v3800 = vsel %vm2243, %v3787, 0
        %v3803 = vsel %vm2243, %v3788, 0
        %v3806 = vsel %vm2243, %v3789, 0
        %3808 = vmatprep.subr.mxu0 0.0
        %3809 = vmatpush1.msra.mxu0 %v3791
        %3810 = vmatprep.subr.mxu0 0.0
        %3811 = vmatpush1.msra.mxu0 %v3792
        %3812 = vmatprep.subr.mxu0 0.0
        %3813 = vmatpush1.msra.mxu0 %v3793
        %3814 = vmatprep.subr.mxu0 0.0
        %3815 = vmatpush1.msra.mxu0 %v3794
        %3816 = vmatprep.subr.mxu0 0.0
        %3817 = vmatpush1.msra.mxu0 %v3795
        %3818 = vmatprep.subr.mxu0 0.0
        %3819 = vmatpush1.msra.mxu0 %v3796
        %3820 = vmatprep.subr.mxu0 0.0
        %3821 = vmatpush1.msra.mxu0 %v3797
        %3822 = vmatprep.subr.mxu0 0.0
        %3823 = vmatpush1.msra.mxu0 %v3798
        %3824 = vmatprep.subr.mxu0 0.0
        %3825 = vmatpush1.msra.mxu0 0.0
        %3826 = vmatprep.subr.mxu0 0.0
        %3827 = vmatpush1.msra.mxu0 0.0
        %3828 = vmatprep.subr.mxu0 0.0
        %3829 = vmatpush1.msra.mxu0 0.0
        %3830 = vmatprep.subr.mxu0 0.0
        %3831 = vmatpush1.msra.mxu0 0.0
        %3832 = vmatprep.subr.mxu0 0.0
        %3833 = vmatpush1.msra.mxu0 0.0
        %3834 = vmatprep.subr.mxu0 0.0
        %3835 = vmatpush1.msra.mxu0 0.0
        %3836 = vmatprep.subr.mxu0 0.0
        %3837 = vmatpush1.msra.mxu0 0.0
        %3838 = vmatprep.subr.mxu0 0.0
        %3839 = vmatpush1.msra.mxu0 0.0
        %3840 = vmatprep.subr.mxu0 0.0
        %3841 = vmatpush1.msra.mxu0 0.0
        %3842 = vmatprep.subr.mxu0 0.0
        %3843 = vmatpush1.msra.mxu0 0.0
        %3844 = vmatprep.subr.mxu0 0.0
        %3845 = vmatpush1.msra.mxu0 0.0
        %3846 = vmatprep.subr.mxu0 0.0
        %3847 = vmatpush1.msra.mxu0 0.0
        %3848 = vmatprep.subr.mxu0 0.0
        %3849 = vmatpush1.msra.mxu0 0.0
        %3850 = vmatprep.subr.mxu0 0.0
        %3851 = vmatpush1.msra.mxu0 0.0
        %3852 = vmatprep.subr.mxu0 0.0
        %3853 = vmatpush1.msra.mxu0 0.0
        %3854 = vmatprep.subr.mxu0 0.0
        %3855 = vmatpush1.msra.mxu0 0.0
        %3856 = vmatprep.subr.mxu0 0.0
        %3857 = vmatpush1.msra.mxu0 0.0
        %3858 = vmatprep.subr.mxu0 0.0
        %3859 = vmatpush1.msra.mxu0 0.0
        %3860 = vmatprep.subr.mxu0 0.0
        %3861 = vmatpush1.msra.mxu0 0.0
        %3862 = vmatprep.subr.mxu0 0.0
        %3863 = vmatpush1.msra.mxu0 0.0
        %3864 = vmatprep.subr.mxu0 0.0
        %3865 = vmatpush1.msra.mxu0 0.0
        %3866 = vmatprep.subr.mxu0 0.0
        %3867 = vmatpush1.msra.mxu0 0.0
        %3868 = vmatprep.subr.mxu0 0.0
        %3869 = vmatpush1.msra.mxu0 0.0
        %3870 = vmatprep.subr.mxu0 0.0
        %3871 = vmatpush1.msra.mxu0 0.0
        %3872 = vmatprep.mubr.f32.mxu0 0.0
        %3873 = vmatmul.mubr.f32.gmra.mrb[0].mxu0 %v3800
        %v3874 = vpop.f32.mrb[0].mxu0
        %v3875 = vadd.f32 0.0, %v3874
        %v3876 = vpop.f32.mrb[0].mxu0
        %3877 = vmatprep.mubr.f32.mxu0 0.0
        %3878 = vmatmul.mubr.f32.gmra.mrb[0].mxu0 %v3803
        %v3879 = vpop.f32.mrb[0].mxu0
        %v3880 = vpop.f32.mrb[0].mxu0
        %3881 = vmatprep.mubr.f32.mxu0 0.0
        %3882 = vmatmul.mubr.f32.gmra.mrb[0].mxu0 %v3806
        %v3883 = vpop.f32.mrb[0].mxu0
        %v3884 = vpop.f32.mrb[0].mxu0
        %3885 = vdwg.mxu0
        %v3886 = vadd.f32 %v3600, %v3875
        %s3887 = scalar_lea.vmem %s16, 1
        %v3888 = vld [vmem:[%s3887] sm:$0x1]
        %v3890 = vlaneseq
        %v3891 = vshrl.u32 %v3890, 7
        %v3892 = vsub.s32 0, %v3891
        %v3893 = vrot.slane %v3888, %v3892
        %v3895 = vadd.f32 %v3886, %v3893
        %v3896 = vld [vmem:[%s17] sm:$0x1]
        %v3897 = vld [vmem:[%s18] sm:$0x1]
        %v3898 = vsel %vm743, %v3895, 0.0
        %3899 = vadd.xlane.f32.xlu0 %v3898
        %v3900 = vpop.xlane.xlu0 %3899
        %v3901 = vmul.f32 %v3900, %v747
        %v3902 = vsub.f32 %v3895, %v3901
        %v3903 = vmul.f32 %v3902, %v3902
        %v3904 = vsel %vm743, %v3903, 0.0
        %3905 = vadd.xlane.f32.xlu0 %v3904
        %v3906 = vpop.xlane.xlu0 %3905
        %v3907 = vmul.f32 %v3906, %v747
        %v3908 = vadd.f32 %v3907, 1e-05
        %v3909 = vrsqrt.pop %v3908
        %v3910 = vmul.f32 %v3902, %v3909
        %v3911 = vmul.f32 %v3910, %v3896
        %v3912 = vadd.f32 %v3911, %v3897
        %v3913 = vld [vmem:[%s19] sm:$0xff]
        %v3914 = vld [vmem:[%s19 + $0x8] sm:$0xff]
        %v3915 = vld [vmem:[%s19 + $0x10] sm:$0xff]
        %v3916 = vld [vmem:[%s19 + $0x18] sm:$0xff]
        %v3918 = vsel %vm736, %v3912, 0
        %3920 = vmatprep.subr.mxu0 0.0
        %3921 = vmatpush1.msra.mxu0 %v3913
        %3922 = vmatprep.subr.mxu0 0.0
        %3923 = vmatpush1.msra.mxu0 %v3914
        %3924 = vmatprep.subr.mxu0 0.0
        %3925 = vmatpush1.msra.mxu0 %v3915
        %3926 = vmatprep.subr.mxu0 0.0
        %3927 = vmatpush1.msra.mxu0 %v3916
        %3928 = vmatprep.subr.mxu0 0.0
        %3929 = vmatpush1.msra.mxu0 0.0
        %3930 = vmatprep.subr.mxu0 0.0
        %3931 = vmatpush1.msra.mxu0 0.0
        %3932 = vmatprep.subr.mxu0 0.0
        %3933 = vmatpush1.msra.mxu0 0.0
        %3934 = vmatprep.subr.mxu0 0.0
        %3935 = vmatpush1.msra.mxu0 0.0
        %3936 = vmatprep.subr.mxu0 0.0
        %3937 = vmatpush1.msra.mxu0 0.0
        %3938 = vmatprep.subr.mxu0 0.0
        %3939 = vmatpush1.msra.mxu0 0.0
        %3940 = vmatprep.subr.mxu0 0.0
        %3941 = vmatpush1.msra.mxu0 0.0
        %3942 = vmatprep.subr.mxu0 0.0
        %3943 = vmatpush1.msra.mxu0 0.0
        %3944 = vmatprep.subr.mxu0 0.0
        %3945 = vmatpush1.msra.mxu0 0.0
        %3946 = vmatprep.subr.mxu0 0.0
        %3947 = vmatpush1.msra.mxu0 0.0
        %3948 = vmatprep.subr.mxu0 0.0
        %3949 = vmatpush1.msra.mxu0 0.0
        %3950 = vmatprep.subr.mxu0 0.0
        %3951 = vmatpush1.msra.mxu0 0.0
        %3952 = vmatprep.subr.mxu0 0.0
        %3953 = vmatpush1.msra.mxu0 0.0
        %3954 = vmatprep.subr.mxu0 0.0
        %3955 = vmatpush1.msra.mxu0 0.0
        %3956 = vmatprep.subr.mxu0 0.0
        %3957 = vmatpush1.msra.mxu0 0.0
        %3958 = vmatprep.subr.mxu0 0.0
        %3959 = vmatpush1.msra.mxu0 0.0
        %3960 = vmatprep.subr.mxu0 0.0
        %3961 = vmatpush1.msra.mxu0 0.0
        %3962 = vmatprep.subr.mxu0 0.0
        %3963 = vmatpush1.msra.mxu0 0.0
        %3964 = vmatprep.subr.mxu0 0.0
        %3965 = vmatpush1.msra.mxu0 0.0
        %3966 = vmatprep.subr.mxu0 0.0
        %3967 = vmatpush1.msra.mxu0 0.0
        %3968 = vmatprep.subr.mxu0 0.0
        %3969 = vmatpush1.msra.mxu0 0.0
        %3970 = vmatprep.subr.mxu0 0.0
        %3971 = vmatpush1.msra.mxu0 0.0
        %3972 = vmatprep.subr.mxu0 0.0
        %3973 = vmatpush1.msra.mxu0 0.0
        %3974 = vmatprep.subr.mxu0 0.0
        %3975 = vmatpush1.msra.mxu0 0.0
        %3976 = vmatprep.subr.mxu0 0.0
        %3977 = vmatpush1.msra.mxu0 0.0
        %3978 = vmatprep.subr.mxu0 0.0
        %3979 = vmatpush1.msra.mxu0 0.0
        %3980 = vmatprep.subr.mxu0 0.0
        %3981 = vmatpush1.msra.mxu0 0.0
        %3982 = vmatprep.subr.mxu0 0.0
        %3983 = vmatpush1.msra.mxu0 0.0
        %3984 = vmatprep.mubr.f32.mxu0 0.0
        %3985 = vmatmul.mubr.f32.gmra.mrb[0].mxu0 %v3918
        %v3986 = vpop.f32.mrb[0].mxu0
        %v3987 = vadd.f32 0.0, %v3986
        %v3988 = vpop.f32.mrb[0].mxu0
        %3989 = vdwg.mxu0
        %v3990 = vmul.f32 %v3987, %v3987
        %vm3991 = vcmask 122880
        %v3992 = vsel %vm3991, %v3990, 0.0
        %3993 = vadd.xlane.f32.xlu0 %v3992
        %v3994 = vpop.xlane.xlu0 %3993
        %v3995 = vrsqrt.pop %v3994
        %v3996 = vmul.f32 %v3987, %v3995
        %3997 = vst.msk [vmem:[%s621] sm:$0x1] %vm3991, %v3996
        %s3998 = sand.u32 %s467, 1
        %s3999 = scalar_lea.sflag [#allocation3], %s3998
        %s4000 = sand.u32 %s467, 1
        %s4001 = scalar_lea.vmem [#allocation2], %s4000
        // Predicated region
        $region101: #{clip_ft_forward.1} parent=99 // pred_check
          %p4002 = pneg %p477
        $region102: #{clip_ft_forward.1} parent=99 // pred_check_branch
          %4004 = sbr.rel (%p4002) target = $region104
        $region103: #{clip_ft_forward.1} parent=99 // pred_region
          %s4006 = ssub.s32 16, 16
          %4007 = vsyncadd %s3999, %s4006
          %s4008 = smul.addr %s34, 16
          %s4009 = scalar_lea.hbm %s20, %s4008
          %s4011 = sshll.u32 %s4001, 4
          %s4012 = int_to_ptr.vmem [resolvable:$true] %s4011
          %4014 = dma.vmem_to_hbm [thread:$0]  %s4012, 16, %s4009, %s3999
        $region104: #{clip_ft_forward.1} parent=99 // pred_fallthru
          _
      $region100: #{clip_ft_forward.1} parent=5 // pred_fallthru
        _
      %p4015 = scmp.le.s32.totalorder 2, %s29
      // Predicated region
      $region105: #{clip_ft_forward.1} parent=5 // pred_check
        %p4016 = pneg %p4015
      $region106: #{clip_ft_forward.1} parent=5 // pred_check_branch
        %4018 = sbr.rel (%p4016) target = $region108
      $region107: #{clip_ft_forward.1} parent=5 // pred_region
        %s4019 = ssub.s32 %s29, 2
        // Predicated region
        $region109: #{clip_ft_forward.1} parent=107 // pred_check
          %p4020 = pneg %p483
        $region110: #{clip_ft_forward.1} parent=107 // pred_check_branch
          %4022 = sbr.rel (%p4020) target = $region112
        $region111: #{clip_ft_forward.1} parent=107 // pred_region
          %s4023 = sand.u32 %s468, 1
          %s4024 = scalar_lea.sflag [#allocation3], %s4023
          %s4025 = sand.u32 %s468, 1
          %s4026 = scalar_lea.vmem [#allocation2], %s4025
          %4027 = dma.done %s4024, 16
        $region112: #{clip_ft_forward.1} parent=107 // pred_fallthru
          _
      $region108: #{clip_ft_forward.1} parent=5 // pred_fallthru
        _
    $region6: #{clip_ft_forward.1} parent=1 // loop_footer
      %s33 = sadd.s32 1, %s29
    $region7: #{clip_ft_forward.1} parent=1 // loop_footer_branch
      %28 = sbr.rel target = $region3
    $region8: #{clip_ft_forward.1} parent=1 // loop_exit
      _
    %4028 = vsyncpa [#allocation3], 1
    %s4029 = scalar_lea.sflag [#allocation3], 1
    %4030 = vsyncpa %s4029, 1

</llo_original>
